<compile_context>
chip_gen: v5e
topology: v5e:2x2
jax: 0.10.0
libtpu: 0.0.40
codegen_flags: <defaults>
</compile_context>

<pallas_src>
import functools

import jax
import jax.numpy as jnp
import numpy as np
from jax import lax
from jax.experimental import pallas as pl
from jax.experimental.pallas import tpu as pltpu

NC_PAD = 128  # lane-dense padded class dimension (sliced to num_classes outside)


def _shift_prev(v):
    """result[:, t] = v[:, t-1], zero row at t = 0.   v: (BB, T, C)."""
    return jnp.concatenate([jnp.zeros_like(v[:, :1, :]), v[:, :-1, :]], axis=1)


def _shift_next(v):
    """result[:, t] = v[:, t+1], zero row at t = T-1. v: (BB, T, C)."""
    return jnp.concatenate([v[:, 1:, :], jnp.zeros_like(v[:, :1, :])], axis=1)


# ----------------------------------------------------------------------------
# Single fused kernel: 3x(conv+BN+ReLU+pool) -> LSTM1 -> LSTM2 -> FC head
# (one batch block per grid step; grid axis is "parallel" for v7x's 2 TCs)
# ----------------------------------------------------------------------------
def fused_forward_kernel(
    x_ref,                                   # (BB, T, 1)
    w1_ref, s1_ref, sh1_ref,                 # conv1: (3,64), (1,64), (1,64)
    w2_ref, s2_ref, sh2_ref,                 # conv2: (3,64,128), (1,128), (1,128)
    w3_ref, s3_ref, sh3_ref,                 # conv3: (3,128,256), (1,256), (1,256)
    wih1_ref, b1_ref,                        # lstm1 in-proj: (256,512), (1,512)
    whhblk_ref,                              # block-diag recurrent: (192,768)
    wih2_ref, b2_ref,                        # lstm2 in-proj: (128,256), (1,256)
    wf1_ref, bf1_ref, wf2_ref, bf2_ref,      # fc: (64,64),(1,64),(64,NC_PAD),(1,NC_PAD)
    out_ref,                                 # (1, BB, NC_PAD)
    xp1_sc,                                  # VMEM scratch: (BB, T3, 4*H1)
):
    f32 = jnp.float32
    BB, T0, _ = x_ref.shape
    T3 = T0 // 8
    H1 = wih1_ref.shape[1] // 4
    H2 = wih2_ref.shape[1] // 4

    def bn_relu_pool(y, s_ref, sh_ref):
        # y: (BB, T, C). BN(eval affine)+ReLU, then MaxPool1d(2) over adjacent time
        # pairs (pairs never straddle a batch element: per-element T is even).
        bb, t, c = y.shape
        y = jnp.maximum(y * s_ref[...] + sh_ref[...], 0.0)
        return jnp.max(y.reshape(bb * t // 2, 2, c), axis=1).reshape(bb, t // 2, c)

    def conv_mxu(h, w_ref):
        # Conv1d(k=3, padding=1) as a sum of 3 shifted matmuls (no im2col concat).
        bb, t, cin = h.shape
        cout = w_ref.shape[2]
        y = jnp.dot(_shift_prev(h).reshape(bb * t, cin), w_ref[0],
                    preferred_element_type=f32)
        y = y + jnp.dot(h.reshape(bb * t, cin), w_ref[1], preferred_element_type=f32)
        y = y + jnp.dot(_shift_next(h).reshape(bb * t, cin), w_ref[2],
                        preferred_element_type=f32)
        return y.reshape(bb, t, cout)

    # ---------------- conv block 1 (Cin=1): VPU broadcast MAC, no MXU ----------------
    x = x_ref[...]                                                # (BB, T, 1)
    y1 = (_shift_prev(x) * w1_ref[0:1, :]
          + x * w1_ref[1:2, :]
          + _shift_next(x) * w1_ref[2:3, :])                      # (BB, T, 64)
    h = bn_relu_pool(y1, s1_ref, sh1_ref)                         # (BB, T/2, 64)

    # ---------------- conv blocks 2 & 3 (3 shifted MXU matmuls each) ----------------
    h = bn_relu_pool(conv_mxu(h, w2_ref), s2_ref, sh2_ref)        # (BB, T/4, 128)
    h = bn_relu_pool(conv_mxu(h, w3_ref), s3_ref, sh3_ref)        # (BB, T/8, 256)

    # -------- LSTM1 input projection hoisted out of the recurrence (one store) ------
    xp1 = jnp.dot(h.reshape(BB * T3, h.shape[2]), wih1_ref[...],
                  preferred_element_type=f32) + b1_ref[...]       # (BB*T3, 4*H1)
    xp1_sc[...] = xp1.reshape(BB, T3, 4 * H1)

    # -------- fused LSTM1 -> LSTM2 recurrence (only final h2 leaves the loop) -------
    sig, tanh = jax.nn.sigmoid, jnp.tanh

    def gates(g, c_prev, H):
        # gate columns packed (i, f, o, g): one sigmoid over 3H + one tanh over H.
        s = sig(g[:, :3 * H])
        i, f, o = s[:, :H], s[:, H:2 * H], s[:, 2 * H:3 * H]
        gg = tanh(g[:, 3 * H:])
        c = f * c_prev + i * gg
        return o * tanh(c), c

    def step(t, carry):
        h1, c1, h2, c2 = carry
        # One fused recurrent matmul for both layers (block-diagonal Whh).
        rec = jnp.dot(jnp.concatenate([h1, h2], axis=1), whhblk_ref[...],
                      preferred_element_type=f32)                 # (BB, 4*H1+4*H2)
        g1 = xp1_sc[:, pl.ds(t, 1), :].reshape(BB, 4 * H1) + rec[:, :4 * H1]
        h1, c1 = gates(g1, c1, H1)
        g2 = (jnp.dot(h1, wih2_ref[...], preferred_element_type=f32)
              + b2_ref[...] + rec[:, 4 * H1:])
        h2, c2 = gates(g2, c2, H2)
        return h1, c1, h2, c2

    def zero(n):
        return jnp.zeros((BB, n), f32)

    init = (zero(H1), zero(H1), zero(H2), zero(H2))
    if T3 <= 16:
        # Short static sequences: unroll with static slice starts.
        carry = init
        for t in range(T3):
            carry = step(t, carry)
        h1, c1, h2, c2 = carry
    else:
        # Realistic audio lengths: bounded code size / register pressure.
        h1, c1, h2, c2 = lax.fori_loop(0, T3, step, init)

    # ---------------- FC head (lane-dense padded output) ----------------
    hf = jnp.maximum(jnp.dot(h2, wf1_ref[...], preferred_element_type=f32)
                     + bf1_ref[...], 0.0)
    logits = jnp.dot(hf, wf2_ref[...], preferred_element_type=f32) + bf2_ref[...]
    out_ref[...] = logits.reshape(1, BB, NC_PAD)


# ----------------------------------------------------------------------------
# Wrapper
# ----------------------------------------------------------------------------
@functools.partial(jax.jit, static_argnames=("num_classes", "batch_block"))
def forward_pallas(x, packed, num_classes=7, batch_block=None):
    # x: (B, T, 1) float32.  Dropouts are identity (eval mode).
    B, T, Fin = x.shape
    # TODO(synk): conv1 VPU path assumes input_features == 1 (the module default);
    #             generalize via the shifted-matmul path if input_features > 1.
    assert Fin == 1, "model expects input_features == 1"
    assert T % 8 == 0 and T >= 8, "time length must be divisible by 8 (three MaxPool1d(2))"
    if batch_block is None:
        # Expose >= 2 parallel grid steps so v7x's second TensorCore gets work;
        # on v5e/v6e (1 TC) the extra grid step is a cheap sequential loop.
        batch_block = B if B < 2 else (B // 2 if B % 2 == 0 else 1)
    assert B % batch_block == 0
    BB = batch_block
    NB = B // BB
    T3 = T // 8
    H1 = 128

    def const_spec(arr):
        return pl.BlockSpec(arr.shape, lambda g, _n=arr.ndim: (0,) * _n)

    out = pl.pallas_call(
        fused_forward_kernel,
        out_shape=jax.ShapeDtypeStruct((NB, BB, NC_PAD), jnp.float32),
        grid_spec=pltpu.PrefetchScalarGridSpec(
            num_scalar_prefetch=0,
            grid=(NB,),
            in_specs=[pl.BlockSpec((BB, T, 1), lambda g: (g, 0, 0))]
                     + [const_spec(w) for w in packed],
            out_specs=pl.BlockSpec((1, BB, NC_PAD), lambda g: (g, 0, 0)),
            scratch_shapes=[pltpu.VMEM((BB, T3, 4 * H1), jnp.float32)],
        ),
        compiler_params=pltpu.CompilerParams(
            dimension_semantics=("parallel",),
            # Explicit VMEM budget: comfortably under v7x's 64 MiB physical VMEM and
            # v5e/v6e's 128 MiB, but above the small scoped defaults.
            # TODO(synk): for very long audio, tile the conv stage over time chunks
            #             (grid axis with 1-row halo via index_map) instead of keeping
            #             all activations resident.
            vmem_limit_bytes=48 * 1024 * 1024,
        ),
    )(x, *packed)
    return out.reshape(B, NC_PAD)[:, :num_classes]


# ----------------------------------------------------------------------------
# Parameters (deterministic, synthetic) + packing into kernel layout
# ----------------------------------------------------------------------------
def make_params(key, input_features=1, num_classes=7):
    ks = iter(jax.random.split(key, 64))
    p = {}

    def nrm(shape, s=0.1):
        return s * jax.random.normal(next(ks), shape, jnp.float32)

    chans = [input_features, 64, 128, 256]
    conv = []
    for cin, cout in zip(chans[:-1], chans[1:]):
        w = nrm((3, cin, cout))                                   # (k, Cin, Cout)
        bias = nrm((cout,))
        gamma = 1.0 + nrm((cout,), 0.05)
        beta = nrm((cout,), 0.05)
        rmean = nrm((cout,), 0.05)
        rvar = 1.0 + 0.05 * jnp.abs(jax.random.normal(next(ks), (cout,), jnp.float32))
        inv = gamma / jnp.sqrt(rvar + 1e-5)                       # BN eval fused affine
        conv.append({"w": w, "scale": inv, "shift": (bias - rmean) * inv + beta})
    p["conv"] = conv

    def lstm_p(insz, hid):                                        # gate order i,f,g,o in 4H cols
        return (nrm((insz, 4 * hid)), nrm((hid, 4 * hid)), nrm((4 * hid,)))

    p["lstm1"] = lstm_p(256, 128)
    p["lstm2"] = lstm_p(128, 64)
    p["fc"] = (nrm((64, 64)), nrm((64,)), nrm((64, num_classes)), nrm((num_classes,)))
    return p


def pack_params(p, num_classes):
    # NOTE: PyTorch LSTM has b_ih and b_hh; when porting a real checkpoint, sum them
    # into the single packed bias here (the synthetic params use one bias per layer).
    c1, c2, c3 = p["conv"]
    H1, H2 = 128, 64

    def permute_gates(w, H):   # columns (i,f,g,o) -> (i,f,o,g) along the last axis
        return jnp.concatenate(
            [w[..., :2 * H], w[..., 3 * H:4 * H], w[..., 2 * H:3 * H]], axis=-1)

    wih1, whh1, b1 = p["lstm1"]
    wih2, whh2, b2 = p["lstm2"]
    wih1, whh1, b1 = (permute_gates(wih1, H1), permute_gates(whh1, H1),
                      permute_gates(b1, H1))
    wih2, whh2, b2 = (permute_gates(wih2, H2), permute_gates(whh2, H2),
                      permute_gates(b2, H2))

    # Block-diagonal recurrent weight: [h1|h2] @ Whh_blk -> [rec1 (4H1) | rec2 (4H2)].
    whh_blk = jnp.zeros((H1 + H2, 4 * H1 + 4 * H2), jnp.float32)
    whh_blk = whh_blk.at[:H1, :4 * H1].set(whh1)
    whh_blk = whh_blk.at[H1:, 4 * H1:].set(whh2)

    wf1, bf1, wf2, bf2 = p["fc"]
    pad_c = NC_PAD - num_classes
    return (
        c1["w"][:, 0, :],                                         # (3, 64)
        c1["scale"][None, :], c1["shift"][None, :],
        c2["w"],                                                  # (3, 64, 128)
        c2["scale"][None, :], c2["shift"][None, :],
        c3["w"],                                                  # (3, 128, 256)
        c3["scale"][None, :], c3["shift"][None, :],
        wih1, b1[None, :],
        whh_blk,
        wih2, b2[None, :],
        wf1, bf1[None, :],
        jnp.pad(wf2, ((0, 0), (0, pad_c))),
        jnp.pad(bf2, (0, pad_c))[None, :],
    )


# ----------------------------------------------------------------------------
# Pure-JAX reference (f32, same semantics as the PyTorch module in eval mode)
# ----------------------------------------------------------------------------
def forward_ref(x, p):
    h = x
    for layer in p["conv"]:
        w, scale, shift = layer["w"], layer["scale"], layer["shift"]
        B, T, _ = h.shape
        cout = w.shape[-1]
        xp = jnp.pad(h, ((0, 0), (1, 1), (0, 0)))
        y = sum(jnp.einsum("btc,cd->btd", xp[:, k:k + T, :], w[k]) for k in range(3))
        y = jnp.maximum(y * scale + shift, 0.0)
        h = y.reshape(B, T // 2, 2, cout).max(axis=2)

    def lstm_ref(xseq, wih, whh, b):
        B, S, _ = xseq.shape
        H = whh.shape[0]
        hh = jnp.zeros((B, H), jnp.float32)
        cc = jnp.zeros((B, H), jnp.float32)
        outs = []
        for t in range(S):
            g = xseq[:, t, :] @ wih + hh @ whh + b
            i = jax.nn.sigmoid(g[:, 0:H]); f = jax.nn.sigmoid(g[:, H:2 * H])
            gg = jnp.tanh(g[:, 2 * H:3 * H]); o = jax.nn.sigmoid(g[:, 3 * H:4 * H])
            cc = f * cc + i * gg
            hh = o * jnp.tanh(cc)
            outs.append(hh)
        return jnp.stack(outs, axis=1)

    h = lstm_ref(h, *p["lstm1"])
    h = lstm_ref(h, *p["lstm2"])
    h = h[:, -1, :]
    w1, b1, w2, b2 = p["fc"]
    h = jnp.maximum(h @ w1 + b1, 0.0)
    return h @ w2 + b2


if __name__ == "__main__":
    key = jax.random.PRNGKey(0)
    kx, kp = jax.random.split(key)

    B, T, F = 2, 32, 1          # time 32 -> 16 -> 8 -> 4 after the three pools
    num_classes = 7
    x = jax.random.normal(kx, (B, T, F), jnp.float32)
    params = make_params(kp, input_features=F, num_classes=num_classes)
    packed = pack_params(params, num_classes)

    out = forward_pallas(x, packed, num_classes=num_classes)
    out = jax.block_until_ready(out)

    ref = forward_ref(x, params)
    np.testing.assert_allclose(np.asarray(out), np.asarray(ref), rtol=1e-4, atol=1e-4)
    assert out.shape == (B, num_classes)
    print("KERNEL_OK")
</pallas_src>

<mosaic_0001>
module attributes {stable_mosaic.version = 11 : i64} {
  func.func @fused_forward_kernel(%arg0: i32, %arg1: memref<1x32x1xf32, #tpu.memory_space<vmem>>, %arg2: memref<3x64xf32, #tpu.memory_space<vmem>>, %arg3: memref<1x64xf32, #tpu.memory_space<vmem>>, %arg4: memref<1x64xf32, #tpu.memory_space<vmem>>, %arg5: memref<3x64x128xf32, #tpu.memory_space<vmem>>, %arg6: memref<1x128xf32, #tpu.memory_space<vmem>>, %arg7: memref<1x128xf32, #tpu.memory_space<vmem>>, %arg8: memref<3x128x256xf32, #tpu.memory_space<vmem>>, %arg9: memref<1x256xf32, #tpu.memory_space<vmem>>, %arg10: memref<1x256xf32, #tpu.memory_space<vmem>>, %arg11: memref<256x512xf32, #tpu.memory_space<vmem>>, %arg12: memref<1x512xf32, #tpu.memory_space<vmem>>, %arg13: memref<192x768xf32, #tpu.memory_space<vmem>>, %arg14: memref<128x256xf32, #tpu.memory_space<vmem>>, %arg15: memref<1x256xf32, #tpu.memory_space<vmem>>, %arg16: memref<64x64xf32, #tpu.memory_space<vmem>>, %arg17: memref<1x64xf32, #tpu.memory_space<vmem>>, %arg18: memref<64x128xf32, #tpu.memory_space<vmem>>, %arg19: memref<1x128xf32, #tpu.memory_space<vmem>>, %arg20: memref<1x1x128xf32, #tpu.memory_space<vmem>>, %arg21: memref<1x4x512xf32, #tpu.memory_space<vmem>>) attributes {dimension_semantics = [#tpu.dimension_semantics<parallel>], iteration_bounds = array<i64: 2>, scalar_prefetch = 0 : i64, scratch_operands = 1 : i64, tpu.core_type = #tpu.core_type<tc>, window_params = [{transform_indices = @transform_0, window_bounds = array<i64: 1, 32, 1>}, {pipeline_mode = #tpu.pipeline_mode<synchronous>, transform_indices = @transform_1, window_bounds = array<i64: 3, 64>}, {pipeline_mode = #tpu.pipeline_mode<synchronous>, transform_indices = @transform_2, window_bounds = array<i64: 1, 64>}, {pipeline_mode = #tpu.pipeline_mode<synchronous>, transform_indices = @transform_3, window_bounds = array<i64: 1, 64>}, {pipeline_mode = #tpu.pipeline_mode<synchronous>, transform_indices = @transform_4, window_bounds = array<i64: 3, 64, 128>}, {pipeline_mode = #tpu.pipeline_mode<synchronous>, transform_indices = @transform_5, window_bounds = array<i64: 1, 128>}, {pipeline_mode = #tpu.pipeline_mode<synchronous>, transform_indices = @transform_6, window_bounds = array<i64: 1, 128>}, {pipeline_mode = #tpu.pipeline_mode<synchronous>, transform_indices = @transform_7, window_bounds = array<i64: 3, 128, 256>}, {pipeline_mode = #tpu.pipeline_mode<synchronous>, transform_indices = @transform_8, window_bounds = array<i64: 1, 256>}, {pipeline_mode = #tpu.pipeline_mode<synchronous>, transform_indices = @transform_9, window_bounds = array<i64: 1, 256>}, {pipeline_mode = #tpu.pipeline_mode<synchronous>, transform_indices = @transform_10, window_bounds = array<i64: 256, 512>}, {pipeline_mode = #tpu.pipeline_mode<synchronous>, transform_indices = @transform_11, window_bounds = array<i64: 1, 512>}, {pipeline_mode = #tpu.pipeline_mode<synchronous>, transform_indices = @transform_12, window_bounds = array<i64: 192, 768>}, {pipeline_mode = #tpu.pipeline_mode<synchronous>, transform_indices = @transform_13, window_bounds = array<i64: 128, 256>}, {pipeline_mode = #tpu.pipeline_mode<synchronous>, transform_indices = @transform_14, window_bounds = array<i64: 1, 256>}, {pipeline_mode = #tpu.pipeline_mode<synchronous>, transform_indices = @transform_15, window_bounds = array<i64: 64, 64>}, {pipeline_mode = #tpu.pipeline_mode<synchronous>, transform_indices = @transform_16, window_bounds = array<i64: 1, 64>}, {pipeline_mode = #tpu.pipeline_mode<synchronous>, transform_indices = @transform_17, window_bounds = array<i64: 64, 128>}, {pipeline_mode = #tpu.pipeline_mode<synchronous>, transform_indices = @transform_18, window_bounds = array<i64: 1, 128>}, {transform_indices = @transform_19, window_bounds = array<i64: 1, 1, 128>}]} {
    %c0 = arith.constant 0 : index
    %c0_0 = arith.constant 0 : index
    %c0_1 = arith.constant 0 : index
    %0 = vector.load %arg1[%c0, %c0_0, %c0_1] : memref<1x32x1xf32, #tpu.memory_space<vmem>>, vector<1x32x1xf32>
    %cst = arith.constant 0.000000e+00 : f32
    %1 = vector.broadcast %cst : f32 to vector<1x1x1xf32>
    %2 = vector.extract_strided_slice %0 {offsets = [0, 0, 0], sizes = [1, 31, 1], strides = [1, 1, 1]} : vector<1x32x1xf32> to vector<1x31x1xf32>
    %3 = tpu.concatenate %1, %2 in 1 : vector<1x1x1xf32>, vector<1x31x1xf32> -> vector<1x32x1xf32>
    %c0_2 = arith.constant 0 : index
    %c0_3 = arith.constant 0 : index
    %4 = vector.load %arg2[%c0_2, %c0_3] : memref<3x64xf32, #tpu.memory_space<vmem>>, vector<1x64xf32>
    %5 = vector.shape_cast %4 : vector<1x64xf32> to vector<1x1x64xf32>
    %6 = vector.broadcast %3 : vector<1x32x1xf32> to vector<1x32x64xf32>
    %7 = vector.broadcast %5 : vector<1x1x64xf32> to vector<1x32x64xf32>
    %8 = arith.mulf %6, %7 : vector<1x32x64xf32>
    %c1 = arith.constant 1 : index
    %c0_4 = arith.constant 0 : index
    %9 = vector.load %arg2[%c1, %c0_4] : memref<3x64xf32, #tpu.memory_space<vmem>>, vector<1x64xf32>
    %10 = vector.shape_cast %9 : vector<1x64xf32> to vector<1x1x64xf32>
    %11 = vector.broadcast %0 : vector<1x32x1xf32> to vector<1x32x64xf32>
    %12 = vector.broadcast %10 : vector<1x1x64xf32> to vector<1x32x64xf32>
    %13 = arith.mulf %11, %12 : vector<1x32x64xf32>
    %14 = arith.addf %8, %13 : vector<1x32x64xf32>
    %15 = vector.extract_strided_slice %0 {offsets = [0, 1, 0], sizes = [1, 31, 1], strides = [1, 1, 1]} : vector<1x32x1xf32> to vector<1x31x1xf32>
    %cst_5 = arith.constant 0.000000e+00 : f32
    %16 = vector.broadcast %cst_5 : f32 to vector<1x1x1xf32>
    %17 = tpu.concatenate %15, %16 in 1 : vector<1x31x1xf32>, vector<1x1x1xf32> -> vector<1x32x1xf32>
    %c2 = arith.constant 2 : index
    %c0_6 = arith.constant 0 : index
    %18 = vector.load %arg2[%c2, %c0_6] : memref<3x64xf32, #tpu.memory_space<vmem>>, vector<1x64xf32>
    %19 = vector.shape_cast %18 : vector<1x64xf32> to vector<1x1x64xf32>
    %20 = vector.broadcast %17 : vector<1x32x1xf32> to vector<1x32x64xf32>
    %21 = vector.broadcast %19 : vector<1x1x64xf32> to vector<1x32x64xf32>
    %22 = arith.mulf %20, %21 : vector<1x32x64xf32>
    %23 = arith.addf %14, %22 : vector<1x32x64xf32>
    %c0_7 = arith.constant 0 : index
    %c0_8 = arith.constant 0 : index
    %24 = vector.load %arg3[%c0_7, %c0_8] : memref<1x64xf32, #tpu.memory_space<vmem>>, vector<1x64xf32>
    %25 = vector.shape_cast %24 : vector<1x64xf32> to vector<1x1x64xf32>
    %26 = vector.broadcast %25 : vector<1x1x64xf32> to vector<1x32x64xf32>
    %27 = arith.mulf %23, %26 : vector<1x32x64xf32>
    %c0_9 = arith.constant 0 : index
    %c0_10 = arith.constant 0 : index
    %28 = vector.load %arg4[%c0_9, %c0_10] : memref<1x64xf32, #tpu.memory_space<vmem>>, vector<1x64xf32>
    %29 = vector.shape_cast %28 : vector<1x64xf32> to vector<1x1x64xf32>
    %30 = vector.broadcast %29 : vector<1x1x64xf32> to vector<1x32x64xf32>
    %31 = arith.addf %27, %30 : vector<1x32x64xf32>
    %cst_11 = arith.constant 0.000000e+00 : f32
    %32 = vector.broadcast %cst_11 : f32 to vector<1x32x64xf32>
    %33 = arith.maximumf %31, %32 : vector<1x32x64xf32>
    %34 = vector.shape_cast %33 : vector<1x32x64xf32> to vector<16x2x64xf32>
    %cst_12 = arith.constant dense<0xFF800000> : vector<16x64xf32>
    %35 = vector.multi_reduction <maximumf>, %34, %cst_12 [1] : vector<16x2x64xf32> to vector<16x64xf32>
    %36 = vector.shape_cast %35 : vector<16x64xf32> to vector<1x16x64xf32>
    %cst_13 = arith.constant 0.000000e+00 : f32
    %37 = vector.broadcast %cst_13 : f32 to vector<1x1x64xf32>
    %38 = vector.extract_strided_slice %36 {offsets = [0, 0, 0], sizes = [1, 15, 64], strides = [1, 1, 1]} : vector<1x16x64xf32> to vector<1x15x64xf32>
    %39 = tpu.concatenate %37, %38 in 1 : vector<1x1x64xf32>, vector<1x15x64xf32> -> vector<1x16x64xf32>
    %40 = vector.shape_cast %39 : vector<1x16x64xf32> to vector<16x64xf32>
    %c0_14 = arith.constant 0 : index
    %c0_15 = arith.constant 0 : index
    %c0_16 = arith.constant 0 : index
    %41 = vector.load %arg5[%c0_14, %c0_15, %c0_16] : memref<3x64x128xf32, #tpu.memory_space<vmem>>, vector<1x64x128xf32>
    %42 = vector.shape_cast %41 : vector<1x64x128xf32> to vector<64x128xf32>
    %cst_17 = arith.constant dense<0.000000e+00> : vector<16x128xf32>
    %43 = tpu.matmul %40, %42, %cst_17 {dimension_numbers = #tpu.dot_dimension_numbers<[1], [0], [0], [1], [0, 0, 1, 1], [], []>} : vector<16x64xf32>, vector<64x128xf32>, vector<16x128xf32> -> vector<16x128xf32>
    %44 = vector.shape_cast %36 : vector<1x16x64xf32> to vector<16x64xf32>
    %c1_18 = arith.constant 1 : index
    %c0_19 = arith.constant 0 : index
    %c0_20 = arith.constant 0 : index
    %45 = vector.load %arg5[%c1_18, %c0_19, %c0_20] : memref<3x64x128xf32, #tpu.memory_space<vmem>>, vector<1x64x128xf32>
    %46 = vector.shape_cast %45 : vector<1x64x128xf32> to vector<64x128xf32>
    %cst_21 = arith.constant dense<0.000000e+00> : vector<16x128xf32>
    %47 = tpu.matmul %44, %46, %cst_21 {dimension_numbers = #tpu.dot_dimension_numbers<[1], [0], [0], [1], [0, 0, 1, 1], [], []>} : vector<16x64xf32>, vector<64x128xf32>, vector<16x128xf32> -> vector<16x128xf32>
    %48 = arith.addf %43, %47 : vector<16x128xf32>
    %49 = vector.extract_strided_slice %36 {offsets = [0, 1, 0], sizes = [1, 15, 64], strides = [1, 1, 1]} : vector<1x16x64xf32> to vector<1x15x64xf32>
    %cst_22 = arith.constant 0.000000e+00 : f32
    %50 = vector.broadcast %cst_22 : f32 to vector<1x1x64xf32>
    %51 = tpu.concatenate %49, %50 in 1 : vector<1x15x64xf32>, vector<1x1x64xf32> -> vector<1x16x64xf32>
    %52 = vector.shape_cast %51 : vector<1x16x64xf32> to vector<16x64xf32>
    %c2_23 = arith.constant 2 : index
    %c0_24 = arith.constant 0 : index
    %c0_25 = arith.constant 0 : index
    %53 = vector.load %arg5[%c2_23, %c0_24, %c0_25] : memref<3x64x128xf32, #tpu.memory_space<vmem>>, vector<1x64x128xf32>
    %54 = vector.shape_cast %53 : vector<1x64x128xf32> to vector<64x128xf32>
    %cst_26 = arith.constant dense<0.000000e+00> : vector<16x128xf32>
    %55 = tpu.matmul %52, %54, %cst_26 {dimension_numbers = #tpu.dot_dimension_numbers<[1], [0], [0], [1], [0, 0, 1, 1], [], []>} : vector<16x64xf32>, vector<64x128xf32>, vector<16x128xf32> -> vector<16x128xf32>
    %56 = arith.addf %48, %55 : vector<16x128xf32>
    %57 = vector.shape_cast %56 : vector<16x128xf32> to vector<1x16x128xf32>
    %c0_27 = arith.constant 0 : index
    %c0_28 = arith.constant 0 : index
    %58 = vector.load %arg6[%c0_27, %c0_28] : memref<1x128xf32, #tpu.memory_space<vmem>>, vector<1x128xf32>
    %59 = vector.shape_cast %58 : vector<1x128xf32> to vector<1x1x128xf32>
    %60 = vector.broadcast %59 : vector<1x1x128xf32> to vector<1x16x128xf32>
    %61 = arith.mulf %57, %60 : vector<1x16x128xf32>
    %c0_29 = arith.constant 0 : index
    %c0_30 = arith.constant 0 : index
    %62 = vector.load %arg7[%c0_29, %c0_30] : memref<1x128xf32, #tpu.memory_space<vmem>>, vector<1x128xf32>
    %63 = vector.shape_cast %62 : vector<1x128xf32> to vector<1x1x128xf32>
    %64 = vector.broadcast %63 : vector<1x1x128xf32> to vector<1x16x128xf32>
    %65 = arith.addf %61, %64 : vector<1x16x128xf32>
    %cst_31 = arith.constant 0.000000e+00 : f32
    %66 = vector.broadcast %cst_31 : f32 to vector<1x16x128xf32>
    %67 = arith.maximumf %65, %66 : vector<1x16x128xf32>
    %68 = vector.shape_cast %67 : vector<1x16x128xf32> to vector<8x2x128xf32>
    %cst_32 = arith.constant dense<0xFF800000> : vector<8x128xf32>
    %69 = vector.multi_reduction <maximumf>, %68, %cst_32 [1] : vector<8x2x128xf32> to vector<8x128xf32>
    %70 = vector.shape_cast %69 : vector<8x128xf32> to vector<1x8x128xf32>
    %cst_33 = arith.constant 0.000000e+00 : f32
    %71 = vector.broadcast %cst_33 : f32 to vector<1x1x128xf32>
    %72 = vector.extract_strided_slice %70 {offsets = [0, 0, 0], sizes = [1, 7, 128], strides = [1, 1, 1]} : vector<1x8x128xf32> to vector<1x7x128xf32>
    %73 = tpu.concatenate %71, %72 in 1 : vector<1x1x128xf32>, vector<1x7x128xf32> -> vector<1x8x128xf32>
    %74 = vector.shape_cast %73 : vector<1x8x128xf32> to vector<8x128xf32>
    %c0_34 = arith.constant 0 : index
    %c0_35 = arith.constant 0 : index
    %c0_36 = arith.constant 0 : index
    %75 = vector.load %arg8[%c0_34, %c0_35, %c0_36] : memref<3x128x256xf32, #tpu.memory_space<vmem>>, vector<1x128x256xf32>
    %76 = vector.shape_cast %75 : vector<1x128x256xf32> to vector<128x256xf32>
    %cst_37 = arith.constant dense<0.000000e+00> : vector<8x256xf32>
    %77 = tpu.matmul %74, %76, %cst_37 {dimension_numbers = #tpu.dot_dimension_numbers<[1], [0], [0], [1], [0, 0, 1, 1], [], []>} : vector<8x128xf32>, vector<128x256xf32>, vector<8x256xf32> -> vector<8x256xf32>
    %78 = vector.shape_cast %70 : vector<1x8x128xf32> to vector<8x128xf32>
    %c1_38 = arith.constant 1 : index
    %c0_39 = arith.constant 0 : index
    %c0_40 = arith.constant 0 : index
    %79 = vector.load %arg8[%c1_38, %c0_39, %c0_40] : memref<3x128x256xf32, #tpu.memory_space<vmem>>, vector<1x128x256xf32>
    %80 = vector.shape_cast %79 : vector<1x128x256xf32> to vector<128x256xf32>
    %cst_41 = arith.constant dense<0.000000e+00> : vector<8x256xf32>
    %81 = tpu.matmul %78, %80, %cst_41 {dimension_numbers = #tpu.dot_dimension_numbers<[1], [0], [0], [1], [0, 0, 1, 1], [], []>} : vector<8x128xf32>, vector<128x256xf32>, vector<8x256xf32> -> vector<8x256xf32>
    %82 = arith.addf %77, %81 : vector<8x256xf32>
    %83 = vector.extract_strided_slice %70 {offsets = [0, 1, 0], sizes = [1, 7, 128], strides = [1, 1, 1]} : vector<1x8x128xf32> to vector<1x7x128xf32>
    %cst_42 = arith.constant 0.000000e+00 : f32
    %84 = vector.broadcast %cst_42 : f32 to vector<1x1x128xf32>
    %85 = tpu.concatenate %83, %84 in 1 : vector<1x7x128xf32>, vector<1x1x128xf32> -> vector<1x8x128xf32>
    %86 = vector.shape_cast %85 : vector<1x8x128xf32> to vector<8x128xf32>
    %c2_43 = arith.constant 2 : index
    %c0_44 = arith.constant 0 : index
    %c0_45 = arith.constant 0 : index
    %87 = vector.load %arg8[%c2_43, %c0_44, %c0_45] : memref<3x128x256xf32, #tpu.memory_space<vmem>>, vector<1x128x256xf32>
    %88 = vector.shape_cast %87 : vector<1x128x256xf32> to vector<128x256xf32>
    %cst_46 = arith.constant dense<0.000000e+00> : vector<8x256xf32>
    %89 = tpu.matmul %86, %88, %cst_46 {dimension_numbers = #tpu.dot_dimension_numbers<[1], [0], [0], [1], [0, 0, 1, 1], [], []>} : vector<8x128xf32>, vector<128x256xf32>, vector<8x256xf32> -> vector<8x256xf32>
    %90 = arith.addf %82, %89 : vector<8x256xf32>
    %91 = vector.shape_cast %90 : vector<8x256xf32> to vector<1x8x256xf32>
    %c0_47 = arith.constant 0 : index
    %c0_48 = arith.constant 0 : index
    %92 = vector.load %arg9[%c0_47, %c0_48] : memref<1x256xf32, #tpu.memory_space<vmem>>, vector<1x256xf32>
    %93 = vector.shape_cast %92 : vector<1x256xf32> to vector<1x1x256xf32>
    %94 = vector.broadcast %93 : vector<1x1x256xf32> to vector<1x8x256xf32>
    %95 = arith.mulf %91, %94 : vector<1x8x256xf32>
    %c0_49 = arith.constant 0 : index
    %c0_50 = arith.constant 0 : index
    %96 = vector.load %arg10[%c0_49, %c0_50] : memref<1x256xf32, #tpu.memory_space<vmem>>, vector<1x256xf32>
    %97 = vector.shape_cast %96 : vector<1x256xf32> to vector<1x1x256xf32>
    %98 = vector.broadcast %97 : vector<1x1x256xf32> to vector<1x8x256xf32>
    %99 = arith.addf %95, %98 : vector<1x8x256xf32>
    %cst_51 = arith.constant 0.000000e+00 : f32
    %100 = vector.broadcast %cst_51 : f32 to vector<1x8x256xf32>
    %101 = arith.maximumf %99, %100 : vector<1x8x256xf32>
    %102 = vector.shape_cast %101 : vector<1x8x256xf32> to vector<4x2x256xf32>
    %cst_52 = arith.constant dense<0xFF800000> : vector<4x256xf32>
    %103 = vector.multi_reduction <maximumf>, %102, %cst_52 [1] : vector<4x2x256xf32> to vector<4x256xf32>
    %104 = vector.shape_cast %103 : vector<4x256xf32> to vector<1x4x256xf32>
    %105 = vector.shape_cast %104 : vector<1x4x256xf32> to vector<4x256xf32>
    %c0_53 = arith.constant 0 : index
    %c0_54 = arith.constant 0 : index
    %106 = vector.load %arg11[%c0_53, %c0_54] : memref<256x512xf32, #tpu.memory_space<vmem>>, vector<256x512xf32>
    %cst_55 = arith.constant dense<0.000000e+00> : vector<4x512xf32>
    %107 = tpu.matmul %105, %106, %cst_55 {dimension_numbers = #tpu.dot_dimension_numbers<[1], [0], [0], [1], [0, 0, 1, 1], [], []>} : vector<4x256xf32>, vector<256x512xf32>, vector<4x512xf32> -> vector<4x512xf32>
    %c0_56 = arith.constant 0 : index
    %c0_57 = arith.constant 0 : index
    %108 = vector.load %arg12[%c0_56, %c0_57] : memref<1x512xf32, #tpu.memory_space<vmem>>, vector<1x512xf32>
    %109 = vector.broadcast %108 : vector<1x512xf32> to vector<4x512xf32>
    %110 = arith.addf %107, %109 : vector<4x512xf32>
    %111 = vector.shape_cast %110 : vector<4x512xf32> to vector<1x4x512xf32>
    %c0_58 = arith.constant 0 : index
    %c0_59 = arith.constant 0 : index
    %c0_60 = arith.constant 0 : index
    %112 = vector.load %arg21[%c0_58, %c0_59, %c0_60] : memref<1x4x512xf32, #tpu.memory_space<vmem>>, vector<1x4x512xf32>
    tpu.vector_store %arg21[%c0_58, %c0_59, %c0_60], %111 {strides = array<i32>} : memref<1x4x512xf32, #tpu.memory_space<vmem>>, vector<1x4x512xf32>,
    %cst_61 = arith.constant 0.000000e+00 : f32
    %113 = vector.broadcast %cst_61 : f32 to vector<1x128xf32>
    %cst_62 = arith.constant 0.000000e+00 : f32
    %114 = vector.broadcast %cst_62 : f32 to vector<1x128xf32>
    %cst_63 = arith.constant 0.000000e+00 : f32
    %115 = vector.broadcast %cst_63 : f32 to vector<1x64xf32>
    %cst_64 = arith.constant 0.000000e+00 : f32
    %116 = vector.broadcast %cst_64 : f32 to vector<1x64xf32>
    %117 = tpu.concatenate %113, %115 in 1 : vector<1x128xf32>, vector<1x64xf32> -> vector<1x192xf32>
    %c0_65 = arith.constant 0 : index
    %c0_66 = arith.constant 0 : index
    %118 = vector.load %arg13[%c0_65, %c0_66] : memref<192x768xf32, #tpu.memory_space<vmem>>, vector<192x768xf32>
    %cst_67 = arith.constant dense<0.000000e+00> : vector<1x768xf32>
    %119 = tpu.matmul %117, %118, %cst_67 {dimension_numbers = #tpu.dot_dimension_numbers<[1], [0], [0], [1], [0, 0, 1, 1], [], []>} : vector<1x192xf32>, vector<192x768xf32>, vector<1x768xf32> -> vector<1x768xf32>
    %c0_68 = arith.constant 0 : index
    %c0_69 = arith.constant 0 : index
    %c0_70 = arith.constant 0 : index
    %120 = vector.load %arg21[%c0_68, %c0_69, %c0_70] : memref<1x4x512xf32, #tpu.memory_space<vmem>>, vector<1x1x512xf32>
    %121 = vector.shape_cast %120 : vector<1x1x512xf32> to vector<1x512xf32>
    %122 = vector.extract_strided_slice %119 {offsets = [0, 0], sizes = [1, 512], strides = [1, 1]} : vector<1x768xf32> to vector<1x512xf32>
    %123 = arith.addf %121, %122 : vector<1x512xf32>
    %124 = vector.extract_strided_slice %123 {offsets = [0, 0], sizes = [1, 384], strides = [1, 1]} : vector<1x512xf32> to vector<1x384xf32>
    %125 = arith.negf %124 : vector<1x384xf32>
    %126 = math.exp %125 : vector<1x384xf32>
    %cst_71 = arith.constant 1.000000e+00 : f32
    %127 = vector.broadcast %cst_71 : f32 to vector<1x384xf32>
    %128 = arith.addf %127, %126 : vector<1x384xf32>
    %129 = arith.divf %127, %128 : vector<1x384xf32>
    %130 = vector.extract_strided_slice %129 {offsets = [0, 0], sizes = [1, 128], strides = [1, 1]} : vector<1x384xf32> to vector<1x128xf32>
    %131 = vector.extract_strided_slice %129 {offsets = [0, 128], sizes = [1, 128], strides = [1, 1]} : vector<1x384xf32> to vector<1x128xf32>
    %132 = vector.extract_strided_slice %129 {offsets = [0, 256], sizes = [1, 128], strides = [1, 1]} : vector<1x384xf32> to vector<1x128xf32>
    %133 = vector.extract_strided_slice %123 {offsets = [0, 384], sizes = [1, 128], strides = [1, 1]} : vector<1x512xf32> to vector<1x128xf32>
    %134 = math.tanh %133 : vector<1x128xf32>
    %135 = arith.mulf %131, %114 : vector<1x128xf32>
    %136 = arith.mulf %130, %134 : vector<1x128xf32>
    %137 = arith.addf %135, %136 : vector<1x128xf32>
    %138 = math.tanh %137 : vector<1x128xf32>
    %139 = arith.mulf %132, %138 : vector<1x128xf32>
    %c0_72 = arith.constant 0 : index
    %c0_73 = arith.constant 0 : index
    %140 = vector.load %arg14[%c0_72, %c0_73] : memref<128x256xf32, #tpu.memory_space<vmem>>, vector<128x256xf32>
    %cst_74 = arith.constant dense<0.000000e+00> : vector<1x256xf32>
    %141 = tpu.matmul %139, %140, %cst_74 {dimension_numbers = #tpu.dot_dimension_numbers<[1], [0], [0], [1], [0, 0, 1, 1], [], []>} : vector<1x128xf32>, vector<128x256xf32>, vector<1x256xf32> -> vector<1x256xf32>
    %c0_75 = arith.constant 0 : index
    %c0_76 = arith.constant 0 : index
    %142 = vector.load %arg15[%c0_75, %c0_76] : memref<1x256xf32, #tpu.memory_space<vmem>>, vector<1x256xf32>
    %143 = arith.addf %141, %142 : vector<1x256xf32>
    %144 = vector.extract_strided_slice %119 {offsets = [0, 512], sizes = [1, 256], strides = [1, 1]} : vector<1x768xf32> to vector<1x256xf32>
    %145 = arith.addf %143, %144 : vector<1x256xf32>
    %146 = vector.extract_strided_slice %145 {offsets = [0, 0], sizes = [1, 192], strides = [1, 1]} : vector<1x256xf32> to vector<1x192xf32>
    %147 = arith.negf %146 : vector<1x192xf32>
    %148 = math.exp %147 : vector<1x192xf32>
    %cst_77 = arith.constant 1.000000e+00 : f32
    %149 = vector.broadcast %cst_77 : f32 to vector<1x192xf32>
    %150 = arith.addf %149, %148 : vector<1x192xf32>
    %151 = arith.divf %149, %150 : vector<1x192xf32>
    %152 = vector.extract_strided_slice %151 {offsets = [0, 0], sizes = [1, 64], strides = [1, 1]} : vector<1x192xf32> to vector<1x64xf32>
    %153 = vector.extract_strided_slice %151 {offsets = [0, 64], sizes = [1, 64], strides = [1, 1]} : vector<1x192xf32> to vector<1x64xf32>
    %154 = vector.extract_strided_slice %151 {offsets = [0, 128], sizes = [1, 64], strides = [1, 1]} : vector<1x192xf32> to vector<1x64xf32>
    %155 = vector.extract_strided_slice %145 {offsets = [0, 192], sizes = [1, 64], strides = [1, 1]} : vector<1x256xf32> to vector<1x64xf32>
    %156 = math.tanh %155 : vector<1x64xf32>
    %157 = arith.mulf %153, %116 : vector<1x64xf32>
    %158 = arith.mulf %152, %156 : vector<1x64xf32>
    %159 = arith.addf %157, %158 : vector<1x64xf32>
    %160 = math.tanh %159 : vector<1x64xf32>
    %161 = arith.mulf %154, %160 : vector<1x64xf32>
    %162 = tpu.concatenate %139, %161 in 1 : vector<1x128xf32>, vector<1x64xf32> -> vector<1x192xf32>
    %c0_78 = arith.constant 0 : index
    %c0_79 = arith.constant 0 : index
    %163 = vector.load %arg13[%c0_78, %c0_79] : memref<192x768xf32, #tpu.memory_space<vmem>>, vector<192x768xf32>
    %cst_80 = arith.constant dense<0.000000e+00> : vector<1x768xf32>
    %164 = tpu.matmul %162, %163, %cst_80 {dimension_numbers = #tpu.dot_dimension_numbers<[1], [0], [0], [1], [0, 0, 1, 1], [], []>} : vector<1x192xf32>, vector<192x768xf32>, vector<1x768xf32> -> vector<1x768xf32>
    %c0_81 = arith.constant 0 : index
    %c1_82 = arith.constant 1 : index
    %c0_83 = arith.constant 0 : index
    %165 = vector.load %arg21[%c0_81, %c1_82, %c0_83] : memref<1x4x512xf32, #tpu.memory_space<vmem>>, vector<1x1x512xf32>
    %166 = vector.shape_cast %165 : vector<1x1x512xf32> to vector<1x512xf32>
    %167 = vector.extract_strided_slice %164 {offsets = [0, 0], sizes = [1, 512], strides = [1, 1]} : vector<1x768xf32> to vector<1x512xf32>
    %168 = arith.addf %166, %167 : vector<1x512xf32>
    %169 = vector.extract_strided_slice %168 {offsets = [0, 0], sizes = [1, 384], strides = [1, 1]} : vector<1x512xf32> to vector<1x384xf32>
    %170 = arith.negf %169 : vector<1x384xf32>
    %171 = math.exp %170 : vector<1x384xf32>
    %cst_84 = arith.constant 1.000000e+00 : f32
    %172 = vector.broadcast %cst_84 : f32 to vector<1x384xf32>
    %173 = arith.addf %172, %171 : vector<1x384xf32>
    %174 = arith.divf %172, %173 : vector<1x384xf32>
    %175 = vector.extract_strided_slice %174 {offsets = [0, 0], sizes = [1, 128], strides = [1, 1]} : vector<1x384xf32> to vector<1x128xf32>
    %176 = vector.extract_strided_slice %174 {offsets = [0, 128], sizes = [1, 128], strides = [1, 1]} : vector<1x384xf32> to vector<1x128xf32>
    %177 = vector.extract_strided_slice %174 {offsets = [0, 256], sizes = [1, 128], strides = [1, 1]} : vector<1x384xf32> to vector<1x128xf32>
    %178 = vector.extract_strided_slice %168 {offsets = [0, 384], sizes = [1, 128], strides = [1, 1]} : vector<1x512xf32> to vector<1x128xf32>
    %179 = math.tanh %178 : vector<1x128xf32>
    %180 = arith.mulf %176, %137 : vector<1x128xf32>
    %181 = arith.mulf %175, %179 : vector<1x128xf32>
    %182 = arith.addf %180, %181 : vector<1x128xf32>
    %183 = math.tanh %182 : vector<1x128xf32>
    %184 = arith.mulf %177, %183 : vector<1x128xf32>
    %c0_85 = arith.constant 0 : index
    %c0_86 = arith.constant 0 : index
    %185 = vector.load %arg14[%c0_85, %c0_86] : memref<128x256xf32, #tpu.memory_space<vmem>>, vector<128x256xf32>
    %cst_87 = arith.constant dense<0.000000e+00> : vector<1x256xf32>
    %186 = tpu.matmul %184, %185, %cst_87 {dimension_numbers = #tpu.dot_dimension_numbers<[1], [0], [0], [1], [0, 0, 1, 1], [], []>} : vector<1x128xf32>, vector<128x256xf32>, vector<1x256xf32> -> vector<1x256xf32>
    %c0_88 = arith.constant 0 : index
    %c0_89 = arith.constant 0 : index
    %187 = vector.load %arg15[%c0_88, %c0_89] : memref<1x256xf32, #tpu.memory_space<vmem>>, vector<1x256xf32>
    %188 = arith.addf %186, %187 : vector<1x256xf32>
    %189 = vector.extract_strided_slice %164 {offsets = [0, 512], sizes = [1, 256], strides = [1, 1]} : vector<1x768xf32> to vector<1x256xf32>
    %190 = arith.addf %188, %189 : vector<1x256xf32>
    %191 = vector.extract_strided_slice %190 {offsets = [0, 0], sizes = [1, 192], strides = [1, 1]} : vector<1x256xf32> to vector<1x192xf32>
    %192 = arith.negf %191 : vector<1x192xf32>
    %193 = math.exp %192 : vector<1x192xf32>
    %cst_90 = arith.constant 1.000000e+00 : f32
    %194 = vector.broadcast %cst_90 : f32 to vector<1x192xf32>
    %195 = arith.addf %194, %193 : vector<1x192xf32>
    %196 = arith.divf %194, %195 : vector<1x192xf32>
    %197 = vector.extract_strided_slice %196 {offsets = [0, 0], sizes = [1, 64], strides = [1, 1]} : vector<1x192xf32> to vector<1x64xf32>
    %198 = vector.extract_strided_slice %196 {offsets = [0, 64], sizes = [1, 64], strides = [1, 1]} : vector<1x192xf32> to vector<1x64xf32>
    %199 = vector.extract_strided_slice %196 {offsets = [0, 128], sizes = [1, 64], strides = [1, 1]} : vector<1x192xf32> to vector<1x64xf32>
    %200 = vector.extract_strided_slice %190 {offsets = [0, 192], sizes = [1, 64], strides = [1, 1]} : vector<1x256xf32> to vector<1x64xf32>
    %201 = math.tanh %200 : vector<1x64xf32>
    %202 = arith.mulf %198, %159 : vector<1x64xf32>
    %203 = arith.mulf %197, %201 : vector<1x64xf32>
    %204 = arith.addf %202, %203 : vector<1x64xf32>
    %205 = math.tanh %204 : vector<1x64xf32>
    %206 = arith.mulf %199, %205 : vector<1x64xf32>
    %207 = tpu.concatenate %184, %206 in 1 : vector<1x128xf32>, vector<1x64xf32> -> vector<1x192xf32>
    %c0_91 = arith.constant 0 : index
    %c0_92 = arith.constant 0 : index
    %208 = vector.load %arg13[%c0_91, %c0_92] : memref<192x768xf32, #tpu.memory_space<vmem>>, vector<192x768xf32>
    %cst_93 = arith.constant dense<0.000000e+00> : vector<1x768xf32>
    %209 = tpu.matmul %207, %208, %cst_93 {dimension_numbers = #tpu.dot_dimension_numbers<[1], [0], [0], [1], [0, 0, 1, 1], [], []>} : vector<1x192xf32>, vector<192x768xf32>, vector<1x768xf32> -> vector<1x768xf32>
    %c0_94 = arith.constant 0 : index
    %c2_95 = arith.constant 2 : index
    %c0_96 = arith.constant 0 : index
    %210 = vector.load %arg21[%c0_94, %c2_95, %c0_96] : memref<1x4x512xf32, #tpu.memory_space<vmem>>, vector<1x1x512xf32>
    %211 = vector.shape_cast %210 : vector<1x1x512xf32> to vector<1x512xf32>
    %212 = vector.extract_strided_slice %209 {offsets = [0, 0], sizes = [1, 512], strides = [1, 1]} : vector<1x768xf32> to vector<1x512xf32>
    %213 = arith.addf %211, %212 : vector<1x512xf32>
    %214 = vector.extract_strided_slice %213 {offsets = [0, 0], sizes = [1, 384], strides = [1, 1]} : vector<1x512xf32> to vector<1x384xf32>
    %215 = arith.negf %214 : vector<1x384xf32>
    %216 = math.exp %215 : vector<1x384xf32>
    %cst_97 = arith.constant 1.000000e+00 : f32
    %217 = vector.broadcast %cst_97 : f32 to vector<1x384xf32>
    %218 = arith.addf %217, %216 : vector<1x384xf32>
    %219 = arith.divf %217, %218 : vector<1x384xf32>
    %220 = vector.extract_strided_slice %219 {offsets = [0, 0], sizes = [1, 128], strides = [1, 1]} : vector<1x384xf32> to vector<1x128xf32>
    %221 = vector.extract_strided_slice %219 {offsets = [0, 128], sizes = [1, 128], strides = [1, 1]} : vector<1x384xf32> to vector<1x128xf32>
    %222 = vector.extract_strided_slice %219 {offsets = [0, 256], sizes = [1, 128], strides = [1, 1]} : vector<1x384xf32> to vector<1x128xf32>
    %223 = vector.extract_strided_slice %213 {offsets = [0, 384], sizes = [1, 128], strides = [1, 1]} : vector<1x512xf32> to vector<1x128xf32>
    %224 = math.tanh %223 : vector<1x128xf32>
    %225 = arith.mulf %221, %182 : vector<1x128xf32>
    %226 = arith.mulf %220, %224 : vector<1x128xf32>
    %227 = arith.addf %225, %226 : vector<1x128xf32>
    %228 = math.tanh %227 : vector<1x128xf32>
    %229 = arith.mulf %222, %228 : vector<1x128xf32>
    %c0_98 = arith.constant 0 : index
    %c0_99 = arith.constant 0 : index
    %230 = vector.load %arg14[%c0_98, %c0_99] : memref<128x256xf32, #tpu.memory_space<vmem>>, vector<128x256xf32>
    %cst_100 = arith.constant dense<0.000000e+00> : vector<1x256xf32>
    %231 = tpu.matmul %229, %230, %cst_100 {dimension_numbers = #tpu.dot_dimension_numbers<[1], [0], [0], [1], [0, 0, 1, 1], [], []>} : vector<1x128xf32>, vector<128x256xf32>, vector<1x256xf32> -> vector<1x256xf32>
    %c0_101 = arith.constant 0 : index
    %c0_102 = arith.constant 0 : index
    %232 = vector.load %arg15[%c0_101, %c0_102] : memref<1x256xf32, #tpu.memory_space<vmem>>, vector<1x256xf32>
    %233 = arith.addf %231, %232 : vector<1x256xf32>
    %234 = vector.extract_strided_slice %209 {offsets = [0, 512], sizes = [1, 256], strides = [1, 1]} : vector<1x768xf32> to vector<1x256xf32>
    %235 = arith.addf %233, %234 : vector<1x256xf32>
    %236 = vector.extract_strided_slice %235 {offsets = [0, 0], sizes = [1, 192], strides = [1, 1]} : vector<1x256xf32> to vector<1x192xf32>
    %237 = arith.negf %236 : vector<1x192xf32>
    %238 = math.exp %237 : vector<1x192xf32>
    %cst_103 = arith.constant 1.000000e+00 : f32
    %239 = vector.broadcast %cst_103 : f32 to vector<1x192xf32>
    %240 = arith.addf %239, %238 : vector<1x192xf32>
    %241 = arith.divf %239, %240 : vector<1x192xf32>
    %242 = vector.extract_strided_slice %241 {offsets = [0, 0], sizes = [1, 64], strides = [1, 1]} : vector<1x192xf32> to vector<1x64xf32>
    %243 = vector.extract_strided_slice %241 {offsets = [0, 64], sizes = [1, 64], strides = [1, 1]} : vector<1x192xf32> to vector<1x64xf32>
    %244 = vector.extract_strided_slice %241 {offsets = [0, 128], sizes = [1, 64], strides = [1, 1]} : vector<1x192xf32> to vector<1x64xf32>
    %245 = vector.extract_strided_slice %235 {offsets = [0, 192], sizes = [1, 64], strides = [1, 1]} : vector<1x256xf32> to vector<1x64xf32>
    %246 = math.tanh %245 : vector<1x64xf32>
    %247 = arith.mulf %243, %204 : vector<1x64xf32>
    %248 = arith.mulf %242, %246 : vector<1x64xf32>
    %249 = arith.addf %247, %248 : vector<1x64xf32>
    %250 = math.tanh %249 : vector<1x64xf32>
    %251 = arith.mulf %244, %250 : vector<1x64xf32>
    %252 = tpu.concatenate %229, %251 in 1 : vector<1x128xf32>, vector<1x64xf32> -> vector<1x192xf32>
    %c0_104 = arith.constant 0 : index
    %c0_105 = arith.constant 0 : index
    %253 = vector.load %arg13[%c0_104, %c0_105] : memref<192x768xf32, #tpu.memory_space<vmem>>, vector<192x768xf32>
    %cst_106 = arith.constant dense<0.000000e+00> : vector<1x768xf32>
    %254 = tpu.matmul %252, %253, %cst_106 {dimension_numbers = #tpu.dot_dimension_numbers<[1], [0], [0], [1], [0, 0, 1, 1], [], []>} : vector<1x192xf32>, vector<192x768xf32>, vector<1x768xf32> -> vector<1x768xf32>
    %c0_107 = arith.constant 0 : index
    %c3 = arith.constant 3 : index
    %c0_108 = arith.constant 0 : index
    %255 = vector.load %arg21[%c0_107, %c3, %c0_108] : memref<1x4x512xf32, #tpu.memory_space<vmem>>, vector<1x1x512xf32>
    %256 = vector.shape_cast %255 : vector<1x1x512xf32> to vector<1x512xf32>
    %257 = vector.extract_strided_slice %254 {offsets = [0, 0], sizes = [1, 512], strides = [1, 1]} : vector<1x768xf32> to vector<1x512xf32>
    %258 = arith.addf %256, %257 : vector<1x512xf32>
    %259 = vector.extract_strided_slice %258 {offsets = [0, 0], sizes = [1, 384], strides = [1, 1]} : vector<1x512xf32> to vector<1x384xf32>
    %260 = arith.negf %259 : vector<1x384xf32>
    %261 = math.exp %260 : vector<1x384xf32>
    %cst_109 = arith.constant 1.000000e+00 : f32
    %262 = vector.broadcast %cst_109 : f32 to vector<1x384xf32>
    %263 = arith.addf %262, %261 : vector<1x384xf32>
    %264 = arith.divf %262, %263 : vector<1x384xf32>
    %265 = vector.extract_strided_slice %264 {offsets = [0, 0], sizes = [1, 128], strides = [1, 1]} : vector<1x384xf32> to vector<1x128xf32>
    %266 = vector.extract_strided_slice %264 {offsets = [0, 128], sizes = [1, 128], strides = [1, 1]} : vector<1x384xf32> to vector<1x128xf32>
    %267 = vector.extract_strided_slice %264 {offsets = [0, 256], sizes = [1, 128], strides = [1, 1]} : vector<1x384xf32> to vector<1x128xf32>
    %268 = vector.extract_strided_slice %258 {offsets = [0, 384], sizes = [1, 128], strides = [1, 1]} : vector<1x512xf32> to vector<1x128xf32>
    %269 = math.tanh %268 : vector<1x128xf32>
    %270 = arith.mulf %266, %227 : vector<1x128xf32>
    %271 = arith.mulf %265, %269 : vector<1x128xf32>
    %272 = arith.addf %270, %271 : vector<1x128xf32>
    %273 = math.tanh %272 : vector<1x128xf32>
    %274 = arith.mulf %267, %273 : vector<1x128xf32>
    %c0_110 = arith.constant 0 : index
    %c0_111 = arith.constant 0 : index
    %275 = vector.load %arg14[%c0_110, %c0_111] : memref<128x256xf32, #tpu.memory_space<vmem>>, vector<128x256xf32>
    %cst_112 = arith.constant dense<0.000000e+00> : vector<1x256xf32>
    %276 = tpu.matmul %274, %275, %cst_112 {dimension_numbers = #tpu.dot_dimension_numbers<[1], [0], [0], [1], [0, 0, 1, 1], [], []>} : vector<1x128xf32>, vector<128x256xf32>, vector<1x256xf32> -> vector<1x256xf32>
    %c0_113 = arith.constant 0 : index
    %c0_114 = arith.constant 0 : index
    %277 = vector.load %arg15[%c0_113, %c0_114] : memref<1x256xf32, #tpu.memory_space<vmem>>, vector<1x256xf32>
    %278 = arith.addf %276, %277 : vector<1x256xf32>
    %279 = vector.extract_strided_slice %254 {offsets = [0, 512], sizes = [1, 256], strides = [1, 1]} : vector<1x768xf32> to vector<1x256xf32>
    %280 = arith.addf %278, %279 : vector<1x256xf32>
    %281 = vector.extract_strided_slice %280 {offsets = [0, 0], sizes = [1, 192], strides = [1, 1]} : vector<1x256xf32> to vector<1x192xf32>
    %282 = arith.negf %281 : vector<1x192xf32>
    %283 = math.exp %282 : vector<1x192xf32>
    %cst_115 = arith.constant 1.000000e+00 : f32
    %284 = vector.broadcast %cst_115 : f32 to vector<1x192xf32>
    %285 = arith.addf %284, %283 : vector<1x192xf32>
    %286 = arith.divf %284, %285 : vector<1x192xf32>
    %287 = vector.extract_strided_slice %286 {offsets = [0, 0], sizes = [1, 64], strides = [1, 1]} : vector<1x192xf32> to vector<1x64xf32>
    %288 = vector.extract_strided_slice %286 {offsets = [0, 64], sizes = [1, 64], strides = [1, 1]} : vector<1x192xf32> to vector<1x64xf32>
    %289 = vector.extract_strided_slice %286 {offsets = [0, 128], sizes = [1, 64], strides = [1, 1]} : vector<1x192xf32> to vector<1x64xf32>
    %290 = vector.extract_strided_slice %280 {offsets = [0, 192], sizes = [1, 64], strides = [1, 1]} : vector<1x256xf32> to vector<1x64xf32>
    %291 = math.tanh %290 : vector<1x64xf32>
    %292 = arith.mulf %288, %249 : vector<1x64xf32>
    %293 = arith.mulf %287, %291 : vector<1x64xf32>
    %294 = arith.addf %292, %293 : vector<1x64xf32>
    %295 = math.tanh %294 : vector<1x64xf32>
    %296 = arith.mulf %289, %295 : vector<1x64xf32>
    %c0_116 = arith.constant 0 : index
    %c0_117 = arith.constant 0 : index
    %297 = vector.load %arg16[%c0_116, %c0_117] : memref<64x64xf32, #tpu.memory_space<vmem>>, vector<64x64xf32>
    %cst_118 = arith.constant dense<0.000000e+00> : vector<1x64xf32>
    %298 = tpu.matmul %296, %297, %cst_118 {dimension_numbers = #tpu.dot_dimension_numbers<[1], [0], [0], [1], [0, 0, 1, 1], [], []>} : vector<1x64xf32>, vector<64x64xf32>, vector<1x64xf32> -> vector<1x64xf32>
    %c0_119 = arith.constant 0 : index
    %c0_120 = arith.constant 0 : index
    %299 = vector.load %arg17[%c0_119, %c0_120] : memref<1x64xf32, #tpu.memory_space<vmem>>, vector<1x64xf32>
    %300 = arith.addf %298, %299 : vector<1x64xf32>
    %cst_121 = arith.constant 0.000000e+00 : f32
    %301 = vector.broadcast %cst_121 : f32 to vector<1x64xf32>
    %302 = arith.maximumf %300, %301 : vector<1x64xf32>
    %c0_122 = arith.constant 0 : index
    %c0_123 = arith.constant 0 : index
    %303 = vector.load %arg18[%c0_122, %c0_123] : memref<64x128xf32, #tpu.memory_space<vmem>>, vector<64x128xf32>
    %cst_124 = arith.constant dense<0.000000e+00> : vector<1x128xf32>
    %304 = tpu.matmul %302, %303, %cst_124 {dimension_numbers = #tpu.dot_dimension_numbers<[1], [0], [0], [1], [0, 0, 1, 1], [], []>} : vector<1x64xf32>, vector<64x128xf32>, vector<1x128xf32> -> vector<1x128xf32>
    %c0_125 = arith.constant 0 : index
    %c0_126 = arith.constant 0 : index
    %305 = vector.load %arg19[%c0_125, %c0_126] : memref<1x128xf32, #tpu.memory_space<vmem>>, vector<1x128xf32>
    %306 = arith.addf %304, %305 : vector<1x128xf32>
    %307 = vector.shape_cast %306 : vector<1x128xf32> to vector<1x1x128xf32>
    %c0_127 = arith.constant 0 : index
    %c0_128 = arith.constant 0 : index
    %c0_129 = arith.constant 0 : index
    %308 = vector.load %arg20[%c0_127, %c0_128, %c0_129] : memref<1x1x128xf32, #tpu.memory_space<vmem>>, vector<1x1x128xf32>
    tpu.vector_store %arg20[%c0_127, %c0_128, %c0_129], %307 {strides = array<i32>} : memref<1x1x128xf32, #tpu.memory_space<vmem>>, vector<1x1x128xf32>,
    return
  }
  func.func @transform_0(%arg0: i32) -> (i32, i32, i32) {
    %c0_i32 = arith.constant 0 : i32
    %c0_i32_0 = arith.constant 0 : i32
    %c0_i32_1 = arith.constant 0 : i32
    return %arg0, %c0_i32, %c0_i32_0 : i32, i32, i32
  }
  func.func @transform_1(%arg0: i32) -> (i32, i32) {
    %c0_i32 = arith.constant 0 : i32
    %c0_i32_0 = arith.constant 0 : i32
    %c0_i32_1 = arith.constant 0 : i32
    return %c0_i32, %c0_i32_0 : i32, i32
  }
  func.func @transform_2(%arg0: i32) -> (i32, i32) {
    %c0_i32 = arith.constant 0 : i32
    %c0_i32_0 = arith.constant 0 : i32
    %c0_i32_1 = arith.constant 0 : i32
    return %c0_i32, %c0_i32_0 : i32, i32
  }
  func.func @transform_3(%arg0: i32) -> (i32, i32) {
    %c0_i32 = arith.constant 0 : i32
    %c0_i32_0 = arith.constant 0 : i32
    %c0_i32_1 = arith.constant 0 : i32
    return %c0_i32, %c0_i32_0 : i32, i32
  }
  func.func @transform_4(%arg0: i32) -> (i32, i32, i32) {
    %c0_i32 = arith.constant 0 : i32
    %c0_i32_0 = arith.constant 0 : i32
    %c0_i32_1 = arith.constant 0 : i32
    %c0_i32_2 = arith.constant 0 : i32
    return %c0_i32, %c0_i32_0, %c0_i32_1 : i32, i32, i32
  }
  func.func @transform_5(%arg0: i32) -> (i32, i32) {
    %c0_i32 = arith.constant 0 : i32
    %c0_i32_0 = arith.constant 0 : i32
    %c0_i32_1 = arith.constant 0 : i32
    return %c0_i32, %c0_i32_0 : i32, i32
  }
  func.func @transform_6(%arg0: i32) -> (i32, i32) {
    %c0_i32 = arith.constant 0 : i32
    %c0_i32_0 = arith.constant 0 : i32
    %c0_i32_1 = arith.constant 0 : i32
    return %c0_i32, %c0_i32_0 : i32, i32
  }
  func.func @transform_7(%arg0: i32) -> (i32, i32, i32) {
    %c0_i32 = arith.constant 0 : i32
    %c0_i32_0 = arith.constant 0 : i32
    %c0_i32_1 = arith.constant 0 : i32
    %c0_i32_2 = arith.constant 0 : i32
    return %c0_i32, %c0_i32_0, %c0_i32_1 : i32, i32, i32
  }
  func.func @transform_8(%arg0: i32) -> (i32, i32) {
    %c0_i32 = arith.constant 0 : i32
    %c0_i32_0 = arith.constant 0 : i32
    %c0_i32_1 = arith.constant 0 : i32
    return %c0_i32, %c0_i32_0 : i32, i32
  }
  func.func @transform_9(%arg0: i32) -> (i32, i32) {
    %c0_i32 = arith.constant 0 : i32
    %c0_i32_0 = arith.constant 0 : i32
    %c0_i32_1 = arith.constant 0 : i32
    return %c0_i32, %c0_i32_0 : i32, i32
  }
  func.func @transform_10(%arg0: i32) -> (i32, i32) {
    %c0_i32 = arith.constant 0 : i32
    %c0_i32_0 = arith.constant 0 : i32
    %c0_i32_1 = arith.constant 0 : i32
    return %c0_i32, %c0_i32_0 : i32, i32
  }
  func.func @transform_11(%arg0: i32) -> (i32, i32) {
    %c0_i32 = arith.constant 0 : i32
    %c0_i32_0 = arith.constant 0 : i32
    %c0_i32_1 = arith.constant 0 : i32
    return %c0_i32, %c0_i32_0 : i32, i32
  }
  func.func @transform_12(%arg0: i32) -> (i32, i32) {
    %c0_i32 = arith.constant 0 : i32
    %c0_i32_0 = arith.constant 0 : i32
    %c0_i32_1 = arith.constant 0 : i32
    return %c0_i32, %c0_i32_0 : i32, i32
  }
  func.func @transform_13(%arg0: i32) -> (i32, i32) {
    %c0_i32 = arith.constant 0 : i32
    %c0_i32_0 = arith.constant 0 : i32
    %c0_i32_1 = arith.constant 0 : i32
    return %c0_i32, %c0_i32_0 : i32, i32
  }
  func.func @transform_14(%arg0: i32) -> (i32, i32) {
    %c0_i32 = arith.constant 0 : i32
    %c0_i32_0 = arith.constant 0 : i32
    %c0_i32_1 = arith.constant 0 : i32
    return %c0_i32, %c0_i32_0 : i32, i32
  }
  func.func @transform_15(%arg0: i32) -> (i32, i32) {
    %c0_i32 = arith.constant 0 : i32
    %c0_i32_0 = arith.constant 0 : i32
    %c0_i32_1 = arith.constant 0 : i32
    return %c0_i32, %c0_i32_0 : i32, i32
  }
  func.func @transform_16(%arg0: i32) -> (i32, i32) {
    %c0_i32 = arith.constant 0 : i32
    %c0_i32_0 = arith.constant 0 : i32
    %c0_i32_1 = arith.constant 0 : i32
    return %c0_i32, %c0_i32_0 : i32, i32
  }
  func.func @transform_17(%arg0: i32) -> (i32, i32) {
    %c0_i32 = arith.constant 0 : i32
    %c0_i32_0 = arith.constant 0 : i32
    %c0_i32_1 = arith.constant 0 : i32
    return %c0_i32, %c0_i32_0 : i32, i32
  }
  func.func @transform_18(%arg0: i32) -> (i32, i32) {
    %c0_i32 = arith.constant 0 : i32
    %c0_i32_0 = arith.constant 0 : i32
    %c0_i32_1 = arith.constant 0 : i32
    return %c0_i32, %c0_i32_0 : i32, i32
  }
  func.func @transform_19(%arg0: i32) -> (i32, i32, i32) {
    %c0_i32 = arith.constant 0 : i32
    %c0_i32_0 = arith.constant 0 : i32
    %c0_i32_1 = arith.constant 0 : i32
    return %arg0, %c0_i32, %c0_i32_0 : i32, i32, i32
  }
}

</mosaic_0001>

<llo_original>
// kernel: forward_pallas.1
$region0: #{forward_pallas.1}
  #allocation0 [shape = 'u32[]', space=smem, size = 0x4, offset = 0x4, fixed_abs, tag = 'smem constant byte address 0x4 - core index']
  #allocation1 [shape = 'u32[72,128]{1,0:T(1,128)}', space=vmem, size = 0x9000, scoped, tag = 'internal scratch']
  #allocation2 [shape = 'f32[1,4,512]{2,1,0:T(4,128)}', space=vmem, size = 0x2000, scoped, tag = 'scratch operand']
  %s0 = inlined_call_operand.vmem [shape: f32[2,32,1], index: 0, kind: input, shape index: {}]
  %s1 = inlined_call_operand.vmem [shape: f32[3,64], index: 1, kind: input, shape index: {}]
  %s2 = inlined_call_operand.vmem [shape: f32[1,64], index: 2, kind: input, shape index: {}]
  %s3 = inlined_call_operand.vmem [shape: f32[1,64], index: 3, kind: input, shape index: {}]
  %s4 = inlined_call_operand.hbm [shape: f32[3,64,128], index: 4, kind: input, shape index: {}]
  %s5 = inlined_call_operand.hbm [shape: f32[1,128], index: 5, kind: input, shape index: {}]
  %s6 = inlined_call_operand.hbm [shape: f32[1,128], index: 6, kind: input, shape index: {}]
  %s7 = inlined_call_operand.hbm [shape: f32[3,128,256], index: 7, kind: input, shape index: {}]
  %s8 = inlined_call_operand.vmem [shape: f32[1,256], index: 8, kind: input, shape index: {}]
  %s9 = inlined_call_operand.vmem [shape: f32[1,256], index: 9, kind: input, shape index: {}]
  %s10 = inlined_call_operand.hbm [shape: f32[256,512], index: 10, kind: input, shape index: {}]
  %s11 = inlined_call_operand.vmem [shape: f32[1,512], index: 11, kind: input, shape index: {}]
  %s12 = inlined_call_operand.hbm [shape: f32[192,768], index: 12, kind: input, shape index: {}]
  %s13 = inlined_call_operand.hbm [shape: f32[128,256], index: 13, kind: input, shape index: {}]
  %s14 = inlined_call_operand.vmem [shape: f32[1,256], index: 14, kind: input, shape index: {}]
  %s15 = inlined_call_operand.vmem [shape: f32[64,64], index: 15, kind: input, shape index: {}]
  %s16 = inlined_call_operand.vmem [shape: f32[1,64], index: 16, kind: input, shape index: {}]
  %s17 = inlined_call_operand.hbm [shape: f32[64,128], index: 17, kind: input, shape index: {}]
  %s18 = inlined_call_operand.vmem [shape: f32[1,128], index: 18, kind: input, shape index: {}]
  %s19 = inlined_call_operand.hbm [shape: f32[2,1,128], index: 19, kind: output, shape index: {}]
  %s20 = sld [smem:[#allocation0]]
  $region141: #{forward_pallas.1} parent=0
    _
  %s22 = ssub.s32 1, %s20
  %s23 = scalar_select 0, %s22, %s20
  $region1: #{forward_pallas.1} parent=0
    #allocation3 [shape = 'u8[98304]{0}', space=vmem, size = 0x18000, scoped, tag = 'input window, operand 4, single buffered']
    #allocation4 [shape = 's32[2]{0}', space=sflag, size = 0x8, scoped, tag = 'scoped memory for forward_pallas.1']
    #allocation5 [shape = 's32[2]{0}', space=sflag, size = 0x8, scoped, tag = 'scoped memory for forward_pallas.1']
    #allocation6 [shape = 'u8[512]{0}', space=vmem, size = 0x400, scoped, tag = 'input window, operand 5, single buffered']
    #allocation7 [shape = 's32[1]{0}', space=sflag, size = 0x4, scoped, tag = 'scoped memory for forward_pallas.1']
    #allocation8 [shape = 'u8[512]{0}', space=vmem, size = 0x400, scoped, tag = 'input window, operand 6, single buffered']
    #allocation9 [shape = 'u8[393216]{0}', space=vmem, size = 0x60000, scoped, tag = 'input window, operand 7, single buffered']
    #allocation10 [shape = 's32[1]{0}', space=sflag, size = 0x4, scoped, tag = 'scoped memory for forward_pallas.1']
    #allocation11 [shape = 'u8[524288]{0}', space=vmem, size = 0x80000, scoped, tag = 'input window, operand 10, single buffered']
    #allocation12 [shape = 'u8[589824]{0}', space=vmem, size = 0x90000, scoped, tag = 'input window, operand 12, single buffered']
    #allocation13 [shape = 's32[1]{0}', space=sflag, size = 0x4, scoped, tag = 'scoped memory for forward_pallas.1']
    #allocation14 [shape = 'u8[131072]{0}', space=vmem, size = 0x20000, scoped, tag = 'input window, operand 13, single buffered']
    #allocation15 [shape = 'u8[32768]{0}', space=vmem, size = 0x8000, scoped, tag = 'input window, operand 17, single buffered']
    #allocation16 [shape = 's32[1]{0}', space=sflag, size = 0x4, scoped, tag = 'scoped memory for forward_pallas.1']
    #allocation17 [shape = 'u8[1024]{0}', space=vmem, size = 0x400, scoped, tag = 'output window, operand 0']
    %24 = vsyncpa [#allocation4], 0
    %25 = vsyncpa [#allocation7], 0
    %26 = vsyncpa [#allocation10], 0
    %27 = vsyncpa [#allocation13], 0
    %28 = vsyncpa [#allocation16], 0
    %29 = vsyncpa [#allocation5], 0
    %s30 = scalar_lea.sflag [#allocation5], 1
    %31 = vsyncpa %s30, 0
    loop: start=0, step=1, limit=4
    $region2: #{forward_pallas.1} parent=1 // loop_pre_header
      _
    $region3: #{forward_pallas.1} parent=1 // loop_header
      %s33 = sphi 0, %s37
      %p34 = scmp.ge.s32.totalorder %s33, 4
      %s43 = sphi 0, %s45
      %s46 = sphi 0, %s43
      %s47 = sphi 0, %s46
      %s63 = sphi 0, %s47
      %s67 = sphi 0, %s67
      %s69 = sphi 0, %s67
      %s70 = sphi 0, %s69
      %s84 = sphi 0, %s70
      %s88 = sphi 0, %s88
      %s90 = sphi 0, %s88
      %s91 = sphi 0, %s90
      %s105 = sphi 0, %s91
      %s109 = sphi 0, %s109
      %s111 = sphi 0, %s109
      %s112 = sphi 0, %s111
      %s126 = sphi 0, %s112
      %s130 = sphi 0, %s130
      %s132 = sphi 0, %s130
      %s133 = sphi 0, %s132
      %s147 = sphi 0, %s133
      %s151 = sphi 0, %s151
      %s153 = sphi 0, %s151
      %s154 = sphi 0, %s153
      %s168 = sphi 0, %s154
      %s172 = sphi 0, %s172
      %s174 = sphi 0, %s172
      %s175 = sphi 0, %s174
      %s189 = sphi 0, %s175
      %s193 = sphi 0, %s193
      %s195 = sphi 0, %s193
      %s196 = sphi 0, %s195
      %s210 = sphi 0, %s196
      %s214 = sphi 0, %s214
      %s216 = sphi 0, %s214
      %s217 = sphi 0, %s216
      %s231 = sphi 0, %s217
      %s235 = sphi 0, %s235
      %s237 = sphi 0, %s235
      %s238 = sphi 0, %s237
      %s252 = sphi 0, %s238
      %s256 = sphi 0, %s256
      %s258 = sphi 0, %s256
      %s259 = sphi 0, %s258
      %s273 = sphi 0, %s259
      %s277 = sphi 0, %s277
      %s279 = sphi 0, %s277
      %s280 = sphi 0, %s279
      %s294 = sphi 0, %s280
      %s298 = sphi 0, %s298
      %s300 = sphi 0, %s298
      %s301 = sphi 0, %s300
      %s315 = sphi 0, %s301
      %s319 = sphi 0, %s319
      %s321 = sphi 0, %s319
      %s322 = sphi 0, %s321
      %s336 = sphi 0, %s322
      %s340 = sphi 0, %s340
      %s342 = sphi 0, %s340
      %s343 = sphi 0, %s342
      %s357 = sphi 0, %s343
      %s361 = sphi 0, %s361
      %s363 = sphi 0, %s361
      %s364 = sphi 0, %s363
      %s378 = sphi 0, %s364
      %s382 = sphi 0, %s382
      %s384 = sphi 0, %s382
      %s385 = sphi 0, %s384
      %s399 = sphi 0, %s385
      %s403 = sphi 0, %s403
      %s405 = sphi 0, %s403
      %s406 = sphi 0, %s405
      %s420 = sphi 0, %s406
      %s424 = sphi 0, %s424
      %s426 = sphi 0, %s424
      %s427 = sphi 0, %s426
      %s441 = sphi 0, %s427
      %s447 = sphi 0, %s449
      %s450 = sphi 0, %s447
      %s451 = sphi 0, %s450
      %s467 = sphi 0, %s451
    $region4: #{forward_pallas.1} parent=1 // loop_header_branch
      %36 = sbr.rel (%p34) target = $region8
    $region5: #{forward_pallas.1} parent=1 // loop_body
      %s38 = ssub.s32 %s33, 1
      %s39 = ssub.s32 %s33, 2
      %s40 = sadd.s32 %s33, 1
      %s41 = ssub.s32 %s33, %s40
      %p42 = scmp.eq.s32.totalorder %s41, 0
      %s44 = sadd.s32 %s43, 1
      %s45 = scalar_select %p42, %s43, %s44
      %p48 = pneg %p42
      %p49 = scmp.eq.s32.totalorder %s33, 1
      %p50 = por %p48, %p49
      %p51 = scmp.ne.s32.totalorder %s43, %s46
      %p52 = scmp.eq.s32.totalorder %s33, 0
      %p53 = por %p51, %p52
      %p54 = scmp.ne.s32.totalorder %s43, %s46
      %p55 = scmp.eq.s32.totalorder %s38, 1
      %p56 = por %p54, %p55
      %p57 = scmp.ne.s32.totalorder %s46, %s47
      %p58 = scmp.eq.s32.totalorder %s38, 0
      %p59 = por %p57, %p58
      %p60 = scmp.ne.s32.totalorder %s46, %s47
      %p61 = scmp.eq.s32.totalorder %s39, 1
      %p62 = por %p60, %p61
      %p64 = scmp.ne.s32.totalorder %s47, %s63
      %p65 = scmp.eq.s32.totalorder %s39, 0
      %p66 = por %p64, %p65
      %s68 = sadd.s32 %s67, 1
      %p71 = scmp.eq.s32.totalorder %s33, 1
      %p72 = scmp.ne.s32.totalorder %s67, %s69
      %p73 = scmp.eq.s32.totalorder %s33, 0
      %p74 = por %p72, %p73
      %p75 = scmp.ne.s32.totalorder %s67, %s69
      %p76 = scmp.eq.s32.totalorder %s38, 1
      %p77 = por %p75, %p76
      %p78 = scmp.ne.s32.totalorder %s69, %s70
      %p79 = scmp.eq.s32.totalorder %s38, 0
      %p80 = por %p78, %p79
      %p81 = scmp.ne.s32.totalorder %s69, %s70
      %p82 = scmp.eq.s32.totalorder %s39, 1
      %p83 = por %p81, %p82
      %p85 = scmp.ne.s32.totalorder %s70, %s84
      %p86 = scmp.eq.s32.totalorder %s39, 0
      %p87 = por %p85, %p86
      %s89 = sadd.s32 %s88, 1
      %p92 = scmp.eq.s32.totalorder %s33, 1
      %p93 = scmp.ne.s32.totalorder %s88, %s90
      %p94 = scmp.eq.s32.totalorder %s33, 0
      %p95 = por %p93, %p94
      %p96 = scmp.ne.s32.totalorder %s88, %s90
      %p97 = scmp.eq.s32.totalorder %s38, 1
      %p98 = por %p96, %p97
      %p99 = scmp.ne.s32.totalorder %s90, %s91
      %p100 = scmp.eq.s32.totalorder %s38, 0
      %p101 = por %p99, %p100
      %p102 = scmp.ne.s32.totalorder %s90, %s91
      %p103 = scmp.eq.s32.totalorder %s39, 1
      %p104 = por %p102, %p103
      %p106 = scmp.ne.s32.totalorder %s91, %s105
      %p107 = scmp.eq.s32.totalorder %s39, 0
      %p108 = por %p106, %p107
      %s110 = sadd.s32 %s109, 1
      %p113 = scmp.eq.s32.totalorder %s33, 1
      %p114 = scmp.ne.s32.totalorder %s109, %s111
      %p115 = scmp.eq.s32.totalorder %s33, 0
      %p116 = por %p114, %p115
      %p117 = scmp.ne.s32.totalorder %s109, %s111
      %p118 = scmp.eq.s32.totalorder %s38, 1
      %p119 = por %p117, %p118
      %p120 = scmp.ne.s32.totalorder %s111, %s112
      %p121 = scmp.eq.s32.totalorder %s38, 0
      %p122 = por %p120, %p121
      %p123 = scmp.ne.s32.totalorder %s111, %s112
      %p124 = scmp.eq.s32.totalorder %s39, 1
      %p125 = por %p123, %p124
      %p127 = scmp.ne.s32.totalorder %s112, %s126
      %p128 = scmp.eq.s32.totalorder %s39, 0
      %p129 = por %p127, %p128
      %s131 = sadd.s32 %s130, 1
      %p134 = scmp.eq.s32.totalorder %s33, 1
      %p135 = scmp.ne.s32.totalorder %s130, %s132
      %p136 = scmp.eq.s32.totalorder %s33, 0
      %p137 = por %p135, %p136
      %p138 = scmp.ne.s32.totalorder %s130, %s132
      %p139 = scmp.eq.s32.totalorder %s38, 1
      %p140 = por %p138, %p139
      %p141 = scmp.ne.s32.totalorder %s132, %s133
      %p142 = scmp.eq.s32.totalorder %s38, 0
      %p143 = por %p141, %p142
      %p144 = scmp.ne.s32.totalorder %s132, %s133
      %p145 = scmp.eq.s32.totalorder %s39, 1
      %p146 = por %p144, %p145
      %p148 = scmp.ne.s32.totalorder %s133, %s147
      %p149 = scmp.eq.s32.totalorder %s39, 0
      %p150 = por %p148, %p149
      %s152 = sadd.s32 %s151, 1
      %p155 = scmp.eq.s32.totalorder %s33, 1
      %p156 = scmp.ne.s32.totalorder %s151, %s153
      %p157 = scmp.eq.s32.totalorder %s33, 0
      %p158 = por %p156, %p157
      %p159 = scmp.ne.s32.totalorder %s151, %s153
      %p160 = scmp.eq.s32.totalorder %s38, 1
      %p161 = por %p159, %p160
      %p162 = scmp.ne.s32.totalorder %s153, %s154
      %p163 = scmp.eq.s32.totalorder %s38, 0
      %p164 = por %p162, %p163
      %p165 = scmp.ne.s32.totalorder %s153, %s154
      %p166 = scmp.eq.s32.totalorder %s39, 1
      %p167 = por %p165, %p166
      %p169 = scmp.ne.s32.totalorder %s154, %s168
      %p170 = scmp.eq.s32.totalorder %s39, 0
      %p171 = por %p169, %p170
      %s173 = sadd.s32 %s172, 1
      %p176 = scmp.eq.s32.totalorder %s33, 1
      %p177 = scmp.ne.s32.totalorder %s172, %s174
      %p178 = scmp.eq.s32.totalorder %s33, 0
      %p179 = por %p177, %p178
      %p180 = scmp.ne.s32.totalorder %s172, %s174
      %p181 = scmp.eq.s32.totalorder %s38, 1
      %p182 = por %p180, %p181
      %p183 = scmp.ne.s32.totalorder %s174, %s175
      %p184 = scmp.eq.s32.totalorder %s38, 0
      %p185 = por %p183, %p184
      %p186 = scmp.ne.s32.totalorder %s174, %s175
      %p187 = scmp.eq.s32.totalorder %s39, 1
      %p188 = por %p186, %p187
      %p190 = scmp.ne.s32.totalorder %s175, %s189
      %p191 = scmp.eq.s32.totalorder %s39, 0
      %p192 = por %p190, %p191
      %s194 = sadd.s32 %s193, 1
      %p197 = scmp.eq.s32.totalorder %s33, 1
      %p198 = scmp.ne.s32.totalorder %s193, %s195
      %p199 = scmp.eq.s32.totalorder %s33, 0
      %p200 = por %p198, %p199
      %p201 = scmp.ne.s32.totalorder %s193, %s195
      %p202 = scmp.eq.s32.totalorder %s38, 1
      %p203 = por %p201, %p202
      %p204 = scmp.ne.s32.totalorder %s195, %s196
      %p205 = scmp.eq.s32.totalorder %s38, 0
      %p206 = por %p204, %p205
      %p207 = scmp.ne.s32.totalorder %s195, %s196
      %p208 = scmp.eq.s32.totalorder %s39, 1
      %p209 = por %p207, %p208
      %p211 = scmp.ne.s32.totalorder %s196, %s210
      %p212 = scmp.eq.s32.totalorder %s39, 0
      %p213 = por %p211, %p212
      %s215 = sadd.s32 %s214, 1
      %p218 = scmp.eq.s32.totalorder %s33, 1
      %p219 = scmp.ne.s32.totalorder %s214, %s216
      %p220 = scmp.eq.s32.totalorder %s33, 0
      %p221 = por %p219, %p220
      %p222 = scmp.ne.s32.totalorder %s214, %s216
      %p223 = scmp.eq.s32.totalorder %s38, 1
      %p224 = por %p222, %p223
      %p225 = scmp.ne.s32.totalorder %s216, %s217
      %p226 = scmp.eq.s32.totalorder %s38, 0
      %p227 = por %p225, %p226
      %p228 = scmp.ne.s32.totalorder %s216, %s217
      %p229 = scmp.eq.s32.totalorder %s39, 1
      %p230 = por %p228, %p229
      %p232 = scmp.ne.s32.totalorder %s217, %s231
      %p233 = scmp.eq.s32.totalorder %s39, 0
      %p234 = por %p232, %p233
      %s236 = sadd.s32 %s235, 1
      %p239 = scmp.eq.s32.totalorder %s33, 1
      %p240 = scmp.ne.s32.totalorder %s235, %s237
      %p241 = scmp.eq.s32.totalorder %s33, 0
      %p242 = por %p240, %p241
      %p243 = scmp.ne.s32.totalorder %s235, %s237
      %p244 = scmp.eq.s32.totalorder %s38, 1
      %p245 = por %p243, %p244
      %p246 = scmp.ne.s32.totalorder %s237, %s238
      %p247 = scmp.eq.s32.totalorder %s38, 0
      %p248 = por %p246, %p247
      %p249 = scmp.ne.s32.totalorder %s237, %s238
      %p250 = scmp.eq.s32.totalorder %s39, 1
      %p251 = por %p249, %p250
      %p253 = scmp.ne.s32.totalorder %s238, %s252
      %p254 = scmp.eq.s32.totalorder %s39, 0
      %p255 = por %p253, %p254
      %s257 = sadd.s32 %s256, 1
      %p260 = scmp.eq.s32.totalorder %s33, 1
      %p261 = scmp.ne.s32.totalorder %s256, %s258
      %p262 = scmp.eq.s32.totalorder %s33, 0
      %p263 = por %p261, %p262
      %p264 = scmp.ne.s32.totalorder %s256, %s258
      %p265 = scmp.eq.s32.totalorder %s38, 1
      %p266 = por %p264, %p265
      %p267 = scmp.ne.s32.totalorder %s258, %s259
      %p268 = scmp.eq.s32.totalorder %s38, 0
      %p269 = por %p267, %p268
      %p270 = scmp.ne.s32.totalorder %s258, %s259
      %p271 = scmp.eq.s32.totalorder %s39, 1
      %p272 = por %p270, %p271
      %p274 = scmp.ne.s32.totalorder %s259, %s273
      %p275 = scmp.eq.s32.totalorder %s39, 0
      %p276 = por %p274, %p275
      %s278 = sadd.s32 %s277, 1
      %p281 = scmp.eq.s32.totalorder %s33, 1
      %p282 = scmp.ne.s32.totalorder %s277, %s279
      %p283 = scmp.eq.s32.totalorder %s33, 0
      %p284 = por %p282, %p283
      %p285 = scmp.ne.s32.totalorder %s277, %s279
      %p286 = scmp.eq.s32.totalorder %s38, 1
      %p287 = por %p285, %p286
      %p288 = scmp.ne.s32.totalorder %s279, %s280
      %p289 = scmp.eq.s32.totalorder %s38, 0
      %p290 = por %p288, %p289
      %p291 = scmp.ne.s32.totalorder %s279, %s280
      %p292 = scmp.eq.s32.totalorder %s39, 1
      %p293 = por %p291, %p292
      %p295 = scmp.ne.s32.totalorder %s280, %s294
      %p296 = scmp.eq.s32.totalorder %s39, 0
      %p297 = por %p295, %p296
      %s299 = sadd.s32 %s298, 1
      %p302 = scmp.eq.s32.totalorder %s33, 1
      %p303 = scmp.ne.s32.totalorder %s298, %s300
      %p304 = scmp.eq.s32.totalorder %s33, 0
      %p305 = por %p303, %p304
      %p306 = scmp.ne.s32.totalorder %s298, %s300
      %p307 = scmp.eq.s32.totalorder %s38, 1
      %p308 = por %p306, %p307
      %p309 = scmp.ne.s32.totalorder %s300, %s301
      %p310 = scmp.eq.s32.totalorder %s38, 0
      %p311 = por %p309, %p310
      %p312 = scmp.ne.s32.totalorder %s300, %s301
      %p313 = scmp.eq.s32.totalorder %s39, 1
      %p314 = por %p312, %p313
      %p316 = scmp.ne.s32.totalorder %s301, %s315
      %p317 = scmp.eq.s32.totalorder %s39, 0
      %p318 = por %p316, %p317
      %s320 = sadd.s32 %s319, 1
      %p323 = scmp.eq.s32.totalorder %s33, 1
      %p324 = scmp.ne.s32.totalorder %s319, %s321
      %p325 = scmp.eq.s32.totalorder %s33, 0
      %p326 = por %p324, %p325
      %p327 = scmp.ne.s32.totalorder %s319, %s321
      %p328 = scmp.eq.s32.totalorder %s38, 1
      %p329 = por %p327, %p328
      %p330 = scmp.ne.s32.totalorder %s321, %s322
      %p331 = scmp.eq.s32.totalorder %s38, 0
      %p332 = por %p330, %p331
      %p333 = scmp.ne.s32.totalorder %s321, %s322
      %p334 = scmp.eq.s32.totalorder %s39, 1
      %p335 = por %p333, %p334
      %p337 = scmp.ne.s32.totalorder %s322, %s336
      %p338 = scmp.eq.s32.totalorder %s39, 0
      %p339 = por %p337, %p338
      %s341 = sadd.s32 %s340, 1
      %p344 = scmp.eq.s32.totalorder %s33, 1
      %p345 = scmp.ne.s32.totalorder %s340, %s342
      %p346 = scmp.eq.s32.totalorder %s33, 0
      %p347 = por %p345, %p346
      %p348 = scmp.ne.s32.totalorder %s340, %s342
      %p349 = scmp.eq.s32.totalorder %s38, 1
      %p350 = por %p348, %p349
      %p351 = scmp.ne.s32.totalorder %s342, %s343
      %p352 = scmp.eq.s32.totalorder %s38, 0
      %p353 = por %p351, %p352
      %p354 = scmp.ne.s32.totalorder %s342, %s343
      %p355 = scmp.eq.s32.totalorder %s39, 1
      %p356 = por %p354, %p355
      %p358 = scmp.ne.s32.totalorder %s343, %s357
      %p359 = scmp.eq.s32.totalorder %s39, 0
      %p360 = por %p358, %p359
      %s362 = sadd.s32 %s361, 1
      %p365 = scmp.eq.s32.totalorder %s33, 1
      %p366 = scmp.ne.s32.totalorder %s361, %s363
      %p367 = scmp.eq.s32.totalorder %s33, 0
      %p368 = por %p366, %p367
      %p369 = scmp.ne.s32.totalorder %s361, %s363
      %p370 = scmp.eq.s32.totalorder %s38, 1
      %p371 = por %p369, %p370
      %p372 = scmp.ne.s32.totalorder %s363, %s364
      %p373 = scmp.eq.s32.totalorder %s38, 0
      %p374 = por %p372, %p373
      %p375 = scmp.ne.s32.totalorder %s363, %s364
      %p376 = scmp.eq.s32.totalorder %s39, 1
      %p377 = por %p375, %p376
      %p379 = scmp.ne.s32.totalorder %s364, %s378
      %p380 = scmp.eq.s32.totalorder %s39, 0
      %p381 = por %p379, %p380
      %s383 = sadd.s32 %s382, 1
      %p386 = scmp.eq.s32.totalorder %s33, 1
      %p387 = scmp.ne.s32.totalorder %s382, %s384
      %p388 = scmp.eq.s32.totalorder %s33, 0
      %p389 = por %p387, %p388
      %p390 = scmp.ne.s32.totalorder %s382, %s384
      %p391 = scmp.eq.s32.totalorder %s38, 1
      %p392 = por %p390, %p391
      %p393 = scmp.ne.s32.totalorder %s384, %s385
      %p394 = scmp.eq.s32.totalorder %s38, 0
      %p395 = por %p393, %p394
      %p396 = scmp.ne.s32.totalorder %s384, %s385
      %p397 = scmp.eq.s32.totalorder %s39, 1
      %p398 = por %p396, %p397
      %p400 = scmp.ne.s32.totalorder %s385, %s399
      %p401 = scmp.eq.s32.totalorder %s39, 0
      %p402 = por %p400, %p401
      %s404 = sadd.s32 %s403, 1
      %p407 = scmp.eq.s32.totalorder %s33, 1
      %p408 = scmp.ne.s32.totalorder %s403, %s405
      %p409 = scmp.eq.s32.totalorder %s33, 0
      %p410 = por %p408, %p409
      %p411 = scmp.ne.s32.totalorder %s403, %s405
      %p412 = scmp.eq.s32.totalorder %s38, 1
      %p413 = por %p411, %p412
      %p414 = scmp.ne.s32.totalorder %s405, %s406
      %p415 = scmp.eq.s32.totalorder %s38, 0
      %p416 = por %p414, %p415
      %p417 = scmp.ne.s32.totalorder %s405, %s406
      %p418 = scmp.eq.s32.totalorder %s39, 1
      %p419 = por %p417, %p418
      %p421 = scmp.ne.s32.totalorder %s406, %s420
      %p422 = scmp.eq.s32.totalorder %s39, 0
      %p423 = por %p421, %p422
      %s425 = sadd.s32 %s424, 1
      %p428 = scmp.eq.s32.totalorder %s33, 1
      %p429 = scmp.ne.s32.totalorder %s424, %s426
      %p430 = scmp.eq.s32.totalorder %s33, 0
      %p431 = por %p429, %p430
      %p432 = scmp.ne.s32.totalorder %s424, %s426
      %p433 = scmp.eq.s32.totalorder %s38, 1
      %p434 = por %p432, %p433
      %p435 = scmp.ne.s32.totalorder %s426, %s427
      %p436 = scmp.eq.s32.totalorder %s38, 0
      %p437 = por %p435, %p436
      %p438 = scmp.ne.s32.totalorder %s426, %s427
      %p439 = scmp.eq.s32.totalorder %s39, 1
      %p440 = por %p438, %p439
      %p442 = scmp.ne.s32.totalorder %s427, %s441
      %p443 = scmp.eq.s32.totalorder %s39, 0
      %p444 = por %p442, %p443
      %s445 = ssub.s32 %s33, %s40
      %p446 = scmp.eq.s32.totalorder %s445, 0
      %s448 = sadd.s32 %s447, 1
      %s449 = scalar_select %p446, %s447, %s448
      %p452 = pneg %p446
      %p453 = scmp.eq.s32.totalorder %s33, 1
      %p454 = por %p452, %p453
      %p455 = scmp.ne.s32.totalorder %s447, %s450
      %p456 = scmp.eq.s32.totalorder %s33, 0
      %p457 = por %p455, %p456
      %p458 = scmp.ne.s32.totalorder %s447, %s450
      %p459 = scmp.eq.s32.totalorder %s38, 1
      %p460 = por %p458, %p459
      %p461 = scmp.ne.s32.totalorder %s450, %s451
      %p462 = scmp.eq.s32.totalorder %s38, 0
      %p463 = por %p461, %p462
      %p464 = scmp.ne.s32.totalorder %s450, %s451
      %p465 = scmp.eq.s32.totalorder %s39, 1
      %p466 = por %p464, %p465
      %p468 = scmp.ne.s32.totalorder %s451, %s467
      %p469 = scmp.eq.s32.totalorder %s39, 0
      %p470 = por %p468, %p469
      %p471 = scmp.le.s32.totalorder 1, %s33
      %p472 = scmp.lt.s32.totalorder %s33, 3
      %p473 = pnand %p471, %p472
      %p474 = pneg %p473
      // Predicated region
      $region9: #{forward_pallas.1} parent=5 // pred_check
        _
      $region10: #{forward_pallas.1} parent=5 // pred_check_branch
        %476 = sbr.rel (%p473) target = $region12
      $region11: #{forward_pallas.1} parent=5 // pred_region
        %s477 = ssub.s32 %s33, 1
        // Predicated region
        $region13: #{forward_pallas.1} parent=11 // pred_check
          %p478 = pneg %p80
        $region14: #{forward_pallas.1} parent=11 // pred_check_branch
          %480 = sbr.rel (%p478) target = $region16
        $region15: #{forward_pallas.1} parent=11 // pred_region
          _
        $region16: #{forward_pallas.1} parent=11 // pred_fallthru
          _
        // Predicated region
        $region17: #{forward_pallas.1} parent=11 // pred_check
          %p481 = pneg %p101
        $region18: #{forward_pallas.1} parent=11 // pred_check_branch
          %483 = sbr.rel (%p481) target = $region20
        $region19: #{forward_pallas.1} parent=11 // pred_region
          _
        $region20: #{forward_pallas.1} parent=11 // pred_fallthru
          _
        // Predicated region
        $region21: #{forward_pallas.1} parent=11 // pred_check
          %p484 = pneg %p122
        $region22: #{forward_pallas.1} parent=11 // pred_check_branch
          %486 = sbr.rel (%p484) target = $region24
        $region23: #{forward_pallas.1} parent=11 // pred_region
          _
        $region24: #{forward_pallas.1} parent=11 // pred_fallthru
          _
        // Predicated region
        $region25: #{forward_pallas.1} parent=11 // pred_check
          %p487 = pneg %p143
        $region26: #{forward_pallas.1} parent=11 // pred_check_branch
          %489 = sbr.rel (%p487) target = $region28
        $region27: #{forward_pallas.1} parent=11 // pred_region
          %491 = vsyncadd [#allocation4], 0
          %s492 = sshll.u32 %s4, 4
          %s493 = int_to_ptr.hbm [resolvable:$true] %s492
          %s494 = sshll.u32 [#allocation3], 4
          %s495 = int_to_ptr.vmem [resolvable:$true] %s494
          %500 = dma.hbm_to_vmem [thread:$0]  %s493, 3072, %s495, [#allocation4], 128, 128, 8
        $region28: #{forward_pallas.1} parent=11 // pred_fallthru
          _
        // Predicated region
        $region29: #{forward_pallas.1} parent=11 // pred_check
          %p501 = pneg %p164
        $region30: #{forward_pallas.1} parent=11 // pred_check_branch
          %503 = sbr.rel (%p501) target = $region32
        $region31: #{forward_pallas.1} parent=11 // pred_region
          %505 = vsyncadd [#allocation7], 0
          %s507 = sshll.u32 %s5, 4
          %s508 = int_to_ptr.hbm [resolvable:$true] %s507
          %s509 = sshll.u32 [#allocation6], 4
          %s510 = int_to_ptr.vmem [resolvable:$true] %s509
          %512 = dma.hbm_to_vmem [thread:$0]  %s508, 16, %s510, [#allocation7]
        $region32: #{forward_pallas.1} parent=11 // pred_fallthru
          _
        // Predicated region
        $region33: #{forward_pallas.1} parent=11 // pred_check
          %p513 = pneg %p185
        $region34: #{forward_pallas.1} parent=11 // pred_check_branch
          %515 = sbr.rel (%p513) target = $region36
        $region35: #{forward_pallas.1} parent=11 // pred_region
          %517 = vsyncadd [#allocation7], 0
          %s519 = sshll.u32 %s6, 4
          %s520 = int_to_ptr.hbm [resolvable:$true] %s519
          %s521 = sshll.u32 [#allocation8], 4
          %s522 = int_to_ptr.vmem [resolvable:$true] %s521
          %524 = dma.hbm_to_vmem [thread:$0]  %s520, 16, %s522, [#allocation7]
        $region36: #{forward_pallas.1} parent=11 // pred_fallthru
          _
        // Predicated region
        $region37: #{forward_pallas.1} parent=11 // pred_check
          %p525 = pneg %p206
        $region38: #{forward_pallas.1} parent=11 // pred_check_branch
          %527 = sbr.rel (%p525) target = $region40
        $region39: #{forward_pallas.1} parent=11 // pred_region
          %529 = vsyncadd [#allocation10], 0
          %s530 = sshll.u32 %s7, 4
          %s531 = int_to_ptr.hbm [resolvable:$true] %s530
          %s532 = sshll.u32 [#allocation9], 4
          %s533 = int_to_ptr.vmem [resolvable:$true] %s532
          %538 = dma.hbm_to_vmem [thread:$0]  %s531, 12288, %s533, [#allocation10], 256, 256, 16
        $region40: #{forward_pallas.1} parent=11 // pred_fallthru
          _
        // Predicated region
        $region41: #{forward_pallas.1} parent=11 // pred_check
          %p539 = pneg %p227
        $region42: #{forward_pallas.1} parent=11 // pred_check_branch
          %541 = sbr.rel (%p539) target = $region44
        $region43: #{forward_pallas.1} parent=11 // pred_region
          _
        $region44: #{forward_pallas.1} parent=11 // pred_fallthru
          _
        // Predicated region
        $region45: #{forward_pallas.1} parent=11 // pred_check
          %p542 = pneg %p248
        $region46: #{forward_pallas.1} parent=11 // pred_check_branch
          %544 = sbr.rel (%p542) target = $region48
        $region47: #{forward_pallas.1} parent=11 // pred_region
          _
        $region48: #{forward_pallas.1} parent=11 // pred_fallthru
          _
        // Predicated region
        $region49: #{forward_pallas.1} parent=11 // pred_check
          %p545 = pneg %p269
        $region50: #{forward_pallas.1} parent=11 // pred_check_branch
          %547 = sbr.rel (%p545) target = $region52
        $region51: #{forward_pallas.1} parent=11 // pred_region
          %549 = vsyncadd [#allocation10], 0
          %s550 = sshll.u32 %s10, 4
          %s551 = int_to_ptr.hbm [resolvable:$true] %s550
          %s552 = sshll.u32 [#allocation11], 4
          %s553 = int_to_ptr.vmem [resolvable:$true] %s552
          %558 = dma.hbm_to_vmem [thread:$0]  %s551, 16384, %s553, [#allocation10], 512, 512, 32
        $region52: #{forward_pallas.1} parent=11 // pred_fallthru
          _
        // Predicated region
        $region53: #{forward_pallas.1} parent=11 // pred_check
          %p559 = pneg %p290
        $region54: #{forward_pallas.1} parent=11 // pred_check_branch
          %561 = sbr.rel (%p559) target = $region56
        $region55: #{forward_pallas.1} parent=11 // pred_region
          _
        $region56: #{forward_pallas.1} parent=11 // pred_fallthru
          _
        // Predicated region
        $region57: #{forward_pallas.1} parent=11 // pred_check
          %p562 = pneg %p311
        $region58: #{forward_pallas.1} parent=11 // pred_check_branch
          %564 = sbr.rel (%p562) target = $region60
        $region59: #{forward_pallas.1} parent=11 // pred_region
          %566 = vsyncadd [#allocation13], 0
          %s567 = sshll.u32 %s12, 4
          %s568 = int_to_ptr.hbm [resolvable:$true] %s567
          %s569 = sshll.u32 [#allocation12], 4
          %s570 = int_to_ptr.vmem [resolvable:$true] %s569
          %575 = dma.hbm_to_vmem [thread:$0]  %s568, 18432, %s570, [#allocation13], 768, 768, 48
        $region60: #{forward_pallas.1} parent=11 // pred_fallthru
          _
        // Predicated region
        $region61: #{forward_pallas.1} parent=11 // pred_check
          %p576 = pneg %p332
        $region62: #{forward_pallas.1} parent=11 // pred_check_branch
          %578 = sbr.rel (%p576) target = $region64
        $region63: #{forward_pallas.1} parent=11 // pred_region
          %580 = vsyncadd [#allocation13], 0
          %s581 = sshll.u32 %s13, 4
          %s582 = int_to_ptr.hbm [resolvable:$true] %s581
          %s583 = sshll.u32 [#allocation14], 4
          %s584 = int_to_ptr.vmem [resolvable:$true] %s583
          %589 = dma.hbm_to_vmem [thread:$0]  %s582, 4096, %s584, [#allocation13], 256, 256, 16
        $region64: #{forward_pallas.1} parent=11 // pred_fallthru
          _
        // Predicated region
        $region65: #{forward_pallas.1} parent=11 // pred_check
          %p590 = pneg %p353
        $region66: #{forward_pallas.1} parent=11 // pred_check_branch
          %592 = sbr.rel (%p590) target = $region68
        $region67: #{forward_pallas.1} parent=11 // pred_region
          _
        $region68: #{forward_pallas.1} parent=11 // pred_fallthru
          _
        // Predicated region
        $region69: #{forward_pallas.1} parent=11 // pred_check
          %p593 = pneg %p374
        $region70: #{forward_pallas.1} parent=11 // pred_check_branch
          %595 = sbr.rel (%p593) target = $region72
        $region71: #{forward_pallas.1} parent=11 // pred_region
          _
        $region72: #{forward_pallas.1} parent=11 // pred_fallthru
          _
        // Predicated region
        $region73: #{forward_pallas.1} parent=11 // pred_check
          %p596 = pneg %p395
        $region74: #{forward_pallas.1} parent=11 // pred_check_branch
          %598 = sbr.rel (%p596) target = $region76
        $region75: #{forward_pallas.1} parent=11 // pred_region
          _
        $region76: #{forward_pallas.1} parent=11 // pred_fallthru
          _
        // Predicated region
        $region77: #{forward_pallas.1} parent=11 // pred_check
          %p599 = pneg %p416
        $region78: #{forward_pallas.1} parent=11 // pred_check_branch
          %601 = sbr.rel (%p599) target = $region80
        $region79: #{forward_pallas.1} parent=11 // pred_region
          %603 = vsyncadd [#allocation16], 0
          %s604 = sshll.u32 %s17, 4
          %s605 = int_to_ptr.hbm [resolvable:$true] %s604
          %s606 = sshll.u32 [#allocation15], 4
          %s607 = int_to_ptr.vmem [resolvable:$true] %s606
          %612 = dma.hbm_to_vmem [thread:$0]  %s605, 1024, %s607, [#allocation16], 128, 128, 8
        $region80: #{forward_pallas.1} parent=11 // pred_fallthru
          _
        // Predicated region
        $region81: #{forward_pallas.1} parent=11 // pred_check
          %p613 = pneg %p437
        $region82: #{forward_pallas.1} parent=11 // pred_check_branch
          %615 = sbr.rel (%p613) target = $region84
        $region83: #{forward_pallas.1} parent=11 // pred_region
          _
        $region84: #{forward_pallas.1} parent=11 // pred_fallthru
          _
      $region12: #{forward_pallas.1} parent=5 // pred_fallthru
        _
      %p616 = scmp.lt.s32.totalorder %s33, 2
      // Predicated region
      $region85: #{forward_pallas.1} parent=5 // pred_check
        %p617 = pneg %p616
      $region86: #{forward_pallas.1} parent=5 // pred_check_branch
        %619 = sbr.rel (%p617) target = $region88
      $region87: #{forward_pallas.1} parent=5 // pred_region
        // Predicated region
        $region89: #{forward_pallas.1} parent=87 // pred_check
          %p620 = pneg %p53
        $region90: #{forward_pallas.1} parent=87 // pred_check_branch
          %622 = sbr.rel (%p620) target = $region92
        $region91: #{forward_pallas.1} parent=87 // pred_region
          %p623 = scmp.lt.s32.totalorder %s33, 1
          %s624 = scalar_select %p623, %s33, 1
          %s625 = smul.addr %s624, 4
          %s626 = smul.addr %s625, 8
          %s627 = scalar_lea.vmem %s0, %s626
        $region92: #{forward_pallas.1} parent=87 // pred_fallthru
          _
      $region88: #{forward_pallas.1} parent=5 // pred_fallthru
        _
      %p628 = scmp.le.s32.totalorder 1, %s33
      %p629 = scmp.lt.s32.totalorder %s33, 3
      %p630 = pnand %p628, %p629
      %p631 = pneg %p630
      // Predicated region
      $region93: #{forward_pallas.1} parent=5 // pred_check
        _
      $region94: #{forward_pallas.1} parent=5 // pred_check_branch
        %633 = sbr.rel (%p630) target = $region96
      $region95: #{forward_pallas.1} parent=5 // pred_region
        %s634 = ssub.s32 %s33, 1
        // Predicated region
        $region97: #{forward_pallas.1} parent=95 // pred_check
          %p635 = pneg %p143
        $region98: #{forward_pallas.1} parent=95 // pred_check_branch
          %637 = sbr.rel (%p635) target = $region100
        $region99: #{forward_pallas.1} parent=95 // pred_region
          %639 = dma.done [#allocation4], 3072
        $region100: #{forward_pallas.1} parent=95 // pred_fallthru
          _
        // Predicated region
        $region101: #{forward_pallas.1} parent=95 // pred_check
          %p640 = pneg %p164
        $region102: #{forward_pallas.1} parent=95 // pred_check_branch
          %642 = sbr.rel (%p640) target = $region104
        $region103: #{forward_pallas.1} parent=95 // pred_region
          %644 = dma.done [#allocation7], 16
        $region104: #{forward_pallas.1} parent=95 // pred_fallthru
          _
        // Predicated region
        $region105: #{forward_pallas.1} parent=95 // pred_check
          %p645 = pneg %p185
        $region106: #{forward_pallas.1} parent=95 // pred_check_branch
          %647 = sbr.rel (%p645) target = $region108
        $region107: #{forward_pallas.1} parent=95 // pred_region
          %649 = dma.done [#allocation7], 16
        $region108: #{forward_pallas.1} parent=95 // pred_fallthru
          _
        // Predicated region
        $region109: #{forward_pallas.1} parent=95 // pred_check
          %p650 = pneg %p206
        $region110: #{forward_pallas.1} parent=95 // pred_check_branch
          %652 = sbr.rel (%p650) target = $region112
        $region111: #{forward_pallas.1} parent=95 // pred_region
          %654 = dma.done [#allocation10], 12288
        $region112: #{forward_pallas.1} parent=95 // pred_fallthru
          _
        // Predicated region
        $region113: #{forward_pallas.1} parent=95 // pred_check
          %p655 = pneg %p269
        $region114: #{forward_pallas.1} parent=95 // pred_check_branch
          %657 = sbr.rel (%p655) target = $region116
        $region115: #{forward_pallas.1} parent=95 // pred_region
          %659 = dma.done [#allocation10], 16384
        $region116: #{forward_pallas.1} parent=95 // pred_fallthru
          _
        // Predicated region
        $region117: #{forward_pallas.1} parent=95 // pred_check
          %p660 = pneg %p311
        $region118: #{forward_pallas.1} parent=95 // pred_check_branch
          %662 = sbr.rel (%p660) target = $region120
        $region119: #{forward_pallas.1} parent=95 // pred_region
          %664 = dma.done [#allocation13], 18432
        $region120: #{forward_pallas.1} parent=95 // pred_fallthru
          _
        // Predicated region
        $region121: #{forward_pallas.1} parent=95 // pred_check
          %p665 = pneg %p332
        $region122: #{forward_pallas.1} parent=95 // pred_check_branch
          %667 = sbr.rel (%p665) target = $region124
        $region123: #{forward_pallas.1} parent=95 // pred_region
          %669 = dma.done [#allocation13], 4096
        $region124: #{forward_pallas.1} parent=95 // pred_fallthru
          _
        // Predicated region
        $region125: #{forward_pallas.1} parent=95 // pred_check
          %p670 = pneg %p416
        $region126: #{forward_pallas.1} parent=95 // pred_check_branch
          %672 = sbr.rel (%p670) target = $region128
        $region127: #{forward_pallas.1} parent=95 // pred_region
          %674 = dma.done [#allocation16], 1024
        $region128: #{forward_pallas.1} parent=95 // pred_fallthru
          _
        %p675 = scmp.lt.s32.totalorder %s38, 1
        %s676 = scalar_select %p675, %s38, 1
        %s677 = smul.addr %s676, 4
        %s678 = smul.addr %s677, 8
        %s679 = scalar_lea.vmem %s0, %s678
        %p680 = pneg %p59
        %p681 = pneg %p56
        %p682 = pneg %p80
        %p683 = pneg %p77
        %p684 = pneg %p101
        %p685 = pneg %p98
        %p686 = pneg %p122
        %p687 = pneg %p119
        %p688 = pneg %p143
        %p689 = pneg %p140
        %p690 = pneg %p164
        %p691 = pneg %p161
        %p692 = pneg %p185
        %p693 = pneg %p182
        %p694 = pneg %p206
        %p695 = pneg %p203
        %p696 = pneg %p227
        %p697 = pneg %p224
        %p698 = pneg %p248
        %p699 = pneg %p245
        %p700 = pneg %p269
        %p701 = pneg %p266
        %p702 = pneg %p290
        %p703 = pneg %p287
        %p704 = pneg %p311
        %p705 = pneg %p308
        %p706 = pneg %p332
        %p707 = pneg %p329
        %p708 = pneg %p353
        %p709 = pneg %p350
        %p710 = pneg %p374
        %p711 = pneg %p371
        %p712 = pneg %p395
        %p713 = pneg %p392
        %p714 = pneg %p416
        %p715 = pneg %p413
        %p716 = pneg %p437
        %p717 = pneg %p434
        %p718 = pneg %p463
        %p719 = pneg %p460
        %s720 = sand.u32 %s450, 1
        %s721 = scalar_lea.sflag [#allocation5], %s720
        %s722 = sand.u32 %s450, 1
        %s723 = scalar_lea.vmem [#allocation17], %s722
        %p724 = scmp.lt.s32.totalorder %s38, 1
        %s725 = scalar_select %p724, %s38, 1
        %s726 = smul.addr %s725, 4
        %s727 = smul.addr %s726, 8
        %s728 = scalar_lea.vmem %s0, %s727
        %v729 = vld [vmem:[%s728] sm:$0xff]
        %v730 = vld [vmem:[%s728 + $0x8] sm:$0xff]
        %v731 = vld [vmem:[%s728 + $0x10] sm:$0xff]
        %v732 = vld [vmem:[%s728 + $0x18] sm:$0xff]
        %vm737 = vcmask 1040384
        %v738 = vrot.slane %v729, 7
        %v739 = vrot.slane %v730, 7
        %v740 = vsel %vm737, %v738, %v739
        %v741 = vrot.slane %v731, 7
        %v742 = vsel %vm737, %v739, %v741
        %v743 = vrot.slane %v732, 7
        %v744 = vsel %vm737, %v741, %v743
        %v746 = vsel %vm737, 0.0, %v738
        %v747 = vld [vmem:[%s1] sm:$0x1]
        %749 = vset.pattern.permute.xlu0 0
        %750 = vperm.xlu0 %749, %v746
        %v751 = vpop.permute.xlu0 %750
        %753 = vset.pattern.permute.xlu0 0
        %754 = vperm.xlu0 %753, %v740
        %v755 = vpop.permute.xlu0 %754
        %757 = vset.pattern.permute.xlu0 0
        %758 = vperm.xlu0 %757, %v742
        %v759 = vpop.permute.xlu0 %758
        %761 = vset.pattern.permute.xlu0 0
        %762 = vperm.xlu0 %761, %v744
        %v763 = vpop.permute.xlu0 %762
        %v765 = vperm.slane %v747, 0
        %v766 = vmul.f32 %v751, %v765
        %v767 = vmul.f32 %v755, %v765
        %v768 = vmul.f32 %v759, %v765
        %v769 = vmul.f32 %v763, %v765
        %v770 = vld [vmem:[%s1 + $0x1] sm:$0x1]
        %771 = vset.pattern.permute.xlu0 0
        %772 = vperm.xlu0 %771, %v729
        %v773 = vpop.permute.xlu0 %772
        %775 = vset.pattern.permute.xlu0 0
        %776 = vperm.xlu0 %775, %v730
        %v777 = vpop.permute.xlu0 %776
        %779 = vset.pattern.permute.xlu0 0
        %780 = vperm.xlu0 %779, %v731
        %v781 = vpop.permute.xlu0 %780
        %783 = vset.pattern.permute.xlu0 0
        %784 = vperm.xlu0 %783, %v732
        %v785 = vpop.permute.xlu0 %784
        %v787 = vperm.slane %v770, 0
        %v788 = vmul.f32 %v773, %v787
        %v789 = vmul.f32 %v777, %v787
        %v790 = vmul.f32 %v781, %v787
        %v791 = vmul.f32 %v785, %v787
        %v792 = vadd.f32 %v766, %v788
        %v793 = vadd.f32 %v767, %v789
        %v794 = vadd.f32 %v768, %v790
        %v795 = vadd.f32 %v769, %v791
        %vm796 = vcmask 1046528
        %v797 = vrot.slane %v729, 1
        %v798 = vrot.slane %v730, 1
        %v799 = vsel %vm796, %v797, %v798
        %v800 = vrot.slane %v731, 1
        %v801 = vsel %vm796, %v798, %v800
        %v802 = vrot.slane %v732, 1
        %v803 = vsel %vm796, %v800, %v802
        %v805 = vsel %vm796, %v802, 0.0
        %v806 = vld [vmem:[%s1 + $0x2] sm:$0x1]
        %807 = vset.pattern.permute.xlu0 0
        %808 = vperm.xlu0 %807, %v799
        %v809 = vpop.permute.xlu0 %808
        %811 = vset.pattern.permute.xlu0 0
        %812 = vperm.xlu0 %811, %v801
        %v813 = vpop.permute.xlu0 %812
        %815 = vset.pattern.permute.xlu0 0
        %816 = vperm.xlu0 %815, %v803
        %v817 = vpop.permute.xlu0 %816
        %820 = vset.pattern.permute.xlu0 0
        %821 = vperm.xlu0 %820, %v805
        %v822 = vpop.permute.xlu0 %821
        %v824 = vperm.slane %v806, 0
        %v825 = vmul.f32 %v809, %v824
        %v826 = vmul.f32 %v813, %v824
        %v827 = vmul.f32 %v817, %v824
        %v828 = vmul.f32 %v822, %v824
        %v829 = vadd.f32 %v792, %v825
        %v830 = vadd.f32 %v793, %v826
        %v831 = vadd.f32 %v794, %v827
        %v832 = vadd.f32 %v795, %v828
        %v833 = vld [vmem:[%s2] sm:$0x1]
        %v835 = vperm.slane %v833, 0
        %v837 = vmul.f32 %v829, %v835
        %v838 = vmul.f32 %v830, %v835
        %v839 = vmul.f32 %v831, %v835
        %v840 = vmul.f32 %v832, %v835
        %v841 = vld [vmem:[%s3] sm:$0x1]
        %v843 = vperm.slane %v841, 0
        %v845 = vadd.f32 %v837, %v843
        %v846 = vadd.f32 %v838, %v843
        %v847 = vadd.f32 %v839, %v843
        %v848 = vadd.f32 %v840, %v843
        %v849 = vmax.f32 %v845, 0.0
        %v850 = vmax.f32 %v846, 0.0
        %v851 = vmax.f32 %v847, 0.0
        %v852 = vmax.f32 %v848, 0.0
        %v857 = vrot.slane %v849, 2
        %v858 = vrot.slane %v849, 4
        %v859 = vrot.slane %v849, 6
        %v860 = vrot.slane %v850, 2
        %v861 = vrot.slane %v850, 4
        %v862 = vrot.slane %v850, 6
        %v863 = vrot.slane %v851, 2
        %v864 = vrot.slane %v851, 4
        %v865 = vrot.slane %v851, 6
        %v866 = vrot.slane %v852, 2
        %v867 = vrot.slane %v852, 4
        %v868 = vrot.slane %v852, 6
        %vm881 = vcmask 517120
        %v882 = vsel %vm881, %v849, -inf
        %v883 = vrot.slane %v882, 4
        %v884 = vmax.f32 %v882, %v883
        %v885 = vrot.slane %v884, 2
        %v886 = vmax.f32 %v884, %v885
        %v887 = vrot.slane %v886, 1
        %v888 = vmax.f32 %v886, %v887
        %v889 = vsel %vm881, %v857, -inf
        %v890 = vrot.slane %v889, 4
        %v891 = vmax.f32 %v889, %v890
        %v892 = vrot.slane %v891, 2
        %v893 = vmax.f32 %v891, %v892
        %v894 = vrot.slane %v893, 1
        %v895 = vmax.f32 %v893, %v894
        %v896 = vsel %vm881, %v858, -inf
        %v897 = vrot.slane %v896, 4
        %v898 = vmax.f32 %v896, %v897
        %v899 = vrot.slane %v898, 2
        %v900 = vmax.f32 %v898, %v899
        %v901 = vrot.slane %v900, 1
        %v902 = vmax.f32 %v900, %v901
        %v903 = vsel %vm881, %v859, -inf
        %v904 = vrot.slane %v903, 4
        %v905 = vmax.f32 %v903, %v904
        %v906 = vrot.slane %v905, 2
        %v907 = vmax.f32 %v905, %v906
        %v908 = vrot.slane %v907, 1
        %v909 = vmax.f32 %v907, %v908
        %v910 = vsel %vm881, %v850, -inf
        %v911 = vrot.slane %v910, 4
        %v912 = vmax.f32 %v910, %v911
        %v913 = vrot.slane %v912, 2
        %v914 = vmax.f32 %v912, %v913
        %v915 = vrot.slane %v914, 1
        %v916 = vmax.f32 %v914, %v915
        %v917 = vsel %vm881, %v860, -inf
        %v918 = vrot.slane %v917, 4
        %v919 = vmax.f32 %v917, %v918
        %v920 = vrot.slane %v919, 2
        %v921 = vmax.f32 %v919, %v920
        %v922 = vrot.slane %v921, 1
        %v923 = vmax.f32 %v921, %v922
        %v924 = vsel %vm881, %v861, -inf
        %v925 = vrot.slane %v924, 4
        %v926 = vmax.f32 %v924, %v925
        %v927 = vrot.slane %v926, 2
        %v928 = vmax.f32 %v926, %v927
        %v929 = vrot.slane %v928, 1
        %v930 = vmax.f32 %v928, %v929
        %v931 = vsel %vm881, %v862, -inf
        %v932 = vrot.slane %v931, 4
        %v933 = vmax.f32 %v931, %v932
        %v934 = vrot.slane %v933, 2
        %v935 = vmax.f32 %v933, %v934
        %v936 = vrot.slane %v935, 1
        %v937 = vmax.f32 %v935, %v936
        %v938 = vsel %vm881, %v851, -inf
        %v939 = vrot.slane %v938, 4
        %v940 = vmax.f32 %v938, %v939
        %v941 = vrot.slane %v940, 2
        %v942 = vmax.f32 %v940, %v941
        %v943 = vrot.slane %v942, 1
        %v944 = vmax.f32 %v942, %v943
        %v945 = vsel %vm881, %v863, -inf
        %v946 = vrot.slane %v945, 4
        %v947 = vmax.f32 %v945, %v946
        %v948 = vrot.slane %v947, 2
        %v949 = vmax.f32 %v947, %v948
        %v950 = vrot.slane %v949, 1
        %v951 = vmax.f32 %v949, %v950
        %v952 = vsel %vm881, %v864, -inf
        %v953 = vrot.slane %v952, 4
        %v954 = vmax.f32 %v952, %v953
        %v955 = vrot.slane %v954, 2
        %v956 = vmax.f32 %v954, %v955
        %v957 = vrot.slane %v956, 1
        %v958 = vmax.f32 %v956, %v957
        %v959 = vsel %vm881, %v865, -inf
        %v960 = vrot.slane %v959, 4
        %v961 = vmax.f32 %v959, %v960
        %v962 = vrot.slane %v961, 2
        %v963 = vmax.f32 %v961, %v962
        %v964 = vrot.slane %v963, 1
        %v965 = vmax.f32 %v963, %v964
        %v966 = vsel %vm881, %v852, -inf
        %v967 = vrot.slane %v966, 4
        %v968 = vmax.f32 %v966, %v967
        %v969 = vrot.slane %v968, 2
        %v970 = vmax.f32 %v968, %v969
        %v971 = vrot.slane %v970, 1
        %v972 = vmax.f32 %v970, %v971
        %v973 = vsel %vm881, %v866, -inf
        %v974 = vrot.slane %v973, 4
        %v975 = vmax.f32 %v973, %v974
        %v976 = vrot.slane %v975, 2
        %v977 = vmax.f32 %v975, %v976
        %v978 = vrot.slane %v977, 1
        %v979 = vmax.f32 %v977, %v978
        %v980 = vsel %vm881, %v867, -inf
        %v981 = vrot.slane %v980, 4
        %v982 = vmax.f32 %v980, %v981
        %v983 = vrot.slane %v982, 2
        %v984 = vmax.f32 %v982, %v983
        %v985 = vrot.slane %v984, 1
        %v986 = vmax.f32 %v984, %v985
        %v987 = vsel %vm881, %v868, -inf
        %v988 = vrot.slane %v987, 4
        %v989 = vmax.f32 %v987, %v988
        %v990 = vrot.slane %v989, 2
        %v991 = vmax.f32 %v989, %v990
        %v992 = vrot.slane %v991, 1
        %v993 = vmax.f32 %v991, %v992
        %vm1009 = vcmask 1042434
        %v1010 = vsel %vm1009, %v895, %v888
        %vm1011 = vcmask 1043459
        %v1012 = vsel %vm1011, %v902, %v1010
        %vm1013 = vcmask 1044484
        %v1014 = vsel %vm1013, %v909, %v1012
        %vm1015 = vcmask 1045509
        %v1016 = vsel %vm1015, %v916, %v1014
        %vm1017 = vcmask 1046534
        %v1018 = vsel %vm1017, %v923, %v1016
        %vm1019 = vcmask 1047559
        %v1020 = vsel %vm1019, %v930, %v1018
        %vm1021 = vcmask 1041409
        %v1022 = vsel %vm1021, %v944, %v937
        %v1023 = vsel %vm1009, %v951, %v1022
        %v1024 = vsel %vm1011, %v958, %v1023
        %v1025 = vsel %vm1013, %v965, %v1024
        %v1026 = vsel %vm1015, %v972, %v1025
        %v1027 = vsel %vm1017, %v979, %v1026
        %v1028 = vsel %vm1019, %v986, %v1027
        %v1030 = vsel %vm737, 0.0, %v1020
        %v1031 = vld [vmem:[#allocation3] sm:$0xff]
        %v1032 = vld [vmem:[#allocation3 + $0x8] sm:$0xff]
        %v1033 = vld [vmem:[#allocation3 + $0x10] sm:$0xff]
        %v1034 = vld [vmem:[#allocation3 + $0x18] sm:$0xff]
        %v1035 = vld [vmem:[#allocation3 + $0x20] sm:$0xff]
        %v1036 = vld [vmem:[#allocation3 + $0x28] sm:$0xff]
        %v1037 = vld [vmem:[#allocation3 + $0x30] sm:$0xff]
        %v1038 = vld [vmem:[#allocation3 + $0x38] sm:$0xff]
        %s1039 = scalar_lea.vmem [#allocation3], 64
        %v1040 = vld [vmem:[%s1039] sm:$0xff]
        %v1041 = vld [vmem:[%s1039 + $0x8] sm:$0xff]
        %v1042 = vld [vmem:[%s1039 + $0x10] sm:$0xff]
        %v1043 = vld [vmem:[%s1039 + $0x18] sm:$0xff]
        %v1044 = vld [vmem:[%s1039 + $0x20] sm:$0xff]
        %v1045 = vld [vmem:[%s1039 + $0x28] sm:$0xff]
        %v1046 = vld [vmem:[%s1039 + $0x30] sm:$0xff]
        %v1047 = vld [vmem:[%s1039 + $0x38] sm:$0xff]
        %v1049 = vsel %vm1021, %v895, %v888
        %v1050 = vsel %vm1009, %v902, %v1049
        %v1051 = vsel %vm1011, %v909, %v1050
        %v1052 = vsel %vm1013, %v916, %v1051
        %v1053 = vsel %vm1015, %v923, %v1052
        %v1054 = vsel %vm1017, %v930, %v1053
        %v1055 = vsel %vm1019, %v937, %v1054
        %v1056 = vsel %vm1021, %v951, %v944
        %v1057 = vsel %vm1009, %v958, %v1056
        %v1058 = vsel %vm1011, %v965, %v1057
        %v1059 = vsel %vm1013, %v972, %v1058
        %v1060 = vsel %vm1015, %v979, %v1059
        %v1061 = vsel %vm1017, %v986, %v1060
        %v1062 = vsel %vm1019, %v993, %v1061
        %vm1063 = vcmask 523264
        %v1064 = vsel %vm1063, %v1055, 0
        %v1066 = vsel %vm1063, %v1062, 0
        %1068 = vmatpush.msra.mxu0 0.0
        %1069 = vmatpush.msra.mxu0 0.0
        %1070 = vmatpush.msra.mxu0 0.0
        %1071 = vmatpush.msra.mxu0 0.0
        %1072 = vmatpush.msra.mxu0 0.0
        %1073 = vmatpush.msra.mxu0 0.0
        %1074 = vmatpush.msra.mxu0 0.0
        %1075 = vmatpush.msra.mxu0 0.0
        %1076 = vmatpush.msra.mxu0 %v1047
        %1077 = vmatpush.msra.mxu0 %v1046
        %1078 = vmatpush.msra.mxu0 %v1045
        %1079 = vmatpush.msra.mxu0 %v1044
        %1080 = vmatpush.msra.mxu0 %v1043
        %1081 = vmatpush.msra.mxu0 %v1042
        %1082 = vmatpush.msra.mxu0 %v1041
        %1083 = vmatpush.msra.mxu0 %v1040
        %1084 = vmatmul.f32.gmra.mxu0 %v1064
        %v1085 = vpop.f32.mrf.mxu0
        %v1086 = vadd.f32 0.0, %v1085
        %1087 = vmatmul.f32.gmra.mxu0 %v1066
        %v1088 = vpop.f32.mrf.mxu0
        %v1089 = vadd.f32 0.0, %v1088
        %1090 = vdwg.mxu0
        %v1092 = vsel %vm1063, %v1030, 0
        %v1094 = vsel %vm1063, %v1028, 0
        %1096 = vmatpush.msra.mxu0 0.0
        %1097 = vmatpush.msra.mxu0 0.0
        %1098 = vmatpush.msra.mxu0 0.0
        %1099 = vmatpush.msra.mxu0 0.0
        %1100 = vmatpush.msra.mxu0 0.0
        %1101 = vmatpush.msra.mxu0 0.0
        %1102 = vmatpush.msra.mxu0 0.0
        %1103 = vmatpush.msra.mxu0 0.0
        %1104 = vmatpush.msra.mxu0 %v1038
        %1105 = vmatpush.msra.mxu0 %v1037
        %1106 = vmatpush.msra.mxu0 %v1036
        %1107 = vmatpush.msra.mxu0 %v1035
        %1108 = vmatpush.msra.mxu0 %v1034
        %1109 = vmatpush.msra.mxu0 %v1033
        %1110 = vmatpush.msra.mxu0 %v1032
        %1111 = vmatpush.msra.mxu0 %v1031
        %1112 = vmatmul.f32.gmra.mxu0 %v1092
        %v1113 = vpop.f32.mrf.mxu0
        %v1114 = vadd.f32 %v1086, %v1113
        %1115 = vmatmul.f32.gmra.mxu0 %v1094
        %v1116 = vpop.f32.mrf.mxu0
        %v1117 = vadd.f32 %v1089, %v1116
        %1118 = vdwg.mxu0
        %v1119 = vsel %vm1021, %v902, %v895
        %v1120 = vsel %vm1009, %v909, %v1119
        %v1121 = vsel %vm1011, %v916, %v1120
        %v1122 = vsel %vm1013, %v923, %v1121
        %v1123 = vsel %vm1015, %v930, %v1122
        %v1124 = vsel %vm1017, %v937, %v1123
        %v1125 = vsel %vm1019, %v944, %v1124
        %v1126 = vsel %vm1021, %v958, %v951
        %v1127 = vsel %vm1009, %v965, %v1126
        %v1128 = vsel %vm1011, %v972, %v1127
        %v1129 = vsel %vm1013, %v979, %v1128
        %v1130 = vsel %vm1015, %v986, %v1129
        %v1131 = vsel %vm1017, %v993, %v1130
        %v1133 = vsel %vm796, %v1131, 0.0
        %s1134 = scalar_lea.vmem [#allocation3], 128
        %v1135 = vld [vmem:[%s1134] sm:$0xff]
        %v1136 = vld [vmem:[%s1134 + $0x8] sm:$0xff]
        %v1137 = vld [vmem:[%s1134 + $0x10] sm:$0xff]
        %v1138 = vld [vmem:[%s1134 + $0x18] sm:$0xff]
        %v1139 = vld [vmem:[%s1134 + $0x20] sm:$0xff]
        %v1140 = vld [vmem:[%s1134 + $0x28] sm:$0xff]
        %v1141 = vld [vmem:[%s1134 + $0x30] sm:$0xff]
        %v1142 = vld [vmem:[%s1134 + $0x38] sm:$0xff]
        %v1143 = vsel %vm1063, %v1125, 0
        %v1146 = vsel %vm1063, %v1133, 0
        %1148 = vmatpush.msra.mxu0 0.0
        %1149 = vmatpush.msra.mxu0 0.0
        %1150 = vmatpush.msra.mxu0 0.0
        %1151 = vmatpush.msra.mxu0 0.0
        %1152 = vmatpush.msra.mxu0 0.0
        %1153 = vmatpush.msra.mxu0 0.0
        %1154 = vmatpush.msra.mxu0 0.0
        %1155 = vmatpush.msra.mxu0 0.0
        %1156 = vmatpush.msra.mxu0 %v1142
        %1157 = vmatpush.msra.mxu0 %v1141
        %1158 = vmatpush.msra.mxu0 %v1140
        %1159 = vmatpush.msra.mxu0 %v1139
        %1160 = vmatpush.msra.mxu0 %v1138
        %1161 = vmatpush.msra.mxu0 %v1137
        %1162 = vmatpush.msra.mxu0 %v1136
        %1163 = vmatpush.msra.mxu0 %v1135
        %1164 = vmatmul.f32.gmra.mxu0 %v1143
        %v1165 = vpop.f32.mrf.mxu0
        %v1166 = vadd.f32 0.0, %v1165
        %1167 = vmatmul.f32.gmra.mxu0 %v1146
        %v1168 = vpop.f32.mrf.mxu0
        %v1169 = vadd.f32 0.0, %v1168
        %1170 = vdwg.mxu0
        %v1171 = vadd.f32 %v1114, %v1166
        %v1172 = vadd.f32 %v1117, %v1169
        %v1173 = vld [vmem:[#allocation6] sm:$0x1]
        %v1175 = vperm.slane %v1173, 0
        %v1177 = vmul.f32 %v1171, %v1175
        %v1178 = vmul.f32 %v1172, %v1175
        %v1179 = vld [vmem:[#allocation8] sm:$0x1]
        %v1181 = vperm.slane %v1179, 0
        %v1183 = vadd.f32 %v1177, %v1181
        %v1184 = vadd.f32 %v1178, %v1181
        %v1185 = vmax.f32 %v1183, 0.0
        %v1186 = vmax.f32 %v1184, 0.0
        %v1189 = vrot.slane %v1185, 2
        %v1190 = vrot.slane %v1185, 4
        %v1191 = vrot.slane %v1185, 6
        %v1192 = vrot.slane %v1186, 2
        %v1193 = vrot.slane %v1186, 4
        %v1194 = vrot.slane %v1186, 6
        %vm1201 = vcmask 1041408
        %v1202 = vsel %vm1201, %v1185, -inf
        %v1203 = vrot.slane %v1202, 4
        %v1204 = vmax.f32 %v1202, %v1203
        %v1205 = vrot.slane %v1204, 2
        %v1206 = vmax.f32 %v1204, %v1205
        %v1207 = vrot.slane %v1206, 1
        %v1208 = vmax.f32 %v1206, %v1207
        %v1209 = vsel %vm1201, %v1189, -inf
        %v1210 = vrot.slane %v1209, 4
        %v1211 = vmax.f32 %v1209, %v1210
        %v1212 = vrot.slane %v1211, 2
        %v1213 = vmax.f32 %v1211, %v1212
        %v1214 = vrot.slane %v1213, 1
        %v1215 = vmax.f32 %v1213, %v1214
        %v1216 = vsel %vm1201, %v1190, -inf
        %v1217 = vrot.slane %v1216, 4
        %v1218 = vmax.f32 %v1216, %v1217
        %v1219 = vrot.slane %v1218, 2
        %v1220 = vmax.f32 %v1218, %v1219
        %v1221 = vrot.slane %v1220, 1
        %v1222 = vmax.f32 %v1220, %v1221
        %v1223 = vsel %vm1201, %v1191, -inf
        %v1224 = vrot.slane %v1223, 4
        %v1225 = vmax.f32 %v1223, %v1224
        %v1226 = vrot.slane %v1225, 2
        %v1227 = vmax.f32 %v1225, %v1226
        %v1228 = vrot.slane %v1227, 1
        %v1229 = vmax.f32 %v1227, %v1228
        %v1230 = vsel %vm1201, %v1186, -inf
        %v1231 = vrot.slane %v1230, 4
        %v1232 = vmax.f32 %v1230, %v1231
        %v1233 = vrot.slane %v1232, 2
        %v1234 = vmax.f32 %v1232, %v1233
        %v1235 = vrot.slane %v1234, 1
        %v1236 = vmax.f32 %v1234, %v1235
        %v1237 = vsel %vm1201, %v1192, -inf
        %v1238 = vrot.slane %v1237, 4
        %v1239 = vmax.f32 %v1237, %v1238
        %v1240 = vrot.slane %v1239, 2
        %v1241 = vmax.f32 %v1239, %v1240
        %v1242 = vrot.slane %v1241, 1
        %v1243 = vmax.f32 %v1241, %v1242
        %v1244 = vsel %vm1201, %v1193, -inf
        %v1245 = vrot.slane %v1244, 4
        %v1246 = vmax.f32 %v1244, %v1245
        %v1247 = vrot.slane %v1246, 2
        %v1248 = vmax.f32 %v1246, %v1247
        %v1249 = vrot.slane %v1248, 1
        %v1250 = vmax.f32 %v1248, %v1249
        %v1251 = vsel %vm1201, %v1194, -inf
        %v1252 = vrot.slane %v1251, 4
        %v1253 = vmax.f32 %v1251, %v1252
        %v1254 = vrot.slane %v1253, 2
        %v1255 = vmax.f32 %v1253, %v1254
        %v1256 = vrot.slane %v1255, 1
        %v1257 = vmax.f32 %v1255, %v1256
        %v1265 = vsel %vm1009, %v1215, %v1208
        %v1266 = vsel %vm1011, %v1222, %v1265
        %v1267 = vsel %vm1013, %v1229, %v1266
        %v1268 = vsel %vm1015, %v1236, %v1267
        %v1269 = vsel %vm1017, %v1243, %v1268
        %v1270 = vsel %vm1019, %v1250, %v1269
        %v1272 = vsel %vm737, 0.0, %v1270
        %v1273 = vld [vmem:[#allocation9] sm:$0xff]
        %v1274 = vld [vmem:[#allocation9 + $0x8] sm:$0xff]
        %v1275 = vld [vmem:[#allocation9 + $0x10] sm:$0xff]
        %v1276 = vld [vmem:[#allocation9 + $0x18] sm:$0xff]
        %v1277 = vld [vmem:[#allocation9 + $0x20] sm:$0xff]
        %v1278 = vld [vmem:[#allocation9 + $0x28] sm:$0xff]
        %v1279 = vld [vmem:[#allocation9 + $0x30] sm:$0xff]
        %v1280 = vld [vmem:[#allocation9 + $0x38] sm:$0xff]
        %v1281 = vld [vmem:[#allocation9 + $0x40] sm:$0xff]
        %v1282 = vld [vmem:[#allocation9 + $0x48] sm:$0xff]
        %v1283 = vld [vmem:[#allocation9 + $0x50] sm:$0xff]
        %v1284 = vld [vmem:[#allocation9 + $0x58] sm:$0xff]
        %v1285 = vld [vmem:[#allocation9 + $0x60] sm:$0xff]
        %v1286 = vld [vmem:[#allocation9 + $0x68] sm:$0xff]
        %v1287 = vld [vmem:[#allocation9 + $0x70] sm:$0xff]
        %v1288 = vld [vmem:[#allocation9 + $0x78] sm:$0xff]
        %v1289 = vld [vmem:[#allocation9 + $0x80] sm:$0xff]
        %v1290 = vld [vmem:[#allocation9 + $0x88] sm:$0xff]
        %v1291 = vld [vmem:[#allocation9 + $0x90] sm:$0xff]
        %v1292 = vld [vmem:[#allocation9 + $0x98] sm:$0xff]
        %v1293 = vld [vmem:[#allocation9 + $0xa0] sm:$0xff]
        %v1294 = vld [vmem:[#allocation9 + $0xa8] sm:$0xff]
        %v1295 = vld [vmem:[#allocation9 + $0xb0] sm:$0xff]
        %v1296 = vld [vmem:[#allocation9 + $0xb8] sm:$0xff]
        %v1297 = vld [vmem:[#allocation9 + $0xc0] sm:$0xff]
        %v1298 = vld [vmem:[#allocation9 + $0xc8] sm:$0xff]
        %v1299 = vld [vmem:[#allocation9 + $0xd0] sm:$0xff]
        %v1300 = vld [vmem:[#allocation9 + $0xd8] sm:$0xff]
        %v1301 = vld [vmem:[#allocation9 + $0xe0] sm:$0xff]
        %v1302 = vld [vmem:[#allocation9 + $0xe8] sm:$0xff]
        %v1303 = vld [vmem:[#allocation9 + $0xf0] sm:$0xff]
        %v1304 = vld [vmem:[#allocation9 + $0xf8] sm:$0xff]
        %s1305 = scalar_lea.vmem [#allocation9], 256
        %v1306 = vld [vmem:[%s1305] sm:$0xff]
        %v1307 = vld [vmem:[%s1305 + $0x8] sm:$0xff]
        %v1308 = vld [vmem:[%s1305 + $0x10] sm:$0xff]
        %v1309 = vld [vmem:[%s1305 + $0x18] sm:$0xff]
        %v1310 = vld [vmem:[%s1305 + $0x20] sm:$0xff]
        %v1311 = vld [vmem:[%s1305 + $0x28] sm:$0xff]
        %v1312 = vld [vmem:[%s1305 + $0x30] sm:$0xff]
        %v1313 = vld [vmem:[%s1305 + $0x38] sm:$0xff]
        %v1314 = vld [vmem:[%s1305 + $0x40] sm:$0xff]
        %v1315 = vld [vmem:[%s1305 + $0x48] sm:$0xff]
        %v1316 = vld [vmem:[%s1305 + $0x50] sm:$0xff]
        %v1317 = vld [vmem:[%s1305 + $0x58] sm:$0xff]
        %v1318 = vld [vmem:[%s1305 + $0x60] sm:$0xff]
        %v1319 = vld [vmem:[%s1305 + $0x68] sm:$0xff]
        %v1320 = vld [vmem:[%s1305 + $0x70] sm:$0xff]
        %v1321 = vld [vmem:[%s1305 + $0x78] sm:$0xff]
        %v1322 = vld [vmem:[%s1305 + $0x80] sm:$0xff]
        %v1323 = vld [vmem:[%s1305 + $0x88] sm:$0xff]
        %v1324 = vld [vmem:[%s1305 + $0x90] sm:$0xff]
        %v1325 = vld [vmem:[%s1305 + $0x98] sm:$0xff]
        %v1326 = vld [vmem:[%s1305 + $0xa0] sm:$0xff]
        %v1327 = vld [vmem:[%s1305 + $0xa8] sm:$0xff]
        %v1328 = vld [vmem:[%s1305 + $0xb0] sm:$0xff]
        %v1329 = vld [vmem:[%s1305 + $0xb8] sm:$0xff]
        %v1330 = vld [vmem:[%s1305 + $0xc0] sm:$0xff]
        %v1331 = vld [vmem:[%s1305 + $0xc8] sm:$0xff]
        %v1332 = vld [vmem:[%s1305 + $0xd0] sm:$0xff]
        %v1333 = vld [vmem:[%s1305 + $0xd8] sm:$0xff]
        %v1334 = vld [vmem:[%s1305 + $0xe0] sm:$0xff]
        %v1335 = vld [vmem:[%s1305 + $0xe8] sm:$0xff]
        %v1336 = vld [vmem:[%s1305 + $0xf0] sm:$0xff]
        %v1337 = vld [vmem:[%s1305 + $0xf8] sm:$0xff]
        %v1339 = vsel %vm1021, %v1215, %v1208
        %v1340 = vsel %vm1009, %v1222, %v1339
        %v1341 = vsel %vm1011, %v1229, %v1340
        %v1342 = vsel %vm1013, %v1236, %v1341
        %v1343 = vsel %vm1015, %v1243, %v1342
        %v1344 = vsel %vm1017, %v1250, %v1343
        %v1345 = vsel %vm1019, %v1257, %v1344
        %1347 = vmatpush.msra.mxu0 %v1336
        %1348 = vmatpush.msra.mxu0 %v1334
        %1349 = vmatpush.msra.mxu0 %v1332
        %1350 = vmatpush.msra.mxu0 %v1330
        %1351 = vmatpush.msra.mxu0 %v1328
        %1352 = vmatpush.msra.mxu0 %v1326
        %1353 = vmatpush.msra.mxu0 %v1324
        %1354 = vmatpush.msra.mxu0 %v1322
        %1355 = vmatpush.msra.mxu0 %v1320
        %1356 = vmatpush.msra.mxu0 %v1318
        %1357 = vmatpush.msra.mxu0 %v1316
        %1358 = vmatpush.msra.mxu0 %v1314
        %1359 = vmatpush.msra.mxu0 %v1312
        %1360 = vmatpush.msra.mxu0 %v1310
        %1361 = vmatpush.msra.mxu0 %v1308
        %1362 = vmatpush.msra.mxu0 %v1306
        %1363 = vmatmul.f32.gmra.mxu0 %v1345
        %v1364 = vpop.f32.mrf.mxu0
        %v1365 = vadd.f32 0.0, %v1364
        %1366 = vdwg.mxu0
        %1367 = vmatpush.msra.mxu0 %v1337
        %1368 = vmatpush.msra.mxu0 %v1335
        %1369 = vmatpush.msra.mxu0 %v1333
        %1370 = vmatpush.msra.mxu0 %v1331
        %1371 = vmatpush.msra.mxu0 %v1329
        %1372 = vmatpush.msra.mxu0 %v1327
        %1373 = vmatpush.msra.mxu0 %v1325
        %1374 = vmatpush.msra.mxu0 %v1323
        %1375 = vmatpush.msra.mxu0 %v1321
        %1376 = vmatpush.msra.mxu0 %v1319
        %1377 = vmatpush.msra.mxu0 %v1317
        %1378 = vmatpush.msra.mxu0 %v1315
        %1379 = vmatpush.msra.mxu0 %v1313
        %1380 = vmatpush.msra.mxu0 %v1311
        %1381 = vmatpush.msra.mxu0 %v1309
        %1382 = vmatpush.msra.mxu0 %v1307
        %1383 = vmatmul.f32.gmra.mxu0 %v1345
        %v1384 = vpop.f32.mrf.mxu0
        %v1385 = vadd.f32 0.0, %v1384
        %1386 = vdwg.mxu0
        %1387 = vmatpush.msra.mxu0 %v1303
        %1388 = vmatpush.msra.mxu0 %v1301
        %1389 = vmatpush.msra.mxu0 %v1299
        %1390 = vmatpush.msra.mxu0 %v1297
        %1391 = vmatpush.msra.mxu0 %v1295
        %1392 = vmatpush.msra.mxu0 %v1293
        %1393 = vmatpush.msra.mxu0 %v1291
        %1394 = vmatpush.msra.mxu0 %v1289
        %1395 = vmatpush.msra.mxu0 %v1287
        %1396 = vmatpush.msra.mxu0 %v1285
        %1397 = vmatpush.msra.mxu0 %v1283
        %1398 = vmatpush.msra.mxu0 %v1281
        %1399 = vmatpush.msra.mxu0 %v1279
        %1400 = vmatpush.msra.mxu0 %v1277
        %1401 = vmatpush.msra.mxu0 %v1275
        %1402 = vmatpush.msra.mxu0 %v1273
        %1403 = vmatmul.f32.gmra.mxu0 %v1272
        %v1404 = vpop.f32.mrf.mxu0
        %v1405 = vadd.f32 %v1365, %v1404
        %1406 = vdwg.mxu0
        %1407 = vmatpush.msra.mxu0 %v1304
        %1408 = vmatpush.msra.mxu0 %v1302
        %1409 = vmatpush.msra.mxu0 %v1300
        %1410 = vmatpush.msra.mxu0 %v1298
        %1411 = vmatpush.msra.mxu0 %v1296
        %1412 = vmatpush.msra.mxu0 %v1294
        %1413 = vmatpush.msra.mxu0 %v1292
        %1414 = vmatpush.msra.mxu0 %v1290
        %1415 = vmatpush.msra.mxu0 %v1288
        %1416 = vmatpush.msra.mxu0 %v1286
        %1417 = vmatpush.msra.mxu0 %v1284
        %1418 = vmatpush.msra.mxu0 %v1282
        %1419 = vmatpush.msra.mxu0 %v1280
        %1420 = vmatpush.msra.mxu0 %v1278
        %1421 = vmatpush.msra.mxu0 %v1276
        %1422 = vmatpush.msra.mxu0 %v1274
        %1423 = vmatmul.f32.gmra.mxu0 %v1272
        %v1424 = vpop.f32.mrf.mxu0
        %v1425 = vadd.f32 %v1385, %v1424
        %1426 = vdwg.mxu0
        %v1427 = vsel %vm1021, %v1222, %v1215
        %v1428 = vsel %vm1009, %v1229, %v1427
        %v1429 = vsel %vm1011, %v1236, %v1428
        %v1430 = vsel %vm1013, %v1243, %v1429
        %v1431 = vsel %vm1015, %v1250, %v1430
        %v1432 = vsel %vm1017, %v1257, %v1431
        %v1434 = vsel %vm796, %v1432, 0.0
        %s1435 = scalar_lea.vmem [#allocation9], 512
        %v1436 = vld [vmem:[%s1435] sm:$0xff]
        %v1437 = vld [vmem:[%s1435 + $0x8] sm:$0xff]
        %v1438 = vld [vmem:[%s1435 + $0x10] sm:$0xff]
        %v1439 = vld [vmem:[%s1435 + $0x18] sm:$0xff]
        %v1440 = vld [vmem:[%s1435 + $0x20] sm:$0xff]
        %v1441 = vld [vmem:[%s1435 + $0x28] sm:$0xff]
        %v1442 = vld [vmem:[%s1435 + $0x30] sm:$0xff]
        %v1443 = vld [vmem:[%s1435 + $0x38] sm:$0xff]
        %v1444 = vld [vmem:[%s1435 + $0x40] sm:$0xff]
        %v1445 = vld [vmem:[%s1435 + $0x48] sm:$0xff]
        %v1446 = vld [vmem:[%s1435 + $0x50] sm:$0xff]
        %v1447 = vld [vmem:[%s1435 + $0x58] sm:$0xff]
        %v1448 = vld [vmem:[%s1435 + $0x60] sm:$0xff]
        %v1449 = vld [vmem:[%s1435 + $0x68] sm:$0xff]
        %v1450 = vld [vmem:[%s1435 + $0x70] sm:$0xff]
        %v1451 = vld [vmem:[%s1435 + $0x78] sm:$0xff]
        %v1452 = vld [vmem:[%s1435 + $0x80] sm:$0xff]
        %v1453 = vld [vmem:[%s1435 + $0x88] sm:$0xff]
        %v1454 = vld [vmem:[%s1435 + $0x90] sm:$0xff]
        %v1455 = vld [vmem:[%s1435 + $0x98] sm:$0xff]
        %v1456 = vld [vmem:[%s1435 + $0xa0] sm:$0xff]
        %v1457 = vld [vmem:[%s1435 + $0xa8] sm:$0xff]
        %v1458 = vld [vmem:[%s1435 + $0xb0] sm:$0xff]
        %v1459 = vld [vmem:[%s1435 + $0xb8] sm:$0xff]
        %v1460 = vld [vmem:[%s1435 + $0xc0] sm:$0xff]
        %v1461 = vld [vmem:[%s1435 + $0xc8] sm:$0xff]
        %v1462 = vld [vmem:[%s1435 + $0xd0] sm:$0xff]
        %v1463 = vld [vmem:[%s1435 + $0xd8] sm:$0xff]
        %v1464 = vld [vmem:[%s1435 + $0xe0] sm:$0xff]
        %v1465 = vld [vmem:[%s1435 + $0xe8] sm:$0xff]
        %v1466 = vld [vmem:[%s1435 + $0xf0] sm:$0xff]
        %v1467 = vld [vmem:[%s1435 + $0xf8] sm:$0xff]
        %1468 = vmatpush.msra.mxu0 %v1466
        %1469 = vmatpush.msra.mxu0 %v1464
        %1470 = vmatpush.msra.mxu0 %v1462
        %1471 = vmatpush.msra.mxu0 %v1460
        %1472 = vmatpush.msra.mxu0 %v1458
        %1473 = vmatpush.msra.mxu0 %v1456
        %1474 = vmatpush.msra.mxu0 %v1454
        %1475 = vmatpush.msra.mxu0 %v1452
        %1476 = vmatpush.msra.mxu0 %v1450
        %1477 = vmatpush.msra.mxu0 %v1448
        %1478 = vmatpush.msra.mxu0 %v1446
        %1479 = vmatpush.msra.mxu0 %v1444
        %1480 = vmatpush.msra.mxu0 %v1442
        %1481 = vmatpush.msra.mxu0 %v1440
        %1482 = vmatpush.msra.mxu0 %v1438
        %1483 = vmatpush.msra.mxu0 %v1436
        %1484 = vmatmul.f32.gmra.mxu0 %v1434
        %v1485 = vpop.f32.mrf.mxu0
        %v1486 = vadd.f32 0.0, %v1485
        %1487 = vdwg.mxu0
        %1488 = vmatpush.msra.mxu0 %v1467
        %1489 = vmatpush.msra.mxu0 %v1465
        %1490 = vmatpush.msra.mxu0 %v1463
        %1491 = vmatpush.msra.mxu0 %v1461
        %1492 = vmatpush.msra.mxu0 %v1459
        %1493 = vmatpush.msra.mxu0 %v1457
        %1494 = vmatpush.msra.mxu0 %v1455
        %1495 = vmatpush.msra.mxu0 %v1453
        %1496 = vmatpush.msra.mxu0 %v1451
        %1497 = vmatpush.msra.mxu0 %v1449
        %1498 = vmatpush.msra.mxu0 %v1447
        %1499 = vmatpush.msra.mxu0 %v1445
        %1500 = vmatpush.msra.mxu0 %v1443
        %1501 = vmatpush.msra.mxu0 %v1441
        %1502 = vmatpush.msra.mxu0 %v1439
        %1503 = vmatpush.msra.mxu0 %v1437
        %1504 = vmatmul.f32.gmra.mxu0 %v1434
        %v1505 = vpop.f32.mrf.mxu0
        %v1506 = vadd.f32 0.0, %v1505
        %1507 = vdwg.mxu0
        %v1508 = vadd.f32 %v1405, %v1486
        %v1509 = vadd.f32 %v1425, %v1506
        %v1510 = vld [vmem:[%s8] sm:$0x3]
        %v1512 = vperm.slane %v1510, 0
        %v1513 = vperm.slane %v1510, 1
        %v1516 = vmul.f32 %v1508, %v1512
        %v1517 = vmul.f32 %v1509, %v1513
        %v1518 = vld [vmem:[%s9] sm:$0x3]
        %v1520 = vperm.slane %v1518, 0
        %v1521 = vperm.slane %v1518, 1
        %v1524 = vadd.f32 %v1516, %v1520
        %v1525 = vadd.f32 %v1517, %v1521
        %v1526 = vmax.f32 %v1524, 0.0
        %v1527 = vmax.f32 %v1525, 0.0
        %v1530 = vrot.slane %v1527, 6
        %v1531 = vsel %vm1201, %v1526, %v1530
        %vm1532 = vcmask 1043458
        %v1533 = vsel %vm1532, %v1526, %v1530
        %v1534 = vrot.slane %v1533, 2
        %vm1535 = vcmask 1045508
        %v1536 = vsel %vm1535, %v1526, %v1530
        %v1537 = vrot.slane %v1536, 4
        %vm1538 = vcmask 1045504
        %v1539 = vsel %vm1538, %v1530, %v1526
        %v1540 = vrot.slane %v1539, 6
        %1541 = vst [vmem:[#allocation1] ss:$4 sm:$0xff] %v1531
        %v1542 = vld.sshfl [vmem:[#allocation1] sm:$0xff pattern:$0x73625140]
        %v1543 = vld.sshfl [vmem:[#allocation1 + $0x8] sm:$0xff pattern:$0x73625140]
        %s1544 = scalar_lea.vmem [#allocation1], 32
        %1545 = vst [vmem:[%s1544] ss:$4 sm:$0xff] %v1534
        %v1546 = vld.sshfl [vmem:[#allocation1 + $0x20] sm:$0xff pattern:$0x73625140]
        %v1547 = vld.sshfl [vmem:[#allocation1 + $0x28] sm:$0xff pattern:$0x73625140]
        %1548 = vst [vmem:[#allocation1] ss:$4 sm:$0xff] %v1537
        %v1549 = vld.sshfl [vmem:[#allocation1] sm:$0xff pattern:$0x73625140]
        %v1550 = vld.sshfl [vmem:[#allocation1 + $0x8] sm:$0xff pattern:$0x73625140]
        %1551 = vst [vmem:[%s1544] ss:$4 sm:$0xff] %v1540
        %v1552 = vld.sshfl [vmem:[#allocation1 + $0x20] sm:$0xff pattern:$0x73625140]
        %v1553 = vld.sshfl [vmem:[#allocation1 + $0x28] sm:$0xff pattern:$0x73625140]
        %v1562 = vsel %vm1201, %v1542, -inf
        %v1563 = vrot.slane %v1562, 4
        %v1564 = vmax.f32 %v1562, %v1563
        %v1565 = vrot.slane %v1564, 2
        %v1566 = vmax.f32 %v1564, %v1565
        %v1567 = vrot.slane %v1566, 1
        %v1568 = vmax.f32 %v1566, %v1567
        %v1569 = vsel %vm1201, %v1543, -inf
        %v1570 = vrot.slane %v1569, 4
        %v1571 = vmax.f32 %v1569, %v1570
        %v1572 = vrot.slane %v1571, 2
        %v1573 = vmax.f32 %v1571, %v1572
        %v1574 = vrot.slane %v1573, 1
        %v1575 = vmax.f32 %v1573, %v1574
        %v1576 = vsel %vm1201, %v1546, -inf
        %v1577 = vrot.slane %v1576, 4
        %v1578 = vmax.f32 %v1576, %v1577
        %v1579 = vrot.slane %v1578, 2
        %v1580 = vmax.f32 %v1578, %v1579
        %v1581 = vrot.slane %v1580, 1
        %v1582 = vmax.f32 %v1580, %v1581
        %v1583 = vsel %vm1201, %v1547, -inf
        %v1584 = vrot.slane %v1583, 4
        %v1585 = vmax.f32 %v1583, %v1584
        %v1586 = vrot.slane %v1585, 2
        %v1587 = vmax.f32 %v1585, %v1586
        %v1588 = vrot.slane %v1587, 1
        %v1589 = vmax.f32 %v1587, %v1588
        %v1590 = vsel %vm1201, %v1549, -inf
        %v1591 = vrot.slane %v1590, 4
        %v1592 = vmax.f32 %v1590, %v1591
        %v1593 = vrot.slane %v1592, 2
        %v1594 = vmax.f32 %v1592, %v1593
        %v1595 = vrot.slane %v1594, 1
        %v1596 = vmax.f32 %v1594, %v1595
        %v1597 = vsel %vm1201, %v1550, -inf
        %v1598 = vrot.slane %v1597, 4
        %v1599 = vmax.f32 %v1597, %v1598
        %v1600 = vrot.slane %v1599, 2
        %v1601 = vmax.f32 %v1599, %v1600
        %v1602 = vrot.slane %v1601, 1
        %v1603 = vmax.f32 %v1601, %v1602
        %v1604 = vsel %vm1201, %v1552, -inf
        %v1605 = vrot.slane %v1604, 4
        %v1606 = vmax.f32 %v1604, %v1605
        %v1607 = vrot.slane %v1606, 2
        %v1608 = vmax.f32 %v1606, %v1607
        %v1609 = vrot.slane %v1608, 1
        %v1610 = vmax.f32 %v1608, %v1609
        %v1611 = vsel %vm1201, %v1553, -inf
        %v1612 = vrot.slane %v1611, 4
        %v1613 = vmax.f32 %v1611, %v1612
        %v1614 = vrot.slane %v1613, 2
        %v1615 = vmax.f32 %v1613, %v1614
        %v1616 = vrot.slane %v1615, 1
        %v1617 = vmax.f32 %v1615, %v1616
        %v1618 = vld [vmem:[#allocation11] sm:$0xff]
        %v1619 = vld [vmem:[#allocation11 + $0x8] sm:$0xff]
        %v1620 = vld [vmem:[#allocation11 + $0x10] sm:$0xff]
        %v1621 = vld [vmem:[#allocation11 + $0x18] sm:$0xff]
        %v1622 = vld [vmem:[#allocation11 + $0x20] sm:$0xff]
        %v1623 = vld [vmem:[#allocation11 + $0x28] sm:$0xff]
        %v1624 = vld [vmem:[#allocation11 + $0x30] sm:$0xff]
        %v1625 = vld [vmem:[#allocation11 + $0x38] sm:$0xff]
        %v1626 = vld [vmem:[#allocation11 + $0x40] sm:$0xff]
        %v1627 = vld [vmem:[#allocation11 + $0x48] sm:$0xff]
        %v1628 = vld [vmem:[#allocation11 + $0x50] sm:$0xff]
        %v1629 = vld [vmem:[#allocation11 + $0x58] sm:$0xff]
        %v1630 = vld [vmem:[#allocation11 + $0x60] sm:$0xff]
        %v1631 = vld [vmem:[#allocation11 + $0x68] sm:$0xff]
        %v1632 = vld [vmem:[#allocation11 + $0x70] sm:$0xff]
        %v1633 = vld [vmem:[#allocation11 + $0x78] sm:$0xff]
        %v1634 = vld [vmem:[#allocation11 + $0x80] sm:$0xff]
        %v1635 = vld [vmem:[#allocation11 + $0x88] sm:$0xff]
        %v1636 = vld [vmem:[#allocation11 + $0x90] sm:$0xff]
        %v1637 = vld [vmem:[#allocation11 + $0x98] sm:$0xff]
        %v1638 = vld [vmem:[#allocation11 + $0xa0] sm:$0xff]
        %v1639 = vld [vmem:[#allocation11 + $0xa8] sm:$0xff]
        %v1640 = vld [vmem:[#allocation11 + $0xb0] sm:$0xff]
        %v1641 = vld [vmem:[#allocation11 + $0xb8] sm:$0xff]
        %v1642 = vld [vmem:[#allocation11 + $0xc0] sm:$0xff]
        %v1643 = vld [vmem:[#allocation11 + $0xc8] sm:$0xff]
        %v1644 = vld [vmem:[#allocation11 + $0xd0] sm:$0xff]
        %v1645 = vld [vmem:[#allocation11 + $0xd8] sm:$0xff]
        %v1646 = vld [vmem:[#allocation11 + $0xe0] sm:$0xff]
        %v1647 = vld [vmem:[#allocation11 + $0xe8] sm:$0xff]
        %v1648 = vld [vmem:[#allocation11 + $0xf0] sm:$0xff]
        %v1649 = vld [vmem:[#allocation11 + $0xf8] sm:$0xff]
        %v1650 = vld [vmem:[#allocation11 + $0x100] sm:$0xff]
        %v1651 = vld [vmem:[#allocation11 + $0x108] sm:$0xff]
        %v1652 = vld [vmem:[#allocation11 + $0x110] sm:$0xff]
        %v1653 = vld [vmem:[#allocation11 + $0x118] sm:$0xff]
        %v1654 = vld [vmem:[#allocation11 + $0x120] sm:$0xff]
        %v1655 = vld [vmem:[#allocation11 + $0x128] sm:$0xff]
        %v1656 = vld [vmem:[#allocation11 + $0x130] sm:$0xff]
        %v1657 = vld [vmem:[#allocation11 + $0x138] sm:$0xff]
        %v1658 = vld [vmem:[#allocation11 + $0x140] sm:$0xff]
        %v1659 = vld [vmem:[#allocation11 + $0x148] sm:$0xff]
        %v1660 = vld [vmem:[#allocation11 + $0x150] sm:$0xff]
        %v1661 = vld [vmem:[#allocation11 + $0x158] sm:$0xff]
        %v1662 = vld [vmem:[#allocation11 + $0x160] sm:$0xff]
        %v1663 = vld [vmem:[#allocation11 + $0x168] sm:$0xff]
        %v1664 = vld [vmem:[#allocation11 + $0x170] sm:$0xff]
        %v1665 = vld [vmem:[#allocation11 + $0x178] sm:$0xff]
        %v1666 = vld [vmem:[#allocation11 + $0x180] sm:$0xff]
        %v1667 = vld [vmem:[#allocation11 + $0x188] sm:$0xff]
        %v1668 = vld [vmem:[#allocation11 + $0x190] sm:$0xff]
        %v1669 = vld [vmem:[#allocation11 + $0x198] sm:$0xff]
        %v1670 = vld [vmem:[#allocation11 + $0x1a0] sm:$0xff]
        %v1671 = vld [vmem:[#allocation11 + $0x1a8] sm:$0xff]
        %v1672 = vld [vmem:[#allocation11 + $0x1b0] sm:$0xff]
        %v1673 = vld [vmem:[#allocation11 + $0x1b8] sm:$0xff]
        %v1674 = vld [vmem:[#allocation11 + $0x1c0] sm:$0xff]
        %v1675 = vld [vmem:[#allocation11 + $0x1c8] sm:$0xff]
        %v1676 = vld [vmem:[#allocation11 + $0x1d0] sm:$0xff]
        %v1677 = vld [vmem:[#allocation11 + $0x1d8] sm:$0xff]
        %v1678 = vld [vmem:[#allocation11 + $0x1e0] sm:$0xff]
        %v1679 = vld [vmem:[#allocation11 + $0x1e8] sm:$0xff]
        %v1680 = vld [vmem:[#allocation11 + $0x1f0] sm:$0xff]
        %v1681 = vld [vmem:[#allocation11 + $0x1f8] sm:$0xff]
        %v1682 = vld [vmem:[#allocation11 + $0x200] sm:$0xff]
        %v1683 = vld [vmem:[#allocation11 + $0x208] sm:$0xff]
        %v1684 = vld [vmem:[#allocation11 + $0x210] sm:$0xff]
        %v1685 = vld [vmem:[#allocation11 + $0x218] sm:$0xff]
        %v1686 = vld [vmem:[#allocation11 + $0x220] sm:$0xff]
        %v1687 = vld [vmem:[#allocation11 + $0x228] sm:$0xff]
        %v1688 = vld [vmem:[#allocation11 + $0x230] sm:$0xff]
        %v1689 = vld [vmem:[#allocation11 + $0x238] sm:$0xff]
        %v1690 = vld [vmem:[#allocation11 + $0x240] sm:$0xff]
        %v1691 = vld [vmem:[#allocation11 + $0x248] sm:$0xff]
        %v1692 = vld [vmem:[#allocation11 + $0x250] sm:$0xff]
        %v1693 = vld [vmem:[#allocation11 + $0x258] sm:$0xff]
        %v1694 = vld [vmem:[#allocation11 + $0x260] sm:$0xff]
        %v1695 = vld [vmem:[#allocation11 + $0x268] sm:$0xff]
        %v1696 = vld [vmem:[#allocation11 + $0x270] sm:$0xff]
        %v1697 = vld [vmem:[#allocation11 + $0x278] sm:$0xff]
        %v1698 = vld [vmem:[#allocation11 + $0x280] sm:$0xff]
        %v1699 = vld [vmem:[#allocation11 + $0x288] sm:$0xff]
        %v1700 = vld [vmem:[#allocation11 + $0x290] sm:$0xff]
        %v1701 = vld [vmem:[#allocation11 + $0x298] sm:$0xff]
        %v1702 = vld [vmem:[#allocation11 + $0x2a0] sm:$0xff]
        %v1703 = vld [vmem:[#allocation11 + $0x2a8] sm:$0xff]
        %v1704 = vld [vmem:[#allocation11 + $0x2b0] sm:$0xff]
        %v1705 = vld [vmem:[#allocation11 + $0x2b8] sm:$0xff]
        %v1706 = vld [vmem:[#allocation11 + $0x2c0] sm:$0xff]
        %v1707 = vld [vmem:[#allocation11 + $0x2c8] sm:$0xff]
        %v1708 = vld [vmem:[#allocation11 + $0x2d0] sm:$0xff]
        %v1709 = vld [vmem:[#allocation11 + $0x2d8] sm:$0xff]
        %v1710 = vld [vmem:[#allocation11 + $0x2e0] sm:$0xff]
        %v1711 = vld [vmem:[#allocation11 + $0x2e8] sm:$0xff]
        %v1712 = vld [vmem:[#allocation11 + $0x2f0] sm:$0xff]
        %v1713 = vld [vmem:[#allocation11 + $0x2f8] sm:$0xff]
        %v1714 = vld [vmem:[#allocation11 + $0x300] sm:$0xff]
        %v1715 = vld [vmem:[#allocation11 + $0x308] sm:$0xff]
        %v1716 = vld [vmem:[#allocation11 + $0x310] sm:$0xff]
        %v1717 = vld [vmem:[#allocation11 + $0x318] sm:$0xff]
        %v1718 = vld [vmem:[#allocation11 + $0x320] sm:$0xff]
        %v1719 = vld [vmem:[#allocation11 + $0x328] sm:$0xff]
        %v1720 = vld [vmem:[#allocation11 + $0x330] sm:$0xff]
        %v1721 = vld [vmem:[#allocation11 + $0x338] sm:$0xff]
        %v1722 = vld [vmem:[#allocation11 + $0x340] sm:$0xff]
        %v1723 = vld [vmem:[#allocation11 + $0x348] sm:$0xff]
        %v1724 = vld [vmem:[#allocation11 + $0x350] sm:$0xff]
        %v1725 = vld [vmem:[#allocation11 + $0x358] sm:$0xff]
        %v1726 = vld [vmem:[#allocation11 + $0x360] sm:$0xff]
        %v1727 = vld [vmem:[#allocation11 + $0x368] sm:$0xff]
        %v1728 = vld [vmem:[#allocation11 + $0x370] sm:$0xff]
        %v1729 = vld [vmem:[#allocation11 + $0x378] sm:$0xff]
        %v1730 = vld [vmem:[#allocation11 + $0x380] sm:$0xff]
        %v1731 = vld [vmem:[#allocation11 + $0x388] sm:$0xff]
        %v1732 = vld [vmem:[#allocation11 + $0x390] sm:$0xff]
        %v1733 = vld [vmem:[#allocation11 + $0x398] sm:$0xff]
        %v1734 = vld [vmem:[#allocation11 + $0x3a0] sm:$0xff]
        %v1735 = vld [vmem:[#allocation11 + $0x3a8] sm:$0xff]
        %v1736 = vld [vmem:[#allocation11 + $0x3b0] sm:$0xff]
        %v1737 = vld [vmem:[#allocation11 + $0x3b8] sm:$0xff]
        %v1738 = vld [vmem:[#allocation11 + $0x3c0] sm:$0xff]
        %v1739 = vld [vmem:[#allocation11 + $0x3c8] sm:$0xff]
        %v1740 = vld [vmem:[#allocation11 + $0x3d0] sm:$0xff]
        %v1741 = vld [vmem:[#allocation11 + $0x3d8] sm:$0xff]
        %v1742 = vld [vmem:[#allocation11 + $0x3e0] sm:$0xff]
        %v1743 = vld [vmem:[#allocation11 + $0x3e8] sm:$0xff]
        %v1744 = vld [vmem:[#allocation11 + $0x3f0] sm:$0xff]
        %v1745 = vld [vmem:[#allocation11 + $0x3f8] sm:$0xff]
        %v1746 = vld [vmem:[%s11] sm:$0xf]
        %v1748 = vperm.slane %v1746, 0
        %v1749 = vperm.slane %v1746, 1
        %v1750 = vperm.slane %v1746, 2
        %v1751 = vperm.slane %v1746, 3
        %v1764 = vsel %vm1021, %v1582, %v1568
        %v1765 = vsel %vm1009, %v1596, %v1764
        %v1766 = vsel %vm1011, %v1610, %v1765
        %v1767 = vsel %vm1021, %v1589, %v1575
        %v1768 = vsel %vm1009, %v1603, %v1767
        %v1769 = vsel %vm1011, %v1617, %v1768
        %1772 = vmatpush.msra.mxu0 %v1678
        %1773 = vmatpush.msra.mxu0 %v1674
        %1774 = vmatpush.msra.mxu0 %v1670
        %1775 = vmatpush.msra.mxu0 %v1666
        %1776 = vmatpush.msra.mxu0 %v1662
        %1777 = vmatpush.msra.mxu0 %v1658
        %1778 = vmatpush.msra.mxu0 %v1654
        %1779 = vmatpush.msra.mxu0 %v1650
        %1780 = vmatpush.msra.mxu0 %v1646
        %1781 = vmatpush.msra.mxu0 %v1642
        %1782 = vmatpush.msra.mxu0 %v1638
        %1783 = vmatpush.msra.mxu0 %v1634
        %1784 = vmatpush.msra.mxu0 %v1630
        %1785 = vmatpush.msra.mxu0 %v1626
        %1786 = vmatpush.msra.mxu0 %v1622
        %1787 = vmatpush.msra.mxu0 %v1618
        %1788 = vmatmul.f32.gmra.mxu0 %v1766
        %v1789 = vpop.f32.mrf.mxu0
        %v1790 = vadd.f32 %v1748, %v1789
        %1791 = vdwg.mxu0
        %1792 = vmatpush.msra.mxu0 %v1742
        %1793 = vmatpush.msra.mxu0 %v1738
        %1794 = vmatpush.msra.mxu0 %v1734
        %1795 = vmatpush.msra.mxu0 %v1730
        %1796 = vmatpush.msra.mxu0 %v1726
        %1797 = vmatpush.msra.mxu0 %v1722
        %1798 = vmatpush.msra.mxu0 %v1718
        %1799 = vmatpush.msra.mxu0 %v1714
        %1800 = vmatpush.msra.mxu0 %v1710
        %1801 = vmatpush.msra.mxu0 %v1706
        %1802 = vmatpush.msra.mxu0 %v1702
        %1803 = vmatpush.msra.mxu0 %v1698
        %1804 = vmatpush.msra.mxu0 %v1694
        %1805 = vmatpush.msra.mxu0 %v1690
        %1806 = vmatpush.msra.mxu0 %v1686
        %1807 = vmatpush.msra.mxu0 %v1682
        %1808 = vmatmul.f32.gmra.mxu0 %v1769
        %v1809 = vpop.f32.mrf.mxu0
        %v1810 = vadd.f32 %v1790, %v1809
        %1811 = vdwg.mxu0
        %1812 = vmatpush.msra.mxu0 %v1679
        %1813 = vmatpush.msra.mxu0 %v1675
        %1814 = vmatpush.msra.mxu0 %v1671
        %1815 = vmatpush.msra.mxu0 %v1667
        %1816 = vmatpush.msra.mxu0 %v1663
        %1817 = vmatpush.msra.mxu0 %v1659
        %1818 = vmatpush.msra.mxu0 %v1655
        %1819 = vmatpush.msra.mxu0 %v1651
        %1820 = vmatpush.msra.mxu0 %v1647
        %1821 = vmatpush.msra.mxu0 %v1643
        %1822 = vmatpush.msra.mxu0 %v1639
        %1823 = vmatpush.msra.mxu0 %v1635
        %1824 = vmatpush.msra.mxu0 %v1631
        %1825 = vmatpush.msra.mxu0 %v1627
        %1826 = vmatpush.msra.mxu0 %v1623
        %1827 = vmatpush.msra.mxu0 %v1619
        %1828 = vmatmul.f32.gmra.mxu0 %v1766
        %v1829 = vpop.f32.mrf.mxu0
        %v1830 = vadd.f32 %v1749, %v1829
        %1831 = vdwg.mxu0
        %1832 = vmatpush.msra.mxu0 %v1743
        %1833 = vmatpush.msra.mxu0 %v1739
        %1834 = vmatpush.msra.mxu0 %v1735
        %1835 = vmatpush.msra.mxu0 %v1731
        %1836 = vmatpush.msra.mxu0 %v1727
        %1837 = vmatpush.msra.mxu0 %v1723
        %1838 = vmatpush.msra.mxu0 %v1719
        %1839 = vmatpush.msra.mxu0 %v1715
        %1840 = vmatpush.msra.mxu0 %v1711
        %1841 = vmatpush.msra.mxu0 %v1707
        %1842 = vmatpush.msra.mxu0 %v1703
        %1843 = vmatpush.msra.mxu0 %v1699
        %1844 = vmatpush.msra.mxu0 %v1695
        %1845 = vmatpush.msra.mxu0 %v1691
        %1846 = vmatpush.msra.mxu0 %v1687
        %1847 = vmatpush.msra.mxu0 %v1683
        %1848 = vmatmul.f32.gmra.mxu0 %v1769
        %v1849 = vpop.f32.mrf.mxu0
        %v1850 = vadd.f32 %v1830, %v1849
        %1851 = vdwg.mxu0
        %1852 = vmatpush.msra.mxu0 %v1680
        %1853 = vmatpush.msra.mxu0 %v1676
        %1854 = vmatpush.msra.mxu0 %v1672
        %1855 = vmatpush.msra.mxu0 %v1668
        %1856 = vmatpush.msra.mxu0 %v1664
        %1857 = vmatpush.msra.mxu0 %v1660
        %1858 = vmatpush.msra.mxu0 %v1656
        %1859 = vmatpush.msra.mxu0 %v1652
        %1860 = vmatpush.msra.mxu0 %v1648
        %1861 = vmatpush.msra.mxu0 %v1644
        %1862 = vmatpush.msra.mxu0 %v1640
        %1863 = vmatpush.msra.mxu0 %v1636
        %1864 = vmatpush.msra.mxu0 %v1632
        %1865 = vmatpush.msra.mxu0 %v1628
        %1866 = vmatpush.msra.mxu0 %v1624
        %1867 = vmatpush.msra.mxu0 %v1620
        %1868 = vmatmul.f32.gmra.mxu0 %v1766
        %v1869 = vpop.f32.mrf.mxu0
        %v1870 = vadd.f32 %v1750, %v1869
        %1871 = vdwg.mxu0
        %1872 = vmatpush.msra.mxu0 %v1744
        %1873 = vmatpush.msra.mxu0 %v1740
        %1874 = vmatpush.msra.mxu0 %v1736
        %1875 = vmatpush.msra.mxu0 %v1732
        %1876 = vmatpush.msra.mxu0 %v1728
        %1877 = vmatpush.msra.mxu0 %v1724
        %1878 = vmatpush.msra.mxu0 %v1720
        %1879 = vmatpush.msra.mxu0 %v1716
        %1880 = vmatpush.msra.mxu0 %v1712
        %1881 = vmatpush.msra.mxu0 %v1708
        %1882 = vmatpush.msra.mxu0 %v1704
        %1883 = vmatpush.msra.mxu0 %v1700
        %1884 = vmatpush.msra.mxu0 %v1696
        %1885 = vmatpush.msra.mxu0 %v1692
        %1886 = vmatpush.msra.mxu0 %v1688
        %1887 = vmatpush.msra.mxu0 %v1684
        %1888 = vmatmul.f32.gmra.mxu0 %v1769
        %v1889 = vpop.f32.mrf.mxu0
        %v1890 = vadd.f32 %v1870, %v1889
        %1891 = vdwg.mxu0
        %1892 = vmatpush.msra.mxu0 %v1681
        %1893 = vmatpush.msra.mxu0 %v1677
        %1894 = vmatpush.msra.mxu0 %v1673
        %1895 = vmatpush.msra.mxu0 %v1669
        %1896 = vmatpush.msra.mxu0 %v1665
        %1897 = vmatpush.msra.mxu0 %v1661
        %1898 = vmatpush.msra.mxu0 %v1657
        %1899 = vmatpush.msra.mxu0 %v1653
        %1900 = vmatpush.msra.mxu0 %v1649
        %1901 = vmatpush.msra.mxu0 %v1645
        %1902 = vmatpush.msra.mxu0 %v1641
        %1903 = vmatpush.msra.mxu0 %v1637
        %1904 = vmatpush.msra.mxu0 %v1633
        %1905 = vmatpush.msra.mxu0 %v1629
        %1906 = vmatpush.msra.mxu0 %v1625
        %1907 = vmatpush.msra.mxu0 %v1621
        %1908 = vmatmul.f32.gmra.mxu0 %v1766
        %v1909 = vpop.f32.mrf.mxu0
        %v1910 = vadd.f32 %v1751, %v1909
        %1911 = vdwg.mxu0
        %1912 = vmatpush.msra.mxu0 %v1745
        %1913 = vmatpush.msra.mxu0 %v1741
        %1914 = vmatpush.msra.mxu0 %v1737
        %1915 = vmatpush.msra.mxu0 %v1733
        %1916 = vmatpush.msra.mxu0 %v1729
        %1917 = vmatpush.msra.mxu0 %v1725
        %1918 = vmatpush.msra.mxu0 %v1721
        %1919 = vmatpush.msra.mxu0 %v1717
        %1920 = vmatpush.msra.mxu0 %v1713
        %1921 = vmatpush.msra.mxu0 %v1709
        %1922 = vmatpush.msra.mxu0 %v1705
        %1923 = vmatpush.msra.mxu0 %v1701
        %1924 = vmatpush.msra.mxu0 %v1697
        %1925 = vmatpush.msra.mxu0 %v1693
        %1926 = vmatpush.msra.mxu0 %v1689
        %1927 = vmatpush.msra.mxu0 %v1685
        %1928 = vmatmul.f32.gmra.mxu0 %v1769
        %v1929 = vpop.f32.mrf.mxu0
        %v1930 = vadd.f32 %v1910, %v1929
        %1931 = vdwg.mxu0
        %v1936 = vrot.slane %v1850, 4
        %v1937 = vrot.slane %v1930, 4
        %vm1938 = vcmask 1043456
        %v1939 = vsel %vm1938, %v1810, %v1936
        %v1940 = vsel %vm1938, %v1890, %v1937
        %1943 = vst [vmem:[#allocation2] sm:$0xff] %v1939
        %1944 = vst [vmem:[#allocation2 + $0x8] sm:$0xff] %v1940
        %v1945 = vld [vmem:[#allocation12] sm:$0xff]
        %v1946 = vld [vmem:[#allocation12 + $0x8] sm:$0xff]
        %v1947 = vld [vmem:[#allocation12 + $0x10] sm:$0xff]
        %v1948 = vld [vmem:[#allocation12 + $0x18] sm:$0xff]
        %v1949 = vld [vmem:[#allocation12 + $0x20] sm:$0xff]
        %v1950 = vld [vmem:[#allocation12 + $0x28] sm:$0xff]
        %v1951 = vld [vmem:[#allocation12 + $0x30] sm:$0xff]
        %v1952 = vld [vmem:[#allocation12 + $0x38] sm:$0xff]
        %v1953 = vld [vmem:[#allocation12 + $0x40] sm:$0xff]
        %v1954 = vld [vmem:[#allocation12 + $0x48] sm:$0xff]
        %v1955 = vld [vmem:[#allocation12 + $0x50] sm:$0xff]
        %v1956 = vld [vmem:[#allocation12 + $0x58] sm:$0xff]
        %v1957 = vld [vmem:[#allocation12 + $0x60] sm:$0xff]
        %v1958 = vld [vmem:[#allocation12 + $0x68] sm:$0xff]
        %v1959 = vld [vmem:[#allocation12 + $0x70] sm:$0xff]
        %v1960 = vld [vmem:[#allocation12 + $0x78] sm:$0xff]
        %v1961 = vld [vmem:[#allocation12 + $0x80] sm:$0xff]
        %v1962 = vld [vmem:[#allocation12 + $0x88] sm:$0xff]
        %v1963 = vld [vmem:[#allocation12 + $0x90] sm:$0xff]
        %v1964 = vld [vmem:[#allocation12 + $0x98] sm:$0xff]
        %v1965 = vld [vmem:[#allocation12 + $0xa0] sm:$0xff]
        %v1966 = vld [vmem:[#allocation12 + $0xa8] sm:$0xff]
        %v1967 = vld [vmem:[#allocation12 + $0xb0] sm:$0xff]
        %v1968 = vld [vmem:[#allocation12 + $0xb8] sm:$0xff]
        %v1969 = vld [vmem:[#allocation12 + $0xc0] sm:$0xff]
        %v1970 = vld [vmem:[#allocation12 + $0xc8] sm:$0xff]
        %v1971 = vld [vmem:[#allocation12 + $0xd0] sm:$0xff]
        %v1972 = vld [vmem:[#allocation12 + $0xd8] sm:$0xff]
        %v1973 = vld [vmem:[#allocation12 + $0xe0] sm:$0xff]
        %v1974 = vld [vmem:[#allocation12 + $0xe8] sm:$0xff]
        %v1975 = vld [vmem:[#allocation12 + $0xf0] sm:$0xff]
        %v1976 = vld [vmem:[#allocation12 + $0xf8] sm:$0xff]
        %v1977 = vld [vmem:[#allocation12 + $0x100] sm:$0xff]
        %v1978 = vld [vmem:[#allocation12 + $0x108] sm:$0xff]
        %v1979 = vld [vmem:[#allocation12 + $0x110] sm:$0xff]
        %v1980 = vld [vmem:[#allocation12 + $0x118] sm:$0xff]
        %v1981 = vld [vmem:[#allocation12 + $0x120] sm:$0xff]
        %v1982 = vld [vmem:[#allocation12 + $0x128] sm:$0xff]
        %v1983 = vld [vmem:[#allocation12 + $0x130] sm:$0xff]
        %v1984 = vld [vmem:[#allocation12 + $0x138] sm:$0xff]
        %v1985 = vld [vmem:[#allocation12 + $0x140] sm:$0xff]
        %v1986 = vld [vmem:[#allocation12 + $0x148] sm:$0xff]
        %v1987 = vld [vmem:[#allocation12 + $0x150] sm:$0xff]
        %v1988 = vld [vmem:[#allocation12 + $0x158] sm:$0xff]
        %v1989 = vld [vmem:[#allocation12 + $0x160] sm:$0xff]
        %v1990 = vld [vmem:[#allocation12 + $0x168] sm:$0xff]
        %v1991 = vld [vmem:[#allocation12 + $0x170] sm:$0xff]
        %v1992 = vld [vmem:[#allocation12 + $0x178] sm:$0xff]
        %v1993 = vld [vmem:[#allocation12 + $0x180] sm:$0xff]
        %v1994 = vld [vmem:[#allocation12 + $0x188] sm:$0xff]
        %v1995 = vld [vmem:[#allocation12 + $0x190] sm:$0xff]
        %v1996 = vld [vmem:[#allocation12 + $0x198] sm:$0xff]
        %v1997 = vld [vmem:[#allocation12 + $0x1a0] sm:$0xff]
        %v1998 = vld [vmem:[#allocation12 + $0x1a8] sm:$0xff]
        %v1999 = vld [vmem:[#allocation12 + $0x1b0] sm:$0xff]
        %v2000 = vld [vmem:[#allocation12 + $0x1b8] sm:$0xff]
        %v2001 = vld [vmem:[#allocation12 + $0x1c0] sm:$0xff]
        %v2002 = vld [vmem:[#allocation12 + $0x1c8] sm:$0xff]
        %v2003 = vld [vmem:[#allocation12 + $0x1d0] sm:$0xff]
        %v2004 = vld [vmem:[#allocation12 + $0x1d8] sm:$0xff]
        %v2005 = vld [vmem:[#allocation12 + $0x1e0] sm:$0xff]
        %v2006 = vld [vmem:[#allocation12 + $0x1e8] sm:$0xff]
        %v2007 = vld [vmem:[#allocation12 + $0x1f0] sm:$0xff]
        %v2008 = vld [vmem:[#allocation12 + $0x1f8] sm:$0xff]
        %v2009 = vld [vmem:[#allocation12 + $0x200] sm:$0xff]
        %v2010 = vld [vmem:[#allocation12 + $0x208] sm:$0xff]
        %v2011 = vld [vmem:[#allocation12 + $0x210] sm:$0xff]
        %v2012 = vld [vmem:[#allocation12 + $0x218] sm:$0xff]
        %v2013 = vld [vmem:[#allocation12 + $0x220] sm:$0xff]
        %v2014 = vld [vmem:[#allocation12 + $0x228] sm:$0xff]
        %v2015 = vld [vmem:[#allocation12 + $0x230] sm:$0xff]
        %v2016 = vld [vmem:[#allocation12 + $0x238] sm:$0xff]
        %v2017 = vld [vmem:[#allocation12 + $0x240] sm:$0xff]
        %v2018 = vld [vmem:[#allocation12 + $0x248] sm:$0xff]
        %v2019 = vld [vmem:[#allocation12 + $0x250] sm:$0xff]
        %v2020 = vld [vmem:[#allocation12 + $0x258] sm:$0xff]
        %v2021 = vld [vmem:[#allocation12 + $0x260] sm:$0xff]
        %v2022 = vld [vmem:[#allocation12 + $0x268] sm:$0xff]
        %v2023 = vld [vmem:[#allocation12 + $0x270] sm:$0xff]
        %v2024 = vld [vmem:[#allocation12 + $0x278] sm:$0xff]
        %v2025 = vld [vmem:[#allocation12 + $0x280] sm:$0xff]
        %v2026 = vld [vmem:[#allocation12 + $0x288] sm:$0xff]
        %v2027 = vld [vmem:[#allocation12 + $0x290] sm:$0xff]
        %v2028 = vld [vmem:[#allocation12 + $0x298] sm:$0xff]
        %v2029 = vld [vmem:[#allocation12 + $0x2a0] sm:$0xff]
        %v2030 = vld [vmem:[#allocation12 + $0x2a8] sm:$0xff]
        %v2031 = vld [vmem:[#allocation12 + $0x2b0] sm:$0xff]
        %v2032 = vld [vmem:[#allocation12 + $0x2b8] sm:$0xff]
        %v2033 = vld [vmem:[#allocation12 + $0x2c0] sm:$0xff]
        %v2034 = vld [vmem:[#allocation12 + $0x2c8] sm:$0xff]
        %v2035 = vld [vmem:[#allocation12 + $0x2d0] sm:$0xff]
        %v2036 = vld [vmem:[#allocation12 + $0x2d8] sm:$0xff]
        %v2037 = vld [vmem:[#allocation12 + $0x2e0] sm:$0xff]
        %v2038 = vld [vmem:[#allocation12 + $0x2e8] sm:$0xff]
        %v2039 = vld [vmem:[#allocation12 + $0x2f0] sm:$0xff]
        %v2040 = vld [vmem:[#allocation12 + $0x2f8] sm:$0xff]
        %v2041 = vld [vmem:[#allocation12 + $0x300] sm:$0xff]
        %v2042 = vld [vmem:[#allocation12 + $0x308] sm:$0xff]
        %v2043 = vld [vmem:[#allocation12 + $0x310] sm:$0xff]
        %v2044 = vld [vmem:[#allocation12 + $0x318] sm:$0xff]
        %v2045 = vld [vmem:[#allocation12 + $0x320] sm:$0xff]
        %v2046 = vld [vmem:[#allocation12 + $0x328] sm:$0xff]
        %v2047 = vld [vmem:[#allocation12 + $0x330] sm:$0xff]
        %v2048 = vld [vmem:[#allocation12 + $0x338] sm:$0xff]
        %v2049 = vld [vmem:[#allocation12 + $0x340] sm:$0xff]
        %v2050 = vld [vmem:[#allocation12 + $0x348] sm:$0xff]
        %v2051 = vld [vmem:[#allocation12 + $0x350] sm:$0xff]
        %v2052 = vld [vmem:[#allocation12 + $0x358] sm:$0xff]
        %v2053 = vld [vmem:[#allocation12 + $0x360] sm:$0xff]
        %v2054 = vld [vmem:[#allocation12 + $0x368] sm:$0xff]
        %v2055 = vld [vmem:[#allocation12 + $0x370] sm:$0xff]
        %v2056 = vld [vmem:[#allocation12 + $0x378] sm:$0xff]
        %v2057 = vld [vmem:[#allocation12 + $0x380] sm:$0xff]
        %v2058 = vld [vmem:[#allocation12 + $0x388] sm:$0xff]
        %v2059 = vld [vmem:[#allocation12 + $0x390] sm:$0xff]
        %v2060 = vld [vmem:[#allocation12 + $0x398] sm:$0xff]
        %v2061 = vld [vmem:[#allocation12 + $0x3a0] sm:$0xff]
        %v2062 = vld [vmem:[#allocation12 + $0x3a8] sm:$0xff]
        %v2063 = vld [vmem:[#allocation12 + $0x3b0] sm:$0xff]
        %v2064 = vld [vmem:[#allocation12 + $0x3b8] sm:$0xff]
        %v2065 = vld [vmem:[#allocation12 + $0x3c0] sm:$0xff]
        %v2066 = vld [vmem:[#allocation12 + $0x3c8] sm:$0xff]
        %v2067 = vld [vmem:[#allocation12 + $0x3d0] sm:$0xff]
        %v2068 = vld [vmem:[#allocation12 + $0x3d8] sm:$0xff]
        %v2069 = vld [vmem:[#allocation12 + $0x3e0] sm:$0xff]
        %v2070 = vld [vmem:[#allocation12 + $0x3e8] sm:$0xff]
        %v2071 = vld [vmem:[#allocation12 + $0x3f0] sm:$0xff]
        %v2072 = vld [vmem:[#allocation12 + $0x3f8] sm:$0xff]
        %v2073 = vld [vmem:[#allocation12 + $0x400] sm:$0xff]
        %v2074 = vld [vmem:[#allocation12 + $0x408] sm:$0xff]
        %v2075 = vld [vmem:[#allocation12 + $0x410] sm:$0xff]
        %v2076 = vld [vmem:[#allocation12 + $0x418] sm:$0xff]
        %v2077 = vld [vmem:[#allocation12 + $0x420] sm:$0xff]
        %v2078 = vld [vmem:[#allocation12 + $0x428] sm:$0xff]
        %v2079 = vld [vmem:[#allocation12 + $0x430] sm:$0xff]
        %v2080 = vld [vmem:[#allocation12 + $0x438] sm:$0xff]
        %v2081 = vld [vmem:[#allocation12 + $0x440] sm:$0xff]
        %v2082 = vld [vmem:[#allocation12 + $0x448] sm:$0xff]
        %v2083 = vld [vmem:[#allocation12 + $0x450] sm:$0xff]
        %v2084 = vld [vmem:[#allocation12 + $0x458] sm:$0xff]
        %v2085 = vld [vmem:[#allocation12 + $0x460] sm:$0xff]
        %v2086 = vld [vmem:[#allocation12 + $0x468] sm:$0xff]
        %v2087 = vld [vmem:[#allocation12 + $0x470] sm:$0xff]
        %v2088 = vld [vmem:[#allocation12 + $0x478] sm:$0xff]
        %v2090 = vsel %vm1063, 0.0, 0
        %2092 = vmatpush.msra.mxu0 %v2035
        %2093 = vmatpush.msra.mxu0 %v2029
        %2094 = vmatpush.msra.mxu0 %v2023
        %2095 = vmatpush.msra.mxu0 %v2017
        %2096 = vmatpush.msra.mxu0 %v2011
        %2097 = vmatpush.msra.mxu0 %v2005
        %2098 = vmatpush.msra.mxu0 %v1999
        %2099 = vmatpush.msra.mxu0 %v1993
        %2100 = vmatpush.msra.mxu0 %v1987
        %2101 = vmatpush.msra.mxu0 %v1981
        %2102 = vmatpush.msra.mxu0 %v1975
        %2103 = vmatpush.msra.mxu0 %v1969
        %2104 = vmatpush.msra.mxu0 %v1963
        %2105 = vmatpush.msra.mxu0 %v1957
        %2106 = vmatpush.msra.mxu0 %v1951
        %2107 = vmatpush.msra.mxu0 %v1945
        %2108 = vmatmul.f32.gmra.mxu0 0.0
        %v2109 = vpop.f32.mrf.mxu0
        %v2110 = vadd.f32 0.0, %v2109
        %2111 = vdwg.mxu0
        %2112 = vmatpush.msra.mxu0 0.0
        %2113 = vmatpush.msra.mxu0 0.0
        %2114 = vmatpush.msra.mxu0 0.0
        %2115 = vmatpush.msra.mxu0 0.0
        %2116 = vmatpush.msra.mxu0 0.0
        %2117 = vmatpush.msra.mxu0 0.0
        %2118 = vmatpush.msra.mxu0 0.0
        %2119 = vmatpush.msra.mxu0 0.0
        %2120 = vmatpush.msra.mxu0 %v2083
        %2121 = vmatpush.msra.mxu0 %v2077
        %2122 = vmatpush.msra.mxu0 %v2071
        %2123 = vmatpush.msra.mxu0 %v2065
        %2124 = vmatpush.msra.mxu0 %v2059
        %2125 = vmatpush.msra.mxu0 %v2053
        %2126 = vmatpush.msra.mxu0 %v2047
        %2127 = vmatpush.msra.mxu0 %v2041
        %2128 = vmatmul.f32.gmra.mxu0 %v2090
        %v2129 = vpop.f32.mrf.mxu0
        %v2130 = vadd.f32 %v2110, %v2129
        %2131 = vdwg.mxu0
        %2132 = vmatpush.msra.mxu0 %v2036
        %2133 = vmatpush.msra.mxu0 %v2030
        %2134 = vmatpush.msra.mxu0 %v2024
        %2135 = vmatpush.msra.mxu0 %v2018
        %2136 = vmatpush.msra.mxu0 %v2012
        %2137 = vmatpush.msra.mxu0 %v2006
        %2138 = vmatpush.msra.mxu0 %v2000
        %2139 = vmatpush.msra.mxu0 %v1994
        %2140 = vmatpush.msra.mxu0 %v1988
        %2141 = vmatpush.msra.mxu0 %v1982
        %2142 = vmatpush.msra.mxu0 %v1976
        %2143 = vmatpush.msra.mxu0 %v1970
        %2144 = vmatpush.msra.mxu0 %v1964
        %2145 = vmatpush.msra.mxu0 %v1958
        %2146 = vmatpush.msra.mxu0 %v1952
        %2147 = vmatpush.msra.mxu0 %v1946
        %2148 = vmatmul.f32.gmra.mxu0 0.0
        %v2149 = vpop.f32.mrf.mxu0
        %v2150 = vadd.f32 0.0, %v2149
        %2151 = vdwg.mxu0
        %2152 = vmatpush.msra.mxu0 0.0
        %2153 = vmatpush.msra.mxu0 0.0
        %2154 = vmatpush.msra.mxu0 0.0
        %2155 = vmatpush.msra.mxu0 0.0
        %2156 = vmatpush.msra.mxu0 0.0
        %2157 = vmatpush.msra.mxu0 0.0
        %2158 = vmatpush.msra.mxu0 0.0
        %2159 = vmatpush.msra.mxu0 0.0
        %2160 = vmatpush.msra.mxu0 %v2084
        %2161 = vmatpush.msra.mxu0 %v2078
        %2162 = vmatpush.msra.mxu0 %v2072
        %2163 = vmatpush.msra.mxu0 %v2066
        %2164 = vmatpush.msra.mxu0 %v2060
        %2165 = vmatpush.msra.mxu0 %v2054
        %2166 = vmatpush.msra.mxu0 %v2048
        %2167 = vmatpush.msra.mxu0 %v2042
        %2168 = vmatmul.f32.gmra.mxu0 %v2090
        %v2169 = vpop.f32.mrf.mxu0
        %v2170 = vadd.f32 %v2150, %v2169
        %2171 = vdwg.mxu0
        %2172 = vmatpush.msra.mxu0 %v2037
        %2173 = vmatpush.msra.mxu0 %v2031
        %2174 = vmatpush.msra.mxu0 %v2025
        %2175 = vmatpush.msra.mxu0 %v2019
        %2176 = vmatpush.msra.mxu0 %v2013
        %2177 = vmatpush.msra.mxu0 %v2007
        %2178 = vmatpush.msra.mxu0 %v2001
        %2179 = vmatpush.msra.mxu0 %v1995
        %2180 = vmatpush.msra.mxu0 %v1989
        %2181 = vmatpush.msra.mxu0 %v1983
        %2182 = vmatpush.msra.mxu0 %v1977
        %2183 = vmatpush.msra.mxu0 %v1971
        %2184 = vmatpush.msra.mxu0 %v1965
        %2185 = vmatpush.msra.mxu0 %v1959
        %2186 = vmatpush.msra.mxu0 %v1953
        %2187 = vmatpush.msra.mxu0 %v1947
        %2188 = vmatmul.f32.gmra.mxu0 0.0
        %v2189 = vpop.f32.mrf.mxu0
        %v2190 = vadd.f32 0.0, %v2189
        %2191 = vdwg.mxu0
        %2192 = vmatpush.msra.mxu0 0.0
        %2193 = vmatpush.msra.mxu0 0.0
        %2194 = vmatpush.msra.mxu0 0.0
        %2195 = vmatpush.msra.mxu0 0.0
        %2196 = vmatpush.msra.mxu0 0.0
        %2197 = vmatpush.msra.mxu0 0.0
        %2198 = vmatpush.msra.mxu0 0.0
        %2199 = vmatpush.msra.mxu0 0.0
        %2200 = vmatpush.msra.mxu0 %v2085
        %2201 = vmatpush.msra.mxu0 %v2079
        %2202 = vmatpush.msra.mxu0 %v2073
        %2203 = vmatpush.msra.mxu0 %v2067
        %2204 = vmatpush.msra.mxu0 %v2061
        %2205 = vmatpush.msra.mxu0 %v2055
        %2206 = vmatpush.msra.mxu0 %v2049
        %2207 = vmatpush.msra.mxu0 %v2043
        %2208 = vmatmul.f32.gmra.mxu0 %v2090
        %v2209 = vpop.f32.mrf.mxu0
        %v2210 = vadd.f32 %v2190, %v2209
        %2211 = vdwg.mxu0
        %2212 = vmatpush.msra.mxu0 %v2038
        %2213 = vmatpush.msra.mxu0 %v2032
        %2214 = vmatpush.msra.mxu0 %v2026
        %2215 = vmatpush.msra.mxu0 %v2020
        %2216 = vmatpush.msra.mxu0 %v2014
        %2217 = vmatpush.msra.mxu0 %v2008
        %2218 = vmatpush.msra.mxu0 %v2002
        %2219 = vmatpush.msra.mxu0 %v1996
        %2220 = vmatpush.msra.mxu0 %v1990
        %2221 = vmatpush.msra.mxu0 %v1984
        %2222 = vmatpush.msra.mxu0 %v1978
        %2223 = vmatpush.msra.mxu0 %v1972
        %2224 = vmatpush.msra.mxu0 %v1966
        %2225 = vmatpush.msra.mxu0 %v1960
        %2226 = vmatpush.msra.mxu0 %v1954
        %2227 = vmatpush.msra.mxu0 %v1948
        %2228 = vmatmul.f32.gmra.mxu0 0.0
        %v2229 = vpop.f32.mrf.mxu0
        %v2230 = vadd.f32 0.0, %v2229
        %2231 = vdwg.mxu0
        %2232 = vmatpush.msra.mxu0 0.0
        %2233 = vmatpush.msra.mxu0 0.0
        %2234 = vmatpush.msra.mxu0 0.0
        %2235 = vmatpush.msra.mxu0 0.0
        %2236 = vmatpush.msra.mxu0 0.0
        %2237 = vmatpush.msra.mxu0 0.0
        %2238 = vmatpush.msra.mxu0 0.0
        %2239 = vmatpush.msra.mxu0 0.0
        %2240 = vmatpush.msra.mxu0 %v2086
        %2241 = vmatpush.msra.mxu0 %v2080
        %2242 = vmatpush.msra.mxu0 %v2074
        %2243 = vmatpush.msra.mxu0 %v2068
        %2244 = vmatpush.msra.mxu0 %v2062
        %2245 = vmatpush.msra.mxu0 %v2056
        %2246 = vmatpush.msra.mxu0 %v2050
        %2247 = vmatpush.msra.mxu0 %v2044
        %2248 = vmatmul.f32.gmra.mxu0 %v2090
        %v2249 = vpop.f32.mrf.mxu0
        %v2250 = vadd.f32 %v2230, %v2249
        %2251 = vdwg.mxu0
        %2252 = vmatpush.msra.mxu0 %v2039
        %2253 = vmatpush.msra.mxu0 %v2033
        %2254 = vmatpush.msra.mxu0 %v2027
        %2255 = vmatpush.msra.mxu0 %v2021
        %2256 = vmatpush.msra.mxu0 %v2015
        %2257 = vmatpush.msra.mxu0 %v2009
        %2258 = vmatpush.msra.mxu0 %v2003
        %2259 = vmatpush.msra.mxu0 %v1997
        %2260 = vmatpush.msra.mxu0 %v1991
        %2261 = vmatpush.msra.mxu0 %v1985
        %2262 = vmatpush.msra.mxu0 %v1979
        %2263 = vmatpush.msra.mxu0 %v1973
        %2264 = vmatpush.msra.mxu0 %v1967
        %2265 = vmatpush.msra.mxu0 %v1961
        %2266 = vmatpush.msra.mxu0 %v1955
        %2267 = vmatpush.msra.mxu0 %v1949
        %2268 = vmatmul.f32.gmra.mxu0 0.0
        %v2269 = vpop.f32.mrf.mxu0
        %v2270 = vadd.f32 0.0, %v2269
        %2271 = vdwg.mxu0
        %2272 = vmatpush.msra.mxu0 0.0
        %2273 = vmatpush.msra.mxu0 0.0
        %2274 = vmatpush.msra.mxu0 0.0
        %2275 = vmatpush.msra.mxu0 0.0
        %2276 = vmatpush.msra.mxu0 0.0
        %2277 = vmatpush.msra.mxu0 0.0
        %2278 = vmatpush.msra.mxu0 0.0
        %2279 = vmatpush.msra.mxu0 0.0
        %2280 = vmatpush.msra.mxu0 %v2087
        %2281 = vmatpush.msra.mxu0 %v2081
        %2282 = vmatpush.msra.mxu0 %v2075
        %2283 = vmatpush.msra.mxu0 %v2069
        %2284 = vmatpush.msra.mxu0 %v2063
        %2285 = vmatpush.msra.mxu0 %v2057
        %2286 = vmatpush.msra.mxu0 %v2051
        %2287 = vmatpush.msra.mxu0 %v2045
        %2288 = vmatmul.f32.gmra.mxu0 %v2090
        %v2289 = vpop.f32.mrf.mxu0
        %v2290 = vadd.f32 %v2270, %v2289
        %2291 = vdwg.mxu0
        %2292 = vmatpush.msra.mxu0 %v2040
        %2293 = vmatpush.msra.mxu0 %v2034
        %2294 = vmatpush.msra.mxu0 %v2028
        %2295 = vmatpush.msra.mxu0 %v2022
        %2296 = vmatpush.msra.mxu0 %v2016
        %2297 = vmatpush.msra.mxu0 %v2010
        %2298 = vmatpush.msra.mxu0 %v2004
        %2299 = vmatpush.msra.mxu0 %v1998
        %2300 = vmatpush.msra.mxu0 %v1992
        %2301 = vmatpush.msra.mxu0 %v1986
        %2302 = vmatpush.msra.mxu0 %v1980
        %2303 = vmatpush.msra.mxu0 %v1974
        %2304 = vmatpush.msra.mxu0 %v1968
        %2305 = vmatpush.msra.mxu0 %v1962
        %2306 = vmatpush.msra.mxu0 %v1956
        %2307 = vmatpush.msra.mxu0 %v1950
        %2308 = vmatmul.f32.gmra.mxu0 0.0
        %v2309 = vpop.f32.mrf.mxu0
        %v2310 = vadd.f32 0.0, %v2309
        %2311 = vdwg.mxu0
        %2312 = vmatpush.msra.mxu0 0.0
        %2313 = vmatpush.msra.mxu0 0.0
        %2314 = vmatpush.msra.mxu0 0.0
        %2315 = vmatpush.msra.mxu0 0.0
        %2316 = vmatpush.msra.mxu0 0.0
        %2317 = vmatpush.msra.mxu0 0.0
        %2318 = vmatpush.msra.mxu0 0.0
        %2319 = vmatpush.msra.mxu0 0.0
        %2320 = vmatpush.msra.mxu0 %v2088
        %2321 = vmatpush.msra.mxu0 %v2082
        %2322 = vmatpush.msra.mxu0 %v2076
        %2323 = vmatpush.msra.mxu0 %v2070
        %2324 = vmatpush.msra.mxu0 %v2064
        %2325 = vmatpush.msra.mxu0 %v2058
        %2326 = vmatpush.msra.mxu0 %v2052
        %2327 = vmatpush.msra.mxu0 %v2046
        %2328 = vmatmul.f32.gmra.mxu0 %v2090
        %v2329 = vpop.f32.mrf.mxu0
        %v2330 = vadd.f32 %v2310, %v2329
        %2331 = vdwg.mxu0
        %v2332 = vld [vmem:[#allocation2] ss:$4 sm:$0xf]
        %v2337 = vrot.slane %v2170, 7
        %v2338 = vrot.slane %v2210, 6
        %v2339 = vrot.slane %v2250, 5
        %v2340 = vsel %vm737, %v2130, %v2337
        %v2341 = vsel %vm1009, %v2338, %v2339
        %v2342 = vsel %vm1201, %v2340, %v2341
        %v2344 = vadd.f32 %v2332, %v2342
        %v2345 = vxor.u32 %v2344, 2147483648
        %v2346 = vmul.f32 %v2345, 1.442695
        %v2347 = vpow.pop %v2346
        %v2348 = vadd.f32 %v2347, 1.0
        %v2349 = vrcp.pop %v2348
        %v2350 = vmul.f32 %v2348, %v2349
        %v2351 = vsub.f32 1.0, %v2350
        %v2352 = vmul.f32 %v2349, %v2351
        %v2353 = vadd.f32 %v2349, %v2352
        %vm2354 = vweird.f32 %v2348
        %vm2355 = vweird.f32 %v2349
        %vm2356 = vmor %vm2354, %vm2355
        %v2357 = vsel %vm2356, %v2349, %v2353
        %v2358 = vand.u32 2147483647, %v2348
        %vm2359 = vcmp.eq.f32.partialorder %v2358, 8.507059e+37
        %v2360 = vand.u32 %v2348, 2147483648
        %v2361 = vor.u32 1.1754944e-38, %v2360
        %v2362 = vsel %vm2359, %v2361, %v2357
        %v2363 = vmul.f32 1.0, %v2362
        %v2365 = vrot.slane %v2344, 3
        %v2367 = vtanh.pop %v2365
        %v2369 = vrot.slane %v2363, 1
        %v2371 = vmul.f32 %v2369, 0.0
        %v2372 = vmul.f32 %v2363, %v2367
        %v2373 = vadd.f32 %v2371, %v2372
        %v2374 = vtanh.pop %v2373
        %v2375 = vrot.slane %v2363, 2
        %v2377 = vmul.f32 %v2375, %v2374
        %v2378 = vld [vmem:[#allocation14] sm:$0xff]
        %v2379 = vld [vmem:[#allocation14 + $0x8] sm:$0xff]
        %v2380 = vld [vmem:[#allocation14 + $0x10] sm:$0xff]
        %v2381 = vld [vmem:[#allocation14 + $0x18] sm:$0xff]
        %v2382 = vld [vmem:[#allocation14 + $0x20] sm:$0xff]
        %v2383 = vld [vmem:[#allocation14 + $0x28] sm:$0xff]
        %v2384 = vld [vmem:[#allocation14 + $0x30] sm:$0xff]
        %v2385 = vld [vmem:[#allocation14 + $0x38] sm:$0xff]
        %v2386 = vld [vmem:[#allocation14 + $0x40] sm:$0xff]
        %v2387 = vld [vmem:[#allocation14 + $0x48] sm:$0xff]
        %v2388 = vld [vmem:[#allocation14 + $0x50] sm:$0xff]
        %v2389 = vld [vmem:[#allocation14 + $0x58] sm:$0xff]
        %v2390 = vld [vmem:[#allocation14 + $0x60] sm:$0xff]
        %v2391 = vld [vmem:[#allocation14 + $0x68] sm:$0xff]
        %v2392 = vld [vmem:[#allocation14 + $0x70] sm:$0xff]
        %v2393 = vld [vmem:[#allocation14 + $0x78] sm:$0xff]
        %v2394 = vld [vmem:[#allocation14 + $0x80] sm:$0xff]
        %v2395 = vld [vmem:[#allocation14 + $0x88] sm:$0xff]
        %v2396 = vld [vmem:[#allocation14 + $0x90] sm:$0xff]
        %v2397 = vld [vmem:[#allocation14 + $0x98] sm:$0xff]
        %v2398 = vld [vmem:[#allocation14 + $0xa0] sm:$0xff]
        %v2399 = vld [vmem:[#allocation14 + $0xa8] sm:$0xff]
        %v2400 = vld [vmem:[#allocation14 + $0xb0] sm:$0xff]
        %v2401 = vld [vmem:[#allocation14 + $0xb8] sm:$0xff]
        %v2402 = vld [vmem:[#allocation14 + $0xc0] sm:$0xff]
        %v2403 = vld [vmem:[#allocation14 + $0xc8] sm:$0xff]
        %v2404 = vld [vmem:[#allocation14 + $0xd0] sm:$0xff]
        %v2405 = vld [vmem:[#allocation14 + $0xd8] sm:$0xff]
        %v2406 = vld [vmem:[#allocation14 + $0xe0] sm:$0xff]
        %v2407 = vld [vmem:[#allocation14 + $0xe8] sm:$0xff]
        %v2408 = vld [vmem:[#allocation14 + $0xf0] sm:$0xff]
        %v2409 = vld [vmem:[#allocation14 + $0xf8] sm:$0xff]
        %v2410 = vld [vmem:[%s14] sm:$0x3]
        %v2412 = vperm.slane %v2410, 0
        %v2413 = vperm.slane %v2410, 1
        %2416 = vmatpush.msra.mxu0 %v2408
        %2417 = vmatpush.msra.mxu0 %v2406
        %2418 = vmatpush.msra.mxu0 %v2404
        %2419 = vmatpush.msra.mxu0 %v2402
        %2420 = vmatpush.msra.mxu0 %v2400
        %2421 = vmatpush.msra.mxu0 %v2398
        %2422 = vmatpush.msra.mxu0 %v2396
        %2423 = vmatpush.msra.mxu0 %v2394
        %2424 = vmatpush.msra.mxu0 %v2392
        %2425 = vmatpush.msra.mxu0 %v2390
        %2426 = vmatpush.msra.mxu0 %v2388
        %2427 = vmatpush.msra.mxu0 %v2386
        %2428 = vmatpush.msra.mxu0 %v2384
        %2429 = vmatpush.msra.mxu0 %v2382
        %2430 = vmatpush.msra.mxu0 %v2380
        %2431 = vmatpush.msra.mxu0 %v2378
        %2432 = vmatmul.f32.gmra.mxu0 %v2377
        %v2433 = vpop.f32.mrf.mxu0
        %v2434 = vadd.f32 %v2412, %v2433
        %2435 = vdwg.mxu0
        %2436 = vmatpush.msra.mxu0 %v2409
        %2437 = vmatpush.msra.mxu0 %v2407
        %2438 = vmatpush.msra.mxu0 %v2405
        %2439 = vmatpush.msra.mxu0 %v2403
        %2440 = vmatpush.msra.mxu0 %v2401
        %2441 = vmatpush.msra.mxu0 %v2399
        %2442 = vmatpush.msra.mxu0 %v2397
        %2443 = vmatpush.msra.mxu0 %v2395
        %2444 = vmatpush.msra.mxu0 %v2393
        %2445 = vmatpush.msra.mxu0 %v2391
        %2446 = vmatpush.msra.mxu0 %v2389
        %2447 = vmatpush.msra.mxu0 %v2387
        %2448 = vmatpush.msra.mxu0 %v2385
        %2449 = vmatpush.msra.mxu0 %v2383
        %2450 = vmatpush.msra.mxu0 %v2381
        %2451 = vmatpush.msra.mxu0 %v2379
        %2452 = vmatmul.f32.gmra.mxu0 %v2377
        %v2453 = vpop.f32.mrf.mxu0
        %v2454 = vadd.f32 %v2413, %v2453
        %2455 = vdwg.mxu0
        %v2456 = vadd.f32 %v2434, %v2290
        %v2457 = vadd.f32 %v2454, %v2330
        %v2458 = vxor.u32 %v2456, 2147483648
        %v2459 = vxor.u32 %v2457, 2147483648
        %v2460 = vmul.f32 %v2458, 1.442695
        %v2461 = vpow.pop %v2460
        %v2462 = vmul.f32 %v2459, 1.442695
        %v2463 = vpow.pop %v2462
        %v2464 = vadd.f32 %v2461, 1.0
        %v2465 = vadd.f32 %v2463, 1.0
        %v2466 = vrcp.pop %v2464
        %v2467 = vmul.f32 %v2464, %v2466
        %v2468 = vsub.f32 1.0, %v2467
        %v2469 = vmul.f32 %v2466, %v2468
        %v2470 = vadd.f32 %v2466, %v2469
        %vm2471 = vweird.f32 %v2464
        %vm2472 = vweird.f32 %v2466
        %vm2473 = vmor %vm2471, %vm2472
        %v2474 = vsel %vm2473, %v2466, %v2470
        %v2475 = vand.u32 2147483647, %v2464
        %vm2476 = vcmp.eq.f32.partialorder %v2475, 8.507059e+37
        %v2477 = vand.u32 %v2464, 2147483648
        %v2478 = vor.u32 1.1754944e-38, %v2477
        %v2479 = vsel %vm2476, %v2478, %v2474
        %v2480 = vmul.f32 1.0, %v2479
        %v2481 = vrcp.pop %v2465
        %v2482 = vmul.f32 %v2465, %v2481
        %v2483 = vsub.f32 1.0, %v2482
        %v2484 = vmul.f32 %v2481, %v2483
        %v2485 = vadd.f32 %v2481, %v2484
        %vm2486 = vweird.f32 %v2465
        %vm2487 = vweird.f32 %v2481
        %vm2488 = vmor %vm2486, %vm2487
        %v2489 = vsel %vm2488, %v2481, %v2485
        %v2490 = vand.u32 2147483647, %v2465
        %vm2491 = vcmp.eq.f32.partialorder %v2490, 8.507059e+37
        %v2492 = vand.u32 %v2465, 2147483648
        %v2493 = vor.u32 1.1754944e-38, %v2492
        %v2494 = vsel %vm2491, %v2493, %v2489
        %v2495 = vmul.f32 1.0, %v2494
        %v2496 = vtanh.pop %v2457
        %v2497 = vmul.f32 %v2480, 0.0
        %2499 = vrot.lane.b32.xlu0 %v2496, 64
        %v2500 = vpop.permute.xlu0 %2499
        %v2502 = vmul.f32 %v2480, %v2500
        %2504 = vrot.lane.b32.xlu0 %v2502, 64
        %v2505 = vpop.permute.xlu0 %2504
        %v2507 = vadd.f32 %v2497, %v2505
        %v2508 = vtanh.pop %v2507
        %2510 = vrot.lane.b32.xlu0 %v2508, 64
        %v2511 = vpop.permute.xlu0 %2510
        %v2513 = vmul.f32 %v2495, %v2511
        %v2515 = vsel %vm1063, %v2513, 0
        %2517 = vmatpush.msra.mxu0 %v2035
        %2518 = vmatpush.msra.mxu0 %v2029
        %2519 = vmatpush.msra.mxu0 %v2023
        %2520 = vmatpush.msra.mxu0 %v2017
        %2521 = vmatpush.msra.mxu0 %v2011
        %2522 = vmatpush.msra.mxu0 %v2005
        %2523 = vmatpush.msra.mxu0 %v1999
        %2524 = vmatpush.msra.mxu0 %v1993
        %2525 = vmatpush.msra.mxu0 %v1987
        %2526 = vmatpush.msra.mxu0 %v1981
        %2527 = vmatpush.msra.mxu0 %v1975
        %2528 = vmatpush.msra.mxu0 %v1969
        %2529 = vmatpush.msra.mxu0 %v1963
        %2530 = vmatpush.msra.mxu0 %v1957
        %2531 = vmatpush.msra.mxu0 %v1951
        %2532 = vmatpush.msra.mxu0 %v1945
        %2533 = vmatmul.f32.gmra.mxu0 %v2377
        %v2534 = vpop.f32.mrf.mxu0
        %v2535 = vadd.f32 0.0, %v2534
        %2536 = vdwg.mxu0
        %2537 = vmatpush.msra.mxu0 0.0
        %2538 = vmatpush.msra.mxu0 0.0
        %2539 = vmatpush.msra.mxu0 0.0
        %2540 = vmatpush.msra.mxu0 0.0
        %2541 = vmatpush.msra.mxu0 0.0
        %2542 = vmatpush.msra.mxu0 0.0
        %2543 = vmatpush.msra.mxu0 0.0
        %2544 = vmatpush.msra.mxu0 0.0
        %2545 = vmatpush.msra.mxu0 %v2083
        %2546 = vmatpush.msra.mxu0 %v2077
        %2547 = vmatpush.msra.mxu0 %v2071
        %2548 = vmatpush.msra.mxu0 %v2065
        %2549 = vmatpush.msra.mxu0 %v2059
        %2550 = vmatpush.msra.mxu0 %v2053
        %2551 = vmatpush.msra.mxu0 %v2047
        %2552 = vmatpush.msra.mxu0 %v2041
        %2553 = vmatmul.f32.gmra.mxu0 %v2515
        %v2554 = vpop.f32.mrf.mxu0
        %v2555 = vadd.f32 %v2535, %v2554
        %2556 = vdwg.mxu0
        %2557 = vmatpush.msra.mxu0 %v2036
        %2558 = vmatpush.msra.mxu0 %v2030
        %2559 = vmatpush.msra.mxu0 %v2024
        %2560 = vmatpush.msra.mxu0 %v2018
        %2561 = vmatpush.msra.mxu0 %v2012
        %2562 = vmatpush.msra.mxu0 %v2006
        %2563 = vmatpush.msra.mxu0 %v2000
        %2564 = vmatpush.msra.mxu0 %v1994
        %2565 = vmatpush.msra.mxu0 %v1988
        %2566 = vmatpush.msra.mxu0 %v1982
        %2567 = vmatpush.msra.mxu0 %v1976
        %2568 = vmatpush.msra.mxu0 %v1970
        %2569 = vmatpush.msra.mxu0 %v1964
        %2570 = vmatpush.msra.mxu0 %v1958
        %2571 = vmatpush.msra.mxu0 %v1952
        %2572 = vmatpush.msra.mxu0 %v1946
        %2573 = vmatmul.f32.gmra.mxu0 %v2377
        %v2574 = vpop.f32.mrf.mxu0
        %v2575 = vadd.f32 0.0, %v2574
        %2576 = vdwg.mxu0
        %2577 = vmatpush.msra.mxu0 0.0
        %2578 = vmatpush.msra.mxu0 0.0
        %2579 = vmatpush.msra.mxu0 0.0
        %2580 = vmatpush.msra.mxu0 0.0
        %2581 = vmatpush.msra.mxu0 0.0
        %2582 = vmatpush.msra.mxu0 0.0
        %2583 = vmatpush.msra.mxu0 0.0
        %2584 = vmatpush.msra.mxu0 0.0
        %2585 = vmatpush.msra.mxu0 %v2084
        %2586 = vmatpush.msra.mxu0 %v2078
        %2587 = vmatpush.msra.mxu0 %v2072
        %2588 = vmatpush.msra.mxu0 %v2066
        %2589 = vmatpush.msra.mxu0 %v2060
        %2590 = vmatpush.msra.mxu0 %v2054
        %2591 = vmatpush.msra.mxu0 %v2048
        %2592 = vmatpush.msra.mxu0 %v2042
        %2593 = vmatmul.f32.gmra.mxu0 %v2515
        %v2594 = vpop.f32.mrf.mxu0
        %v2595 = vadd.f32 %v2575, %v2594
        %2596 = vdwg.mxu0
        %2597 = vmatpush.msra.mxu0 %v2037
        %2598 = vmatpush.msra.mxu0 %v2031
        %2599 = vmatpush.msra.mxu0 %v2025
        %2600 = vmatpush.msra.mxu0 %v2019
        %2601 = vmatpush.msra.mxu0 %v2013
        %2602 = vmatpush.msra.mxu0 %v2007
        %2603 = vmatpush.msra.mxu0 %v2001
        %2604 = vmatpush.msra.mxu0 %v1995
        %2605 = vmatpush.msra.mxu0 %v1989
        %2606 = vmatpush.msra.mxu0 %v1983
        %2607 = vmatpush.msra.mxu0 %v1977
        %2608 = vmatpush.msra.mxu0 %v1971
        %2609 = vmatpush.msra.mxu0 %v1965
        %2610 = vmatpush.msra.mxu0 %v1959
        %2611 = vmatpush.msra.mxu0 %v1953
        %2612 = vmatpush.msra.mxu0 %v1947
        %2613 = vmatmul.f32.gmra.mxu0 %v2377
        %v2614 = vpop.f32.mrf.mxu0
        %v2615 = vadd.f32 0.0, %v2614
        %2616 = vdwg.mxu0
        %2617 = vmatpush.msra.mxu0 0.0
        %2618 = vmatpush.msra.mxu0 0.0
        %2619 = vmatpush.msra.mxu0 0.0
        %2620 = vmatpush.msra.mxu0 0.0
        %2621 = vmatpush.msra.mxu0 0.0
        %2622 = vmatpush.msra.mxu0 0.0
        %2623 = vmatpush.msra.mxu0 0.0
        %2624 = vmatpush.msra.mxu0 0.0
        %2625 = vmatpush.msra.mxu0 %v2085
        %2626 = vmatpush.msra.mxu0 %v2079
        %2627 = vmatpush.msra.mxu0 %v2073
        %2628 = vmatpush.msra.mxu0 %v2067
        %2629 = vmatpush.msra.mxu0 %v2061
        %2630 = vmatpush.msra.mxu0 %v2055
        %2631 = vmatpush.msra.mxu0 %v2049
        %2632 = vmatpush.msra.mxu0 %v2043
        %2633 = vmatmul.f32.gmra.mxu0 %v2515
        %v2634 = vpop.f32.mrf.mxu0
        %v2635 = vadd.f32 %v2615, %v2634
        %2636 = vdwg.mxu0
        %2637 = vmatpush.msra.mxu0 %v2038
        %2638 = vmatpush.msra.mxu0 %v2032
        %2639 = vmatpush.msra.mxu0 %v2026
        %2640 = vmatpush.msra.mxu0 %v2020
        %2641 = vmatpush.msra.mxu0 %v2014
        %2642 = vmatpush.msra.mxu0 %v2008
        %2643 = vmatpush.msra.mxu0 %v2002
        %2644 = vmatpush.msra.mxu0 %v1996
        %2645 = vmatpush.msra.mxu0 %v1990
        %2646 = vmatpush.msra.mxu0 %v1984
        %2647 = vmatpush.msra.mxu0 %v1978
        %2648 = vmatpush.msra.mxu0 %v1972
        %2649 = vmatpush.msra.mxu0 %v1966
        %2650 = vmatpush.msra.mxu0 %v1960
        %2651 = vmatpush.msra.mxu0 %v1954
        %2652 = vmatpush.msra.mxu0 %v1948
        %2653 = vmatmul.f32.gmra.mxu0 %v2377
        %v2654 = vpop.f32.mrf.mxu0
        %v2655 = vadd.f32 0.0, %v2654
        %2656 = vdwg.mxu0
        %2657 = vmatpush.msra.mxu0 0.0
        %2658 = vmatpush.msra.mxu0 0.0
        %2659 = vmatpush.msra.mxu0 0.0
        %2660 = vmatpush.msra.mxu0 0.0
        %2661 = vmatpush.msra.mxu0 0.0
        %2662 = vmatpush.msra.mxu0 0.0
        %2663 = vmatpush.msra.mxu0 0.0
        %2664 = vmatpush.msra.mxu0 0.0
        %2665 = vmatpush.msra.mxu0 %v2086
        %2666 = vmatpush.msra.mxu0 %v2080
        %2667 = vmatpush.msra.mxu0 %v2074
        %2668 = vmatpush.msra.mxu0 %v2068
        %2669 = vmatpush.msra.mxu0 %v2062
        %2670 = vmatpush.msra.mxu0 %v2056
        %2671 = vmatpush.msra.mxu0 %v2050
        %2672 = vmatpush.msra.mxu0 %v2044
        %2673 = vmatmul.f32.gmra.mxu0 %v2515
        %v2674 = vpop.f32.mrf.mxu0
        %v2675 = vadd.f32 %v2655, %v2674
        %2676 = vdwg.mxu0
        %2677 = vmatpush.msra.mxu0 %v2039
        %2678 = vmatpush.msra.mxu0 %v2033
        %2679 = vmatpush.msra.mxu0 %v2027
        %2680 = vmatpush.msra.mxu0 %v2021
        %2681 = vmatpush.msra.mxu0 %v2015
        %2682 = vmatpush.msra.mxu0 %v2009
        %2683 = vmatpush.msra.mxu0 %v2003
        %2684 = vmatpush.msra.mxu0 %v1997
        %2685 = vmatpush.msra.mxu0 %v1991
        %2686 = vmatpush.msra.mxu0 %v1985
        %2687 = vmatpush.msra.mxu0 %v1979
        %2688 = vmatpush.msra.mxu0 %v1973
        %2689 = vmatpush.msra.mxu0 %v1967
        %2690 = vmatpush.msra.mxu0 %v1961
        %2691 = vmatpush.msra.mxu0 %v1955
        %2692 = vmatpush.msra.mxu0 %v1949
        %2693 = vmatmul.f32.gmra.mxu0 %v2377
        %v2694 = vpop.f32.mrf.mxu0
        %v2695 = vadd.f32 0.0, %v2694
        %2696 = vdwg.mxu0
        %2697 = vmatpush.msra.mxu0 0.0
        %2698 = vmatpush.msra.mxu0 0.0
        %2699 = vmatpush.msra.mxu0 0.0
        %2700 = vmatpush.msra.mxu0 0.0
        %2701 = vmatpush.msra.mxu0 0.0
        %2702 = vmatpush.msra.mxu0 0.0
        %2703 = vmatpush.msra.mxu0 0.0
        %2704 = vmatpush.msra.mxu0 0.0
        %2705 = vmatpush.msra.mxu0 %v2087
        %2706 = vmatpush.msra.mxu0 %v2081
        %2707 = vmatpush.msra.mxu0 %v2075
        %2708 = vmatpush.msra.mxu0 %v2069
        %2709 = vmatpush.msra.mxu0 %v2063
        %2710 = vmatpush.msra.mxu0 %v2057
        %2711 = vmatpush.msra.mxu0 %v2051
        %2712 = vmatpush.msra.mxu0 %v2045
        %2713 = vmatmul.f32.gmra.mxu0 %v2515
        %v2714 = vpop.f32.mrf.mxu0
        %v2715 = vadd.f32 %v2695, %v2714
        %2716 = vdwg.mxu0
        %2717 = vmatpush.msra.mxu0 %v2040
        %2718 = vmatpush.msra.mxu0 %v2034
        %2719 = vmatpush.msra.mxu0 %v2028
        %2720 = vmatpush.msra.mxu0 %v2022
        %2721 = vmatpush.msra.mxu0 %v2016
        %2722 = vmatpush.msra.mxu0 %v2010
        %2723 = vmatpush.msra.mxu0 %v2004
        %2724 = vmatpush.msra.mxu0 %v1998
        %2725 = vmatpush.msra.mxu0 %v1992
        %2726 = vmatpush.msra.mxu0 %v1986
        %2727 = vmatpush.msra.mxu0 %v1980
        %2728 = vmatpush.msra.mxu0 %v1974
        %2729 = vmatpush.msra.mxu0 %v1968
        %2730 = vmatpush.msra.mxu0 %v1962
        %2731 = vmatpush.msra.mxu0 %v1956
        %2732 = vmatpush.msra.mxu0 %v1950
        %2733 = vmatmul.f32.gmra.mxu0 %v2377
        %v2734 = vpop.f32.mrf.mxu0
        %v2735 = vadd.f32 0.0, %v2734
        %2736 = vdwg.mxu0
        %2737 = vmatpush.msra.mxu0 0.0
        %2738 = vmatpush.msra.mxu0 0.0
        %2739 = vmatpush.msra.mxu0 0.0
        %2740 = vmatpush.msra.mxu0 0.0
        %2741 = vmatpush.msra.mxu0 0.0
        %2742 = vmatpush.msra.mxu0 0.0
        %2743 = vmatpush.msra.mxu0 0.0
        %2744 = vmatpush.msra.mxu0 0.0
        %2745 = vmatpush.msra.mxu0 %v2088
        %2746 = vmatpush.msra.mxu0 %v2082
        %2747 = vmatpush.msra.mxu0 %v2076
        %2748 = vmatpush.msra.mxu0 %v2070
        %2749 = vmatpush.msra.mxu0 %v2064
        %2750 = vmatpush.msra.mxu0 %v2058
        %2751 = vmatpush.msra.mxu0 %v2052
        %2752 = vmatpush.msra.mxu0 %v2046
        %2753 = vmatmul.f32.gmra.mxu0 %v2515
        %v2754 = vpop.f32.mrf.mxu0
        %v2755 = vadd.f32 %v2735, %v2754
        %2756 = vdwg.mxu0
        %s2757 = scalar_lea.vmem [#allocation2], 1
        %v2758 = vld [vmem:[%s2757] ss:$4 sm:$0xf]
        %v2763 = vrot.slane %v2595, 7
        %v2764 = vrot.slane %v2635, 6
        %v2765 = vrot.slane %v2675, 5
        %v2766 = vsel %vm737, %v2555, %v2763
        %v2767 = vsel %vm1009, %v2764, %v2765
        %v2768 = vsel %vm1201, %v2766, %v2767
        %v2770 = vadd.f32 %v2758, %v2768
        %v2771 = vxor.u32 %v2770, 2147483648
        %v2772 = vmul.f32 %v2771, 1.442695
        %v2773 = vpow.pop %v2772
        %v2774 = vadd.f32 %v2773, 1.0
        %v2775 = vrcp.pop %v2774
        %v2776 = vmul.f32 %v2774, %v2775
        %v2777 = vsub.f32 1.0, %v2776
        %v2778 = vmul.f32 %v2775, %v2777
        %v2779 = vadd.f32 %v2775, %v2778
        %vm2780 = vweird.f32 %v2774
        %vm2781 = vweird.f32 %v2775
        %vm2782 = vmor %vm2780, %vm2781
        %v2783 = vsel %vm2782, %v2775, %v2779
        %v2784 = vand.u32 2147483647, %v2774
        %vm2785 = vcmp.eq.f32.partialorder %v2784, 8.507059e+37
        %v2786 = vand.u32 %v2774, 2147483648
        %v2787 = vor.u32 1.1754944e-38, %v2786
        %v2788 = vsel %vm2785, %v2787, %v2783
        %v2789 = vmul.f32 1.0, %v2788
        %v2791 = vrot.slane %v2770, 3
        %v2793 = vtanh.pop %v2791
        %v2795 = vrot.slane %v2789, 1
        %v2797 = vmul.f32 %v2795, %v2373
        %v2798 = vmul.f32 %v2789, %v2793
        %v2799 = vadd.f32 %v2797, %v2798
        %v2800 = vtanh.pop %v2799
        %v2801 = vrot.slane %v2789, 2
        %v2803 = vmul.f32 %v2801, %v2800
        %2804 = vmatpush.msra.mxu0 %v2408
        %2805 = vmatpush.msra.mxu0 %v2406
        %2806 = vmatpush.msra.mxu0 %v2404
        %2807 = vmatpush.msra.mxu0 %v2402
        %2808 = vmatpush.msra.mxu0 %v2400
        %2809 = vmatpush.msra.mxu0 %v2398
        %2810 = vmatpush.msra.mxu0 %v2396
        %2811 = vmatpush.msra.mxu0 %v2394
        %2812 = vmatpush.msra.mxu0 %v2392
        %2813 = vmatpush.msra.mxu0 %v2390
        %2814 = vmatpush.msra.mxu0 %v2388
        %2815 = vmatpush.msra.mxu0 %v2386
        %2816 = vmatpush.msra.mxu0 %v2384
        %2817 = vmatpush.msra.mxu0 %v2382
        %2818 = vmatpush.msra.mxu0 %v2380
        %2819 = vmatpush.msra.mxu0 %v2378
        %2820 = vmatmul.f32.gmra.mxu0 %v2803
        %v2821 = vpop.f32.mrf.mxu0
        %v2822 = vadd.f32 %v2412, %v2821
        %2823 = vdwg.mxu0
        %2824 = vmatpush.msra.mxu0 %v2409
        %2825 = vmatpush.msra.mxu0 %v2407
        %2826 = vmatpush.msra.mxu0 %v2405
        %2827 = vmatpush.msra.mxu0 %v2403
        %2828 = vmatpush.msra.mxu0 %v2401
        %2829 = vmatpush.msra.mxu0 %v2399
        %2830 = vmatpush.msra.mxu0 %v2397
        %2831 = vmatpush.msra.mxu0 %v2395
        %2832 = vmatpush.msra.mxu0 %v2393
        %2833 = vmatpush.msra.mxu0 %v2391
        %2834 = vmatpush.msra.mxu0 %v2389
        %2835 = vmatpush.msra.mxu0 %v2387
        %2836 = vmatpush.msra.mxu0 %v2385
        %2837 = vmatpush.msra.mxu0 %v2383
        %2838 = vmatpush.msra.mxu0 %v2381
        %2839 = vmatpush.msra.mxu0 %v2379
        %2840 = vmatmul.f32.gmra.mxu0 %v2803
        %v2841 = vpop.f32.mrf.mxu0
        %v2842 = vadd.f32 %v2413, %v2841
        %2843 = vdwg.mxu0
        %v2844 = vadd.f32 %v2822, %v2715
        %v2845 = vadd.f32 %v2842, %v2755
        %v2846 = vxor.u32 %v2844, 2147483648
        %v2847 = vxor.u32 %v2845, 2147483648
        %v2848 = vmul.f32 %v2846, 1.442695
        %v2849 = vpow.pop %v2848
        %v2850 = vmul.f32 %v2847, 1.442695
        %v2851 = vpow.pop %v2850
        %v2852 = vadd.f32 %v2849, 1.0
        %v2853 = vadd.f32 %v2851, 1.0
        %v2854 = vrcp.pop %v2852
        %v2855 = vmul.f32 %v2852, %v2854
        %v2856 = vsub.f32 1.0, %v2855
        %v2857 = vmul.f32 %v2854, %v2856
        %v2858 = vadd.f32 %v2854, %v2857
        %vm2859 = vweird.f32 %v2852
        %vm2860 = vweird.f32 %v2854
        %vm2861 = vmor %vm2859, %vm2860
        %v2862 = vsel %vm2861, %v2854, %v2858
        %v2863 = vand.u32 2147483647, %v2852
        %vm2864 = vcmp.eq.f32.partialorder %v2863, 8.507059e+37
        %v2865 = vand.u32 %v2852, 2147483648
        %v2866 = vor.u32 1.1754944e-38, %v2865
        %v2867 = vsel %vm2864, %v2866, %v2862
        %v2868 = vmul.f32 1.0, %v2867
        %v2869 = vrcp.pop %v2853
        %v2870 = vmul.f32 %v2853, %v2869
        %v2871 = vsub.f32 1.0, %v2870
        %v2872 = vmul.f32 %v2869, %v2871
        %v2873 = vadd.f32 %v2869, %v2872
        %vm2874 = vweird.f32 %v2853
        %vm2875 = vweird.f32 %v2869
        %vm2876 = vmor %vm2874, %vm2875
        %v2877 = vsel %vm2876, %v2869, %v2873
        %v2878 = vand.u32 2147483647, %v2853
        %vm2879 = vcmp.eq.f32.partialorder %v2878, 8.507059e+37
        %v2880 = vand.u32 %v2853, 2147483648
        %v2881 = vor.u32 1.1754944e-38, %v2880
        %v2882 = vsel %vm2879, %v2881, %v2877
        %v2883 = vmul.f32 1.0, %v2882
        %v2884 = vtanh.pop %v2845
        %v2885 = vmul.f32 %v2868, %v2507
        %2887 = vrot.lane.b32.xlu0 %v2884, 64
        %v2888 = vpop.permute.xlu0 %2887
        %v2890 = vmul.f32 %v2868, %v2888
        %2892 = vrot.lane.b32.xlu0 %v2890, 64
        %v2893 = vpop.permute.xlu0 %2892
        %v2895 = vadd.f32 %v2885, %v2893
        %v2896 = vtanh.pop %v2895
        %2898 = vrot.lane.b32.xlu0 %v2896, 64
        %v2899 = vpop.permute.xlu0 %2898
        %v2901 = vmul.f32 %v2883, %v2899
        %v2903 = vsel %vm1063, %v2901, 0
        %2905 = vmatpush.msra.mxu0 %v2035
        %2906 = vmatpush.msra.mxu0 %v2029
        %2907 = vmatpush.msra.mxu0 %v2023
        %2908 = vmatpush.msra.mxu0 %v2017
        %2909 = vmatpush.msra.mxu0 %v2011
        %2910 = vmatpush.msra.mxu0 %v2005
        %2911 = vmatpush.msra.mxu0 %v1999
        %2912 = vmatpush.msra.mxu0 %v1993
        %2913 = vmatpush.msra.mxu0 %v1987
        %2914 = vmatpush.msra.mxu0 %v1981
        %2915 = vmatpush.msra.mxu0 %v1975
        %2916 = vmatpush.msra.mxu0 %v1969
        %2917 = vmatpush.msra.mxu0 %v1963
        %2918 = vmatpush.msra.mxu0 %v1957
        %2919 = vmatpush.msra.mxu0 %v1951
        %2920 = vmatpush.msra.mxu0 %v1945
        %2921 = vmatmul.f32.gmra.mxu0 %v2803
        %v2922 = vpop.f32.mrf.mxu0
        %v2923 = vadd.f32 0.0, %v2922
        %2924 = vdwg.mxu0
        %2925 = vmatpush.msra.mxu0 0.0
        %2926 = vmatpush.msra.mxu0 0.0
        %2927 = vmatpush.msra.mxu0 0.0
        %2928 = vmatpush.msra.mxu0 0.0
        %2929 = vmatpush.msra.mxu0 0.0
        %2930 = vmatpush.msra.mxu0 0.0
        %2931 = vmatpush.msra.mxu0 0.0
        %2932 = vmatpush.msra.mxu0 0.0
        %2933 = vmatpush.msra.mxu0 %v2083
        %2934 = vmatpush.msra.mxu0 %v2077
        %2935 = vmatpush.msra.mxu0 %v2071
        %2936 = vmatpush.msra.mxu0 %v2065
        %2937 = vmatpush.msra.mxu0 %v2059
        %2938 = vmatpush.msra.mxu0 %v2053
        %2939 = vmatpush.msra.mxu0 %v2047
        %2940 = vmatpush.msra.mxu0 %v2041
        %2941 = vmatmul.f32.gmra.mxu0 %v2903
        %v2942 = vpop.f32.mrf.mxu0
        %v2943 = vadd.f32 %v2923, %v2942
        %2944 = vdwg.mxu0
        %2945 = vmatpush.msra.mxu0 %v2036
        %2946 = vmatpush.msra.mxu0 %v2030
        %2947 = vmatpush.msra.mxu0 %v2024
        %2948 = vmatpush.msra.mxu0 %v2018
        %2949 = vmatpush.msra.mxu0 %v2012
        %2950 = vmatpush.msra.mxu0 %v2006
        %2951 = vmatpush.msra.mxu0 %v2000
        %2952 = vmatpush.msra.mxu0 %v1994
        %2953 = vmatpush.msra.mxu0 %v1988
        %2954 = vmatpush.msra.mxu0 %v1982
        %2955 = vmatpush.msra.mxu0 %v1976
        %2956 = vmatpush.msra.mxu0 %v1970
        %2957 = vmatpush.msra.mxu0 %v1964
        %2958 = vmatpush.msra.mxu0 %v1958
        %2959 = vmatpush.msra.mxu0 %v1952
        %2960 = vmatpush.msra.mxu0 %v1946
        %2961 = vmatmul.f32.gmra.mxu0 %v2803
        %v2962 = vpop.f32.mrf.mxu0
        %v2963 = vadd.f32 0.0, %v2962
        %2964 = vdwg.mxu0
        %2965 = vmatpush.msra.mxu0 0.0
        %2966 = vmatpush.msra.mxu0 0.0
        %2967 = vmatpush.msra.mxu0 0.0
        %2968 = vmatpush.msra.mxu0 0.0
        %2969 = vmatpush.msra.mxu0 0.0
        %2970 = vmatpush.msra.mxu0 0.0
        %2971 = vmatpush.msra.mxu0 0.0
        %2972 = vmatpush.msra.mxu0 0.0
        %2973 = vmatpush.msra.mxu0 %v2084
        %2974 = vmatpush.msra.mxu0 %v2078
        %2975 = vmatpush.msra.mxu0 %v2072
        %2976 = vmatpush.msra.mxu0 %v2066
        %2977 = vmatpush.msra.mxu0 %v2060
        %2978 = vmatpush.msra.mxu0 %v2054
        %2979 = vmatpush.msra.mxu0 %v2048
        %2980 = vmatpush.msra.mxu0 %v2042
        %2981 = vmatmul.f32.gmra.mxu0 %v2903
        %v2982 = vpop.f32.mrf.mxu0
        %v2983 = vadd.f32 %v2963, %v2982
        %2984 = vdwg.mxu0
        %2985 = vmatpush.msra.mxu0 %v2037
        %2986 = vmatpush.msra.mxu0 %v2031
        %2987 = vmatpush.msra.mxu0 %v2025
        %2988 = vmatpush.msra.mxu0 %v2019
        %2989 = vmatpush.msra.mxu0 %v2013
        %2990 = vmatpush.msra.mxu0 %v2007
        %2991 = vmatpush.msra.mxu0 %v2001
        %2992 = vmatpush.msra.mxu0 %v1995
        %2993 = vmatpush.msra.mxu0 %v1989
        %2994 = vmatpush.msra.mxu0 %v1983
        %2995 = vmatpush.msra.mxu0 %v1977
        %2996 = vmatpush.msra.mxu0 %v1971
        %2997 = vmatpush.msra.mxu0 %v1965
        %2998 = vmatpush.msra.mxu0 %v1959
        %2999 = vmatpush.msra.mxu0 %v1953
        %3000 = vmatpush.msra.mxu0 %v1947
        %3001 = vmatmul.f32.gmra.mxu0 %v2803
        %v3002 = vpop.f32.mrf.mxu0
        %v3003 = vadd.f32 0.0, %v3002
        %3004 = vdwg.mxu0
        %3005 = vmatpush.msra.mxu0 0.0
        %3006 = vmatpush.msra.mxu0 0.0
        %3007 = vmatpush.msra.mxu0 0.0
        %3008 = vmatpush.msra.mxu0 0.0
        %3009 = vmatpush.msra.mxu0 0.0
        %3010 = vmatpush.msra.mxu0 0.0
        %3011 = vmatpush.msra.mxu0 0.0
        %3012 = vmatpush.msra.mxu0 0.0
        %3013 = vmatpush.msra.mxu0 %v2085
        %3014 = vmatpush.msra.mxu0 %v2079
        %3015 = vmatpush.msra.mxu0 %v2073
        %3016 = vmatpush.msra.mxu0 %v2067
        %3017 = vmatpush.msra.mxu0 %v2061
        %3018 = vmatpush.msra.mxu0 %v2055
        %3019 = vmatpush.msra.mxu0 %v2049
        %3020 = vmatpush.msra.mxu0 %v2043
        %3021 = vmatmul.f32.gmra.mxu0 %v2903
        %v3022 = vpop.f32.mrf.mxu0
        %v3023 = vadd.f32 %v3003, %v3022
        %3024 = vdwg.mxu0
        %3025 = vmatpush.msra.mxu0 %v2038
        %3026 = vmatpush.msra.mxu0 %v2032
        %3027 = vmatpush.msra.mxu0 %v2026
        %3028 = vmatpush.msra.mxu0 %v2020
        %3029 = vmatpush.msra.mxu0 %v2014
        %3030 = vmatpush.msra.mxu0 %v2008
        %3031 = vmatpush.msra.mxu0 %v2002
        %3032 = vmatpush.msra.mxu0 %v1996
        %3033 = vmatpush.msra.mxu0 %v1990
        %3034 = vmatpush.msra.mxu0 %v1984
        %3035 = vmatpush.msra.mxu0 %v1978
        %3036 = vmatpush.msra.mxu0 %v1972
        %3037 = vmatpush.msra.mxu0 %v1966
        %3038 = vmatpush.msra.mxu0 %v1960
        %3039 = vmatpush.msra.mxu0 %v1954
        %3040 = vmatpush.msra.mxu0 %v1948
        %3041 = vmatmul.f32.gmra.mxu0 %v2803
        %v3042 = vpop.f32.mrf.mxu0
        %v3043 = vadd.f32 0.0, %v3042
        %3044 = vdwg.mxu0
        %3045 = vmatpush.msra.mxu0 0.0
        %3046 = vmatpush.msra.mxu0 0.0
        %3047 = vmatpush.msra.mxu0 0.0
        %3048 = vmatpush.msra.mxu0 0.0
        %3049 = vmatpush.msra.mxu0 0.0
        %3050 = vmatpush.msra.mxu0 0.0
        %3051 = vmatpush.msra.mxu0 0.0
        %3052 = vmatpush.msra.mxu0 0.0
        %3053 = vmatpush.msra.mxu0 %v2086
        %3054 = vmatpush.msra.mxu0 %v2080
        %3055 = vmatpush.msra.mxu0 %v2074
        %3056 = vmatpush.msra.mxu0 %v2068
        %3057 = vmatpush.msra.mxu0 %v2062
        %3058 = vmatpush.msra.mxu0 %v2056
        %3059 = vmatpush.msra.mxu0 %v2050
        %3060 = vmatpush.msra.mxu0 %v2044
        %3061 = vmatmul.f32.gmra.mxu0 %v2903
        %v3062 = vpop.f32.mrf.mxu0
        %v3063 = vadd.f32 %v3043, %v3062
        %3064 = vdwg.mxu0
        %3065 = vmatpush.msra.mxu0 %v2039
        %3066 = vmatpush.msra.mxu0 %v2033
        %3067 = vmatpush.msra.mxu0 %v2027
        %3068 = vmatpush.msra.mxu0 %v2021
        %3069 = vmatpush.msra.mxu0 %v2015
        %3070 = vmatpush.msra.mxu0 %v2009
        %3071 = vmatpush.msra.mxu0 %v2003
        %3072 = vmatpush.msra.mxu0 %v1997
        %3073 = vmatpush.msra.mxu0 %v1991
        %3074 = vmatpush.msra.mxu0 %v1985
        %3075 = vmatpush.msra.mxu0 %v1979
        %3076 = vmatpush.msra.mxu0 %v1973
        %3077 = vmatpush.msra.mxu0 %v1967
        %3078 = vmatpush.msra.mxu0 %v1961
        %3079 = vmatpush.msra.mxu0 %v1955
        %3080 = vmatpush.msra.mxu0 %v1949
        %3081 = vmatmul.f32.gmra.mxu0 %v2803
        %v3082 = vpop.f32.mrf.mxu0
        %v3083 = vadd.f32 0.0, %v3082
        %3084 = vdwg.mxu0
        %3085 = vmatpush.msra.mxu0 0.0
        %3086 = vmatpush.msra.mxu0 0.0
        %3087 = vmatpush.msra.mxu0 0.0
        %3088 = vmatpush.msra.mxu0 0.0
        %3089 = vmatpush.msra.mxu0 0.0
        %3090 = vmatpush.msra.mxu0 0.0
        %3091 = vmatpush.msra.mxu0 0.0
        %3092 = vmatpush.msra.mxu0 0.0
        %3093 = vmatpush.msra.mxu0 %v2087
        %3094 = vmatpush.msra.mxu0 %v2081
        %3095 = vmatpush.msra.mxu0 %v2075
        %3096 = vmatpush.msra.mxu0 %v2069
        %3097 = vmatpush.msra.mxu0 %v2063
        %3098 = vmatpush.msra.mxu0 %v2057
        %3099 = vmatpush.msra.mxu0 %v2051
        %3100 = vmatpush.msra.mxu0 %v2045
        %3101 = vmatmul.f32.gmra.mxu0 %v2903
        %v3102 = vpop.f32.mrf.mxu0
        %v3103 = vadd.f32 %v3083, %v3102
        %3104 = vdwg.mxu0
        %3105 = vmatpush.msra.mxu0 %v2040
        %3106 = vmatpush.msra.mxu0 %v2034
        %3107 = vmatpush.msra.mxu0 %v2028
        %3108 = vmatpush.msra.mxu0 %v2022
        %3109 = vmatpush.msra.mxu0 %v2016
        %3110 = vmatpush.msra.mxu0 %v2010
        %3111 = vmatpush.msra.mxu0 %v2004
        %3112 = vmatpush.msra.mxu0 %v1998
        %3113 = vmatpush.msra.mxu0 %v1992
        %3114 = vmatpush.msra.mxu0 %v1986
        %3115 = vmatpush.msra.mxu0 %v1980
        %3116 = vmatpush.msra.mxu0 %v1974
        %3117 = vmatpush.msra.mxu0 %v1968
        %3118 = vmatpush.msra.mxu0 %v1962
        %3119 = vmatpush.msra.mxu0 %v1956
        %3120 = vmatpush.msra.mxu0 %v1950
        %3121 = vmatmul.f32.gmra.mxu0 %v2803
        %v3122 = vpop.f32.mrf.mxu0
        %v3123 = vadd.f32 0.0, %v3122
        %3124 = vdwg.mxu0
        %3125 = vmatpush.msra.mxu0 0.0
        %3126 = vmatpush.msra.mxu0 0.0
        %3127 = vmatpush.msra.mxu0 0.0
        %3128 = vmatpush.msra.mxu0 0.0
        %3129 = vmatpush.msra.mxu0 0.0
        %3130 = vmatpush.msra.mxu0 0.0
        %3131 = vmatpush.msra.mxu0 0.0
        %3132 = vmatpush.msra.mxu0 0.0
        %3133 = vmatpush.msra.mxu0 %v2088
        %3134 = vmatpush.msra.mxu0 %v2082
        %3135 = vmatpush.msra.mxu0 %v2076
        %3136 = vmatpush.msra.mxu0 %v2070
        %3137 = vmatpush.msra.mxu0 %v2064
        %3138 = vmatpush.msra.mxu0 %v2058
        %3139 = vmatpush.msra.mxu0 %v2052
        %3140 = vmatpush.msra.mxu0 %v2046
        %3141 = vmatmul.f32.gmra.mxu0 %v2903
        %v3142 = vpop.f32.mrf.mxu0
        %v3143 = vadd.f32 %v3123, %v3142
        %3144 = vdwg.mxu0
        %s3145 = scalar_lea.vmem [#allocation2], 2
        %v3146 = vld [vmem:[%s3145] ss:$4 sm:$0xf]
        %v3151 = vrot.slane %v2983, 7
        %v3152 = vrot.slane %v3023, 6
        %v3153 = vrot.slane %v3063, 5
        %v3154 = vsel %vm737, %v2943, %v3151
        %v3155 = vsel %vm1009, %v3152, %v3153
        %v3156 = vsel %vm1201, %v3154, %v3155
        %v3158 = vadd.f32 %v3146, %v3156
        %v3159 = vxor.u32 %v3158, 2147483648
        %v3160 = vmul.f32 %v3159, 1.442695
        %v3161 = vpow.pop %v3160
        %v3162 = vadd.f32 %v3161, 1.0
        %v3163 = vrcp.pop %v3162
        %v3164 = vmul.f32 %v3162, %v3163
        %v3165 = vsub.f32 1.0, %v3164
        %v3166 = vmul.f32 %v3163, %v3165
        %v3167 = vadd.f32 %v3163, %v3166
        %vm3168 = vweird.f32 %v3162
        %vm3169 = vweird.f32 %v3163
        %vm3170 = vmor %vm3168, %vm3169
        %v3171 = vsel %vm3170, %v3163, %v3167
        %v3172 = vand.u32 2147483647, %v3162
        %vm3173 = vcmp.eq.f32.partialorder %v3172, 8.507059e+37
        %v3174 = vand.u32 %v3162, 2147483648
        %v3175 = vor.u32 1.1754944e-38, %v3174
        %v3176 = vsel %vm3173, %v3175, %v3171
        %v3177 = vmul.f32 1.0, %v3176
        %v3179 = vrot.slane %v3158, 3
        %v3181 = vtanh.pop %v3179
        %v3183 = vrot.slane %v3177, 1
        %v3185 = vmul.f32 %v3183, %v2799
        %v3186 = vmul.f32 %v3177, %v3181
        %v3187 = vadd.f32 %v3185, %v3186
        %v3188 = vtanh.pop %v3187
        %v3189 = vrot.slane %v3177, 2
        %v3191 = vmul.f32 %v3189, %v3188
        %3192 = vmatpush.msra.mxu0 %v2408
        %3193 = vmatpush.msra.mxu0 %v2406
        %3194 = vmatpush.msra.mxu0 %v2404
        %3195 = vmatpush.msra.mxu0 %v2402
        %3196 = vmatpush.msra.mxu0 %v2400
        %3197 = vmatpush.msra.mxu0 %v2398
        %3198 = vmatpush.msra.mxu0 %v2396
        %3199 = vmatpush.msra.mxu0 %v2394
        %3200 = vmatpush.msra.mxu0 %v2392
        %3201 = vmatpush.msra.mxu0 %v2390
        %3202 = vmatpush.msra.mxu0 %v2388
        %3203 = vmatpush.msra.mxu0 %v2386
        %3204 = vmatpush.msra.mxu0 %v2384
        %3205 = vmatpush.msra.mxu0 %v2382
        %3206 = vmatpush.msra.mxu0 %v2380
        %3207 = vmatpush.msra.mxu0 %v2378
        %3208 = vmatmul.f32.gmra.mxu0 %v3191
        %v3209 = vpop.f32.mrf.mxu0
        %v3210 = vadd.f32 %v2412, %v3209
        %3211 = vdwg.mxu0
        %3212 = vmatpush.msra.mxu0 %v2409
        %3213 = vmatpush.msra.mxu0 %v2407
        %3214 = vmatpush.msra.mxu0 %v2405
        %3215 = vmatpush.msra.mxu0 %v2403
        %3216 = vmatpush.msra.mxu0 %v2401
        %3217 = vmatpush.msra.mxu0 %v2399
        %3218 = vmatpush.msra.mxu0 %v2397
        %3219 = vmatpush.msra.mxu0 %v2395
        %3220 = vmatpush.msra.mxu0 %v2393
        %3221 = vmatpush.msra.mxu0 %v2391
        %3222 = vmatpush.msra.mxu0 %v2389
        %3223 = vmatpush.msra.mxu0 %v2387
        %3224 = vmatpush.msra.mxu0 %v2385
        %3225 = vmatpush.msra.mxu0 %v2383
        %3226 = vmatpush.msra.mxu0 %v2381
        %3227 = vmatpush.msra.mxu0 %v2379
        %3228 = vmatmul.f32.gmra.mxu0 %v3191
        %v3229 = vpop.f32.mrf.mxu0
        %v3230 = vadd.f32 %v2413, %v3229
        %3231 = vdwg.mxu0
        %v3232 = vadd.f32 %v3210, %v3103
        %v3233 = vadd.f32 %v3230, %v3143
        %v3234 = vxor.u32 %v3232, 2147483648
        %v3235 = vxor.u32 %v3233, 2147483648
        %v3236 = vmul.f32 %v3234, 1.442695
        %v3237 = vpow.pop %v3236
        %v3238 = vmul.f32 %v3235, 1.442695
        %v3239 = vpow.pop %v3238
        %v3240 = vadd.f32 %v3237, 1.0
        %v3241 = vadd.f32 %v3239, 1.0
        %v3242 = vrcp.pop %v3240
        %v3243 = vmul.f32 %v3240, %v3242
        %v3244 = vsub.f32 1.0, %v3243
        %v3245 = vmul.f32 %v3242, %v3244
        %v3246 = vadd.f32 %v3242, %v3245
        %vm3247 = vweird.f32 %v3240
        %vm3248 = vweird.f32 %v3242
        %vm3249 = vmor %vm3247, %vm3248
        %v3250 = vsel %vm3249, %v3242, %v3246
        %v3251 = vand.u32 2147483647, %v3240
        %vm3252 = vcmp.eq.f32.partialorder %v3251, 8.507059e+37
        %v3253 = vand.u32 %v3240, 2147483648
        %v3254 = vor.u32 1.1754944e-38, %v3253
        %v3255 = vsel %vm3252, %v3254, %v3250
        %v3256 = vmul.f32 1.0, %v3255
        %v3257 = vrcp.pop %v3241
        %v3258 = vmul.f32 %v3241, %v3257
        %v3259 = vsub.f32 1.0, %v3258
        %v3260 = vmul.f32 %v3257, %v3259
        %v3261 = vadd.f32 %v3257, %v3260
        %vm3262 = vweird.f32 %v3241
        %vm3263 = vweird.f32 %v3257
        %vm3264 = vmor %vm3262, %vm3263
        %v3265 = vsel %vm3264, %v3257, %v3261
        %v3266 = vand.u32 2147483647, %v3241
        %vm3267 = vcmp.eq.f32.partialorder %v3266, 8.507059e+37
        %v3268 = vand.u32 %v3241, 2147483648
        %v3269 = vor.u32 1.1754944e-38, %v3268
        %v3270 = vsel %vm3267, %v3269, %v3265
        %v3271 = vmul.f32 1.0, %v3270
        %v3272 = vtanh.pop %v3233
        %v3273 = vmul.f32 %v3256, %v2895
        %3275 = vrot.lane.b32.xlu0 %v3272, 64
        %v3276 = vpop.permute.xlu0 %3275
        %v3278 = vmul.f32 %v3256, %v3276
        %3280 = vrot.lane.b32.xlu0 %v3278, 64
        %v3281 = vpop.permute.xlu0 %3280
        %v3283 = vadd.f32 %v3273, %v3281
        %v3284 = vtanh.pop %v3283
        %3286 = vrot.lane.b32.xlu0 %v3284, 64
        %v3287 = vpop.permute.xlu0 %3286
        %v3289 = vmul.f32 %v3271, %v3287
        %v3291 = vsel %vm1063, %v3289, 0
        %3293 = vmatpush.msra.mxu0 %v2035
        %3294 = vmatpush.msra.mxu0 %v2029
        %3295 = vmatpush.msra.mxu0 %v2023
        %3296 = vmatpush.msra.mxu0 %v2017
        %3297 = vmatpush.msra.mxu0 %v2011
        %3298 = vmatpush.msra.mxu0 %v2005
        %3299 = vmatpush.msra.mxu0 %v1999
        %3300 = vmatpush.msra.mxu0 %v1993
        %3301 = vmatpush.msra.mxu0 %v1987
        %3302 = vmatpush.msra.mxu0 %v1981
        %3303 = vmatpush.msra.mxu0 %v1975
        %3304 = vmatpush.msra.mxu0 %v1969
        %3305 = vmatpush.msra.mxu0 %v1963
        %3306 = vmatpush.msra.mxu0 %v1957
        %3307 = vmatpush.msra.mxu0 %v1951
        %3308 = vmatpush.msra.mxu0 %v1945
        %3309 = vmatmul.f32.gmra.mxu0 %v3191
        %v3310 = vpop.f32.mrf.mxu0
        %v3311 = vadd.f32 0.0, %v3310
        %3312 = vdwg.mxu0
        %3313 = vmatpush.msra.mxu0 0.0
        %3314 = vmatpush.msra.mxu0 0.0
        %3315 = vmatpush.msra.mxu0 0.0
        %3316 = vmatpush.msra.mxu0 0.0
        %3317 = vmatpush.msra.mxu0 0.0
        %3318 = vmatpush.msra.mxu0 0.0
        %3319 = vmatpush.msra.mxu0 0.0
        %3320 = vmatpush.msra.mxu0 0.0
        %3321 = vmatpush.msra.mxu0 %v2083
        %3322 = vmatpush.msra.mxu0 %v2077
        %3323 = vmatpush.msra.mxu0 %v2071
        %3324 = vmatpush.msra.mxu0 %v2065
        %3325 = vmatpush.msra.mxu0 %v2059
        %3326 = vmatpush.msra.mxu0 %v2053
        %3327 = vmatpush.msra.mxu0 %v2047
        %3328 = vmatpush.msra.mxu0 %v2041
        %3329 = vmatmul.f32.gmra.mxu0 %v3291
        %v3330 = vpop.f32.mrf.mxu0
        %v3331 = vadd.f32 %v3311, %v3330
        %3332 = vdwg.mxu0
        %3333 = vmatpush.msra.mxu0 %v2036
        %3334 = vmatpush.msra.mxu0 %v2030
        %3335 = vmatpush.msra.mxu0 %v2024
        %3336 = vmatpush.msra.mxu0 %v2018
        %3337 = vmatpush.msra.mxu0 %v2012
        %3338 = vmatpush.msra.mxu0 %v2006
        %3339 = vmatpush.msra.mxu0 %v2000
        %3340 = vmatpush.msra.mxu0 %v1994
        %3341 = vmatpush.msra.mxu0 %v1988
        %3342 = vmatpush.msra.mxu0 %v1982
        %3343 = vmatpush.msra.mxu0 %v1976
        %3344 = vmatpush.msra.mxu0 %v1970
        %3345 = vmatpush.msra.mxu0 %v1964
        %3346 = vmatpush.msra.mxu0 %v1958
        %3347 = vmatpush.msra.mxu0 %v1952
        %3348 = vmatpush.msra.mxu0 %v1946
        %3349 = vmatmul.f32.gmra.mxu0 %v3191
        %v3350 = vpop.f32.mrf.mxu0
        %v3351 = vadd.f32 0.0, %v3350
        %3352 = vdwg.mxu0
        %3353 = vmatpush.msra.mxu0 0.0
        %3354 = vmatpush.msra.mxu0 0.0
        %3355 = vmatpush.msra.mxu0 0.0
        %3356 = vmatpush.msra.mxu0 0.0
        %3357 = vmatpush.msra.mxu0 0.0
        %3358 = vmatpush.msra.mxu0 0.0
        %3359 = vmatpush.msra.mxu0 0.0
        %3360 = vmatpush.msra.mxu0 0.0
        %3361 = vmatpush.msra.mxu0 %v2084
        %3362 = vmatpush.msra.mxu0 %v2078
        %3363 = vmatpush.msra.mxu0 %v2072
        %3364 = vmatpush.msra.mxu0 %v2066
        %3365 = vmatpush.msra.mxu0 %v2060
        %3366 = vmatpush.msra.mxu0 %v2054
        %3367 = vmatpush.msra.mxu0 %v2048
        %3368 = vmatpush.msra.mxu0 %v2042
        %3369 = vmatmul.f32.gmra.mxu0 %v3291
        %v3370 = vpop.f32.mrf.mxu0
        %v3371 = vadd.f32 %v3351, %v3370
        %3372 = vdwg.mxu0
        %3373 = vmatpush.msra.mxu0 %v2037
        %3374 = vmatpush.msra.mxu0 %v2031
        %3375 = vmatpush.msra.mxu0 %v2025
        %3376 = vmatpush.msra.mxu0 %v2019
        %3377 = vmatpush.msra.mxu0 %v2013
        %3378 = vmatpush.msra.mxu0 %v2007
        %3379 = vmatpush.msra.mxu0 %v2001
        %3380 = vmatpush.msra.mxu0 %v1995
        %3381 = vmatpush.msra.mxu0 %v1989
        %3382 = vmatpush.msra.mxu0 %v1983
        %3383 = vmatpush.msra.mxu0 %v1977
        %3384 = vmatpush.msra.mxu0 %v1971
        %3385 = vmatpush.msra.mxu0 %v1965
        %3386 = vmatpush.msra.mxu0 %v1959
        %3387 = vmatpush.msra.mxu0 %v1953
        %3388 = vmatpush.msra.mxu0 %v1947
        %3389 = vmatmul.f32.gmra.mxu0 %v3191
        %v3390 = vpop.f32.mrf.mxu0
        %v3391 = vadd.f32 0.0, %v3390
        %3392 = vdwg.mxu0
        %3393 = vmatpush.msra.mxu0 0.0
        %3394 = vmatpush.msra.mxu0 0.0
        %3395 = vmatpush.msra.mxu0 0.0
        %3396 = vmatpush.msra.mxu0 0.0
        %3397 = vmatpush.msra.mxu0 0.0
        %3398 = vmatpush.msra.mxu0 0.0
        %3399 = vmatpush.msra.mxu0 0.0
        %3400 = vmatpush.msra.mxu0 0.0
        %3401 = vmatpush.msra.mxu0 %v2085
        %3402 = vmatpush.msra.mxu0 %v2079
        %3403 = vmatpush.msra.mxu0 %v2073
        %3404 = vmatpush.msra.mxu0 %v2067
        %3405 = vmatpush.msra.mxu0 %v2061
        %3406 = vmatpush.msra.mxu0 %v2055
        %3407 = vmatpush.msra.mxu0 %v2049
        %3408 = vmatpush.msra.mxu0 %v2043
        %3409 = vmatmul.f32.gmra.mxu0 %v3291
        %v3410 = vpop.f32.mrf.mxu0
        %v3411 = vadd.f32 %v3391, %v3410
        %3412 = vdwg.mxu0
        %3413 = vmatpush.msra.mxu0 %v2038
        %3414 = vmatpush.msra.mxu0 %v2032
        %3415 = vmatpush.msra.mxu0 %v2026
        %3416 = vmatpush.msra.mxu0 %v2020
        %3417 = vmatpush.msra.mxu0 %v2014
        %3418 = vmatpush.msra.mxu0 %v2008
        %3419 = vmatpush.msra.mxu0 %v2002
        %3420 = vmatpush.msra.mxu0 %v1996
        %3421 = vmatpush.msra.mxu0 %v1990
        %3422 = vmatpush.msra.mxu0 %v1984
        %3423 = vmatpush.msra.mxu0 %v1978
        %3424 = vmatpush.msra.mxu0 %v1972
        %3425 = vmatpush.msra.mxu0 %v1966
        %3426 = vmatpush.msra.mxu0 %v1960
        %3427 = vmatpush.msra.mxu0 %v1954
        %3428 = vmatpush.msra.mxu0 %v1948
        %3429 = vmatmul.f32.gmra.mxu0 %v3191
        %v3430 = vpop.f32.mrf.mxu0
        %v3431 = vadd.f32 0.0, %v3430
        %3432 = vdwg.mxu0
        %3433 = vmatpush.msra.mxu0 0.0
        %3434 = vmatpush.msra.mxu0 0.0
        %3435 = vmatpush.msra.mxu0 0.0
        %3436 = vmatpush.msra.mxu0 0.0
        %3437 = vmatpush.msra.mxu0 0.0
        %3438 = vmatpush.msra.mxu0 0.0
        %3439 = vmatpush.msra.mxu0 0.0
        %3440 = vmatpush.msra.mxu0 0.0
        %3441 = vmatpush.msra.mxu0 %v2086
        %3442 = vmatpush.msra.mxu0 %v2080
        %3443 = vmatpush.msra.mxu0 %v2074
        %3444 = vmatpush.msra.mxu0 %v2068
        %3445 = vmatpush.msra.mxu0 %v2062
        %3446 = vmatpush.msra.mxu0 %v2056
        %3447 = vmatpush.msra.mxu0 %v2050
        %3448 = vmatpush.msra.mxu0 %v2044
        %3449 = vmatmul.f32.gmra.mxu0 %v3291
        %v3450 = vpop.f32.mrf.mxu0
        %v3451 = vadd.f32 %v3431, %v3450
        %3452 = vdwg.mxu0
        %3453 = vmatpush.msra.mxu0 %v2039
        %3454 = vmatpush.msra.mxu0 %v2033
        %3455 = vmatpush.msra.mxu0 %v2027
        %3456 = vmatpush.msra.mxu0 %v2021
        %3457 = vmatpush.msra.mxu0 %v2015
        %3458 = vmatpush.msra.mxu0 %v2009
        %3459 = vmatpush.msra.mxu0 %v2003
        %3460 = vmatpush.msra.mxu0 %v1997
        %3461 = vmatpush.msra.mxu0 %v1991
        %3462 = vmatpush.msra.mxu0 %v1985
        %3463 = vmatpush.msra.mxu0 %v1979
        %3464 = vmatpush.msra.mxu0 %v1973
        %3465 = vmatpush.msra.mxu0 %v1967
        %3466 = vmatpush.msra.mxu0 %v1961
        %3467 = vmatpush.msra.mxu0 %v1955
        %3468 = vmatpush.msra.mxu0 %v1949
        %3469 = vmatmul.f32.gmra.mxu0 %v3191
        %v3470 = vpop.f32.mrf.mxu0
        %v3471 = vadd.f32 0.0, %v3470
        %3472 = vdwg.mxu0
        %3473 = vmatpush.msra.mxu0 0.0
        %3474 = vmatpush.msra.mxu0 0.0
        %3475 = vmatpush.msra.mxu0 0.0
        %3476 = vmatpush.msra.mxu0 0.0
        %3477 = vmatpush.msra.mxu0 0.0
        %3478 = vmatpush.msra.mxu0 0.0
        %3479 = vmatpush.msra.mxu0 0.0
        %3480 = vmatpush.msra.mxu0 0.0
        %3481 = vmatpush.msra.mxu0 %v2087
        %3482 = vmatpush.msra.mxu0 %v2081
        %3483 = vmatpush.msra.mxu0 %v2075
        %3484 = vmatpush.msra.mxu0 %v2069
        %3485 = vmatpush.msra.mxu0 %v2063
        %3486 = vmatpush.msra.mxu0 %v2057
        %3487 = vmatpush.msra.mxu0 %v2051
        %3488 = vmatpush.msra.mxu0 %v2045
        %3489 = vmatmul.f32.gmra.mxu0 %v3291
        %v3490 = vpop.f32.mrf.mxu0
        %v3491 = vadd.f32 %v3471, %v3490
        %3492 = vdwg.mxu0
        %3493 = vmatpush.msra.mxu0 %v2040
        %3494 = vmatpush.msra.mxu0 %v2034
        %3495 = vmatpush.msra.mxu0 %v2028
        %3496 = vmatpush.msra.mxu0 %v2022
        %3497 = vmatpush.msra.mxu0 %v2016
        %3498 = vmatpush.msra.mxu0 %v2010
        %3499 = vmatpush.msra.mxu0 %v2004
        %3500 = vmatpush.msra.mxu0 %v1998
        %3501 = vmatpush.msra.mxu0 %v1992
        %3502 = vmatpush.msra.mxu0 %v1986
        %3503 = vmatpush.msra.mxu0 %v1980
        %3504 = vmatpush.msra.mxu0 %v1974
        %3505 = vmatpush.msra.mxu0 %v1968
        %3506 = vmatpush.msra.mxu0 %v1962
        %3507 = vmatpush.msra.mxu0 %v1956
        %3508 = vmatpush.msra.mxu0 %v1950
        %3509 = vmatmul.f32.gmra.mxu0 %v3191
        %v3510 = vpop.f32.mrf.mxu0
        %v3511 = vadd.f32 0.0, %v3510
        %3512 = vdwg.mxu0
        %3513 = vmatpush.msra.mxu0 0.0
        %3514 = vmatpush.msra.mxu0 0.0
        %3515 = vmatpush.msra.mxu0 0.0
        %3516 = vmatpush.msra.mxu0 0.0
        %3517 = vmatpush.msra.mxu0 0.0
        %3518 = vmatpush.msra.mxu0 0.0
        %3519 = vmatpush.msra.mxu0 0.0
        %3520 = vmatpush.msra.mxu0 0.0
        %3521 = vmatpush.msra.mxu0 %v2088
        %3522 = vmatpush.msra.mxu0 %v2082
        %3523 = vmatpush.msra.mxu0 %v2076
        %3524 = vmatpush.msra.mxu0 %v2070
        %3525 = vmatpush.msra.mxu0 %v2064
        %3526 = vmatpush.msra.mxu0 %v2058
        %3527 = vmatpush.msra.mxu0 %v2052
        %3528 = vmatpush.msra.mxu0 %v2046
        %3529 = vmatmul.f32.gmra.mxu0 %v3291
        %v3530 = vpop.f32.mrf.mxu0
        %v3531 = vadd.f32 %v3511, %v3530
        %3532 = vdwg.mxu0
        %s3533 = scalar_lea.vmem [#allocation2], 3
        %v3534 = vld [vmem:[%s3533] ss:$4 sm:$0xf]
        %v3539 = vrot.slane %v3371, 7
        %v3540 = vrot.slane %v3411, 6
        %v3541 = vrot.slane %v3451, 5
        %v3542 = vsel %vm737, %v3331, %v3539
        %v3543 = vsel %vm1009, %v3540, %v3541
        %v3544 = vsel %vm1201, %v3542, %v3543
        %v3546 = vadd.f32 %v3534, %v3544
        %v3547 = vxor.u32 %v3546, 2147483648
        %v3548 = vmul.f32 %v3547, 1.442695
        %v3549 = vpow.pop %v3548
        %v3550 = vadd.f32 %v3549, 1.0
        %v3551 = vrcp.pop %v3550
        %v3552 = vmul.f32 %v3550, %v3551
        %v3553 = vsub.f32 1.0, %v3552
        %v3554 = vmul.f32 %v3551, %v3553
        %v3555 = vadd.f32 %v3551, %v3554
        %vm3556 = vweird.f32 %v3550
        %vm3557 = vweird.f32 %v3551
        %vm3558 = vmor %vm3556, %vm3557
        %v3559 = vsel %vm3558, %v3551, %v3555
        %v3560 = vand.u32 2147483647, %v3550
        %vm3561 = vcmp.eq.f32.partialorder %v3560, 8.507059e+37
        %v3562 = vand.u32 %v3550, 2147483648
        %v3563 = vor.u32 1.1754944e-38, %v3562
        %v3564 = vsel %vm3561, %v3563, %v3559
        %v3565 = vmul.f32 1.0, %v3564
        %v3567 = vrot.slane %v3546, 3
        %v3569 = vtanh.pop %v3567
        %v3571 = vrot.slane %v3565, 1
        %v3573 = vmul.f32 %v3571, %v3187
        %v3574 = vmul.f32 %v3565, %v3569
        %v3575 = vadd.f32 %v3573, %v3574
        %v3576 = vtanh.pop %v3575
        %v3577 = vrot.slane %v3565, 2
        %v3579 = vmul.f32 %v3577, %v3576
        %3580 = vmatpush.msra.mxu0 %v2408
        %3581 = vmatpush.msra.mxu0 %v2406
        %3582 = vmatpush.msra.mxu0 %v2404
        %3583 = vmatpush.msra.mxu0 %v2402
        %3584 = vmatpush.msra.mxu0 %v2400
        %3585 = vmatpush.msra.mxu0 %v2398
        %3586 = vmatpush.msra.mxu0 %v2396
        %3587 = vmatpush.msra.mxu0 %v2394
        %3588 = vmatpush.msra.mxu0 %v2392
        %3589 = vmatpush.msra.mxu0 %v2390
        %3590 = vmatpush.msra.mxu0 %v2388
        %3591 = vmatpush.msra.mxu0 %v2386
        %3592 = vmatpush.msra.mxu0 %v2384
        %3593 = vmatpush.msra.mxu0 %v2382
        %3594 = vmatpush.msra.mxu0 %v2380
        %3595 = vmatpush.msra.mxu0 %v2378
        %3596 = vmatmul.f32.gmra.mxu0 %v3579
        %v3597 = vpop.f32.mrf.mxu0
        %v3598 = vadd.f32 %v2412, %v3597
        %3599 = vdwg.mxu0
        %3600 = vmatpush.msra.mxu0 %v2409
        %3601 = vmatpush.msra.mxu0 %v2407
        %3602 = vmatpush.msra.mxu0 %v2405
        %3603 = vmatpush.msra.mxu0 %v2403
        %3604 = vmatpush.msra.mxu0 %v2401
        %3605 = vmatpush.msra.mxu0 %v2399
        %3606 = vmatpush.msra.mxu0 %v2397
        %3607 = vmatpush.msra.mxu0 %v2395
        %3608 = vmatpush.msra.mxu0 %v2393
        %3609 = vmatpush.msra.mxu0 %v2391
        %3610 = vmatpush.msra.mxu0 %v2389
        %3611 = vmatpush.msra.mxu0 %v2387
        %3612 = vmatpush.msra.mxu0 %v2385
        %3613 = vmatpush.msra.mxu0 %v2383
        %3614 = vmatpush.msra.mxu0 %v2381
        %3615 = vmatpush.msra.mxu0 %v2379
        %3616 = vmatmul.f32.gmra.mxu0 %v3579
        %v3617 = vpop.f32.mrf.mxu0
        %v3618 = vadd.f32 %v2413, %v3617
        %3619 = vdwg.mxu0
        %v3620 = vadd.f32 %v3598, %v3491
        %v3621 = vadd.f32 %v3618, %v3531
        %v3622 = vxor.u32 %v3620, 2147483648
        %v3623 = vxor.u32 %v3621, 2147483648
        %v3624 = vmul.f32 %v3622, 1.442695
        %v3625 = vpow.pop %v3624
        %v3626 = vmul.f32 %v3623, 1.442695
        %v3627 = vpow.pop %v3626
        %v3628 = vadd.f32 %v3625, 1.0
        %v3629 = vadd.f32 %v3627, 1.0
        %v3630 = vrcp.pop %v3628
        %v3631 = vmul.f32 %v3628, %v3630
        %v3632 = vsub.f32 1.0, %v3631
        %v3633 = vmul.f32 %v3630, %v3632
        %v3634 = vadd.f32 %v3630, %v3633
        %vm3635 = vweird.f32 %v3628
        %vm3636 = vweird.f32 %v3630
        %vm3637 = vmor %vm3635, %vm3636
        %v3638 = vsel %vm3637, %v3630, %v3634
        %v3639 = vand.u32 2147483647, %v3628
        %vm3640 = vcmp.eq.f32.partialorder %v3639, 8.507059e+37
        %v3641 = vand.u32 %v3628, 2147483648
        %v3642 = vor.u32 1.1754944e-38, %v3641
        %v3643 = vsel %vm3640, %v3642, %v3638
        %v3644 = vmul.f32 1.0, %v3643
        %v3645 = vrcp.pop %v3629
        %v3646 = vmul.f32 %v3629, %v3645
        %v3647 = vsub.f32 1.0, %v3646
        %v3648 = vmul.f32 %v3645, %v3647
        %v3649 = vadd.f32 %v3645, %v3648
        %vm3650 = vweird.f32 %v3629
        %vm3651 = vweird.f32 %v3645
        %vm3652 = vmor %vm3650, %vm3651
        %v3653 = vsel %vm3652, %v3645, %v3649
        %v3654 = vand.u32 2147483647, %v3629
        %vm3655 = vcmp.eq.f32.partialorder %v3654, 8.507059e+37
        %v3656 = vand.u32 %v3629, 2147483648
        %v3657 = vor.u32 1.1754944e-38, %v3656
        %v3658 = vsel %vm3655, %v3657, %v3653
        %v3659 = vmul.f32 1.0, %v3658
        %v3660 = vtanh.pop %v3621
        %v3661 = vmul.f32 %v3644, %v3283
        %3663 = vrot.lane.b32.xlu0 %v3660, 64
        %v3664 = vpop.permute.xlu0 %3663
        %v3666 = vmul.f32 %v3644, %v3664
        %3668 = vrot.lane.b32.xlu0 %v3666, 64
        %v3669 = vpop.permute.xlu0 %3668
        %v3671 = vadd.f32 %v3661, %v3669
        %v3672 = vtanh.pop %v3671
        %3674 = vrot.lane.b32.xlu0 %v3672, 64
        %v3675 = vpop.permute.xlu0 %3674
        %v3677 = vmul.f32 %v3659, %v3675
        %v3678 = vld [vmem:[%s15] sm:$0xff]
        %v3679 = vld [vmem:[%s15 + $0x8] sm:$0xff]
        %v3680 = vld [vmem:[%s15 + $0x10] sm:$0xff]
        %v3681 = vld [vmem:[%s15 + $0x18] sm:$0xff]
        %v3682 = vld [vmem:[%s15 + $0x20] sm:$0xff]
        %v3683 = vld [vmem:[%s15 + $0x28] sm:$0xff]
        %v3684 = vld [vmem:[%s15 + $0x30] sm:$0xff]
        %v3685 = vld [vmem:[%s15 + $0x38] sm:$0xff]
        %v3686 = vld [vmem:[%s16] sm:$0x1]
        %v3688 = vsel %vm1063, %v3677, 0
        %3690 = vmatpush.msra.mxu0 0.0
        %3691 = vmatpush.msra.mxu0 0.0
        %3692 = vmatpush.msra.mxu0 0.0
        %3693 = vmatpush.msra.mxu0 0.0
        %3694 = vmatpush.msra.mxu0 0.0
        %3695 = vmatpush.msra.mxu0 0.0
        %3696 = vmatpush.msra.mxu0 0.0
        %3697 = vmatpush.msra.mxu0 0.0
        %3698 = vmatpush.msra.mxu0 %v3685
        %3699 = vmatpush.msra.mxu0 %v3684
        %3700 = vmatpush.msra.mxu0 %v3683
        %3701 = vmatpush.msra.mxu0 %v3682
        %3702 = vmatpush.msra.mxu0 %v3681
        %3703 = vmatpush.msra.mxu0 %v3680
        %3704 = vmatpush.msra.mxu0 %v3679
        %3705 = vmatpush.msra.mxu0 %v3678
        %3706 = vmatmul.f32.gmra.mxu0 %v3688
        %v3707 = vpop.f32.mrf.mxu0
        %v3708 = vadd.f32 %v3686, %v3707
        %3709 = vdwg.mxu0
        %v3710 = vmax.f32 %v3708, 0.0
        %v3711 = vld [vmem:[#allocation15] sm:$0xff]
        %v3712 = vld [vmem:[#allocation15 + $0x8] sm:$0xff]
        %v3713 = vld [vmem:[#allocation15 + $0x10] sm:$0xff]
        %v3714 = vld [vmem:[#allocation15 + $0x18] sm:$0xff]
        %v3715 = vld [vmem:[#allocation15 + $0x20] sm:$0xff]
        %v3716 = vld [vmem:[#allocation15 + $0x28] sm:$0xff]
        %v3717 = vld [vmem:[#allocation15 + $0x30] sm:$0xff]
        %v3718 = vld [vmem:[#allocation15 + $0x38] sm:$0xff]
        %v3719 = vld [vmem:[%s18] sm:$0x1]
        %v3721 = vsel %vm1063, %v3710, 0
        %3723 = vmatpush.msra.mxu0 0.0
        %3724 = vmatpush.msra.mxu0 0.0
        %3725 = vmatpush.msra.mxu0 0.0
        %3726 = vmatpush.msra.mxu0 0.0
        %3727 = vmatpush.msra.mxu0 0.0
        %3728 = vmatpush.msra.mxu0 0.0
        %3729 = vmatpush.msra.mxu0 0.0
        %3730 = vmatpush.msra.mxu0 0.0
        %3731 = vmatpush.msra.mxu0 %v3718
        %3732 = vmatpush.msra.mxu0 %v3717
        %3733 = vmatpush.msra.mxu0 %v3716
        %3734 = vmatpush.msra.mxu0 %v3715
        %3735 = vmatpush.msra.mxu0 %v3714
        %3736 = vmatpush.msra.mxu0 %v3713
        %3737 = vmatpush.msra.mxu0 %v3712
        %3738 = vmatpush.msra.mxu0 %v3711
        %3739 = vmatmul.f32.gmra.mxu0 %v3721
        %v3740 = vpop.f32.mrf.mxu0
        %v3741 = vadd.f32 %v3719, %v3740
        %3742 = vdwg.mxu0
        %3743 = vst [vmem:[%s723] sm:$0x1] %v3741
        %s3744 = sand.u32 %s450, 1
        %s3745 = scalar_lea.sflag [#allocation5], %s3744
        %s3746 = sand.u32 %s450, 1
        %s3747 = scalar_lea.vmem [#allocation17], %s3746
        // Predicated region
        $region129: #{forward_pallas.1} parent=95 // pred_check
          %p3748 = pneg %p460
        $region130: #{forward_pallas.1} parent=95 // pred_check_branch
          %3750 = sbr.rel (%p3748) target = $region132
        $region131: #{forward_pallas.1} parent=95 // pred_region
          %3752 = vsyncadd %s3745, 0
          %s3753 = scalar_lea.hbm %s19, %s38
          %s3755 = sshll.u32 %s3747, 4
          %s3756 = int_to_ptr.vmem [resolvable:$true] %s3755
          %s3757 = sshll.u32 %s3753, 4
          %s3758 = int_to_ptr.hbm [resolvable:$true] %s3757
          %3760 = dma.vmem_to_hbm [thread:$0]  %s3756, 16, %s3758, %s3745
        $region132: #{forward_pallas.1} parent=95 // pred_fallthru
          _
      $region96: #{forward_pallas.1} parent=5 // pred_fallthru
        _
      %p3761 = scmp.le.s32.totalorder 2, %s33
      // Predicated region
      $region133: #{forward_pallas.1} parent=5 // pred_check
        %p3762 = pneg %p3761
      $region134: #{forward_pallas.1} parent=5 // pred_check_branch
        %3764 = sbr.rel (%p3762) target = $region136
      $region135: #{forward_pallas.1} parent=5 // pred_region
        %s3765 = ssub.s32 %s33, 2
        // Predicated region
        $region137: #{forward_pallas.1} parent=135 // pred_check
          %p3766 = pneg %p466
        $region138: #{forward_pallas.1} parent=135 // pred_check_branch
          %3768 = sbr.rel (%p3766) target = $region140
        $region139: #{forward_pallas.1} parent=135 // pred_region
          %s3769 = sand.u32 %s451, 1
          %s3770 = scalar_lea.sflag [#allocation5], %s3769
          %s3771 = sand.u32 %s451, 1
          %s3772 = scalar_lea.vmem [#allocation17], %s3771
          %3774 = dma.done %s3770, 16
        $region140: #{forward_pallas.1} parent=135 // pred_fallthru
          _
      $region136: #{forward_pallas.1} parent=5 // pred_fallthru
        _
    $region6: #{forward_pallas.1} parent=1 // loop_footer
      %s37 = sadd.s32 1, %s33
    $region7: #{forward_pallas.1} parent=1 // loop_footer_branch
      %32 = sbr.rel target = $region3
    $region8: #{forward_pallas.1} parent=1 // loop_exit
      _
    %3775 = vsyncpa [#allocation4], 1
    %s3776 = scalar_lea.sflag [#allocation4], 1
    %3777 = vsyncpa %s3776, 1
    %3778 = vsyncpa [#allocation7], 1
    %3779 = vsyncpa [#allocation10], 1
    %3780 = vsyncpa [#allocation13], 1
    %3781 = vsyncpa [#allocation16], 1
    %3782 = vsyncpa [#allocation5], 1
    %s3783 = scalar_lea.sflag [#allocation5], 1
    %3784 = vsyncpa %s3783, 1

</llo_original>
